<compile_context>
chip_gen: v6e
topology: v6e:2x2x1
jax: 0.10.0
libtpu: 0.0.40
codegen_flags: <defaults>
</compile_context>

<pallas_src>
import jax
import jax.numpy as jnp
from jax.experimental import pallas as pl
from jax.experimental.pallas import tpu as pltpu

# logical (PyTorch) sizes
D_IN = 236
H1 = 256
H2 = 344
D_RES = 344      # output of self.net
H3 = 512
D_OUT = 344      # output of self.net2

# lane-padded sizes (multiples of 128; padding rows/cols are zero => exact)
D_IN_P = 256
H1_P = 256
H2_P = 384
D_RES_P = 384
H3_P = 512
D_OUT_P = 384


def _round_up(n, m):
    return ((n + m - 1) // m) * m


def simplenet2_kernel(x_ref,
                      w1_ref, b1_ref,
                      w2_ref, b2_ref,
                      w3_ref, b3_ref,
                      w4a_ref, w4b_ref, b4_ref,
                      w5_ref, b5_ref,
                      out_ref):
    # x tile is already bf16 (cast folded into the wrapper-side padding).
    x = x_ref[...]

    # --- self.net: Linear(236,256) -> ReLU -> Linear(256,344) -> ReLU -> Linear(344,344)
    h = jnp.dot(x, w1_ref[...], preferred_element_type=jnp.float32) + b1_ref[...]
    h = jnp.maximum(h, 0.0).astype(jnp.bfloat16)
    h = jnp.dot(h, w2_ref[...], preferred_element_type=jnp.float32) + b2_ref[...]
    h = jnp.maximum(h, 0.0).astype(jnp.bfloat16)
    res = (jnp.dot(h, w3_ref[...], preferred_element_type=jnp.float32)
           + b3_ref[...]).astype(jnp.bfloat16)

    # --- self.net2 on concat((res, x), dim=1), concat fused into a split matmul:
    #     concat(res, x) @ W4 = res @ W4[:344] + x @ W4[344:]
    g = (jnp.dot(res, w4a_ref[...], preferred_element_type=jnp.float32)
         + jnp.dot(x, w4b_ref[...], preferred_element_type=jnp.float32)
         + b4_ref[...])
    g = jnp.maximum(g, 0.0).astype(jnp.bfloat16)
    out = (jnp.dot(g, w5_ref[...], preferred_element_type=jnp.float32)
           + b5_ref[...])
    out_ref[...] = out.astype(out_ref.dtype)


def _pick_tb(batch):
    """Batch tile: multiple of 16 (bf16 sublane packing), capped at 1024,
    and <= ~half the batch once B >= 512 so the 'parallel' grid axis has
    >= 2 steps for the two v7x TensorCores."""
    tb = min(1024, _round_up(max(batch, 1), 16))
    if batch >= 512:
        half = _round_up(pl.cdiv(batch, 2), 16)
        tb = min(tb, half)
    return tb


def pad_input(x, tb):
    """Zero-pad batch to a multiple of tb and features 236 -> 256, casting to
    bf16 once here (exact: padded weight rows are zero)."""
    B = x.shape[0]
    b_pad = _round_up(B, tb)
    return (jnp.zeros((b_pad, D_IN_P), jnp.bfloat16)
            .at[:B, :D_IN].set(x.astype(jnp.bfloat16)))


def simplenet2_forward_padded(x_p, params, *, tb, out_dtype=jnp.float32):
    """x_p: (b_pad, 256) bf16, b_pad % tb == 0. Returns padded (b_pad, 384)
    output; valid data is out[:B, :344]. Use this path to avoid per-call
    pad/slice HBM traffic when the caller can manage padding itself."""
    (w1, b1, w2, b2, w3, b3, w4a, w4b, b4, w5, b5) = params
    b_pad = x_p.shape[0]
    assert b_pad % tb == 0 and x_p.shape[1] == D_IN_P

    grid = (b_pad // tb,)

    def batch_spec(d):
        return pl.BlockSpec((tb, d), lambda i: (i, 0))

    def const_spec(shape):
        return pl.BlockSpec(shape, lambda i: tuple(0 for _ in shape))

    weights = (w1, b1, w2, b2, w3, b3, w4a, w4b, b4, w5, b5)
    in_specs = [batch_spec(D_IN_P)] + [const_spec(w.shape) for w in weights]

    # Large tiles need an explicit scoped-VMEM limit (v5e default is 16 MiB);
    # 48 MiB leaves headroom under v7x's 64 MiB physical VMEM per core.
    vmem_limit = 48 * 1024 * 1024 if tb >= 512 else None

    return pl.pallas_call(
        simplenet2_kernel,
        out_shape=jax.ShapeDtypeStruct((b_pad, D_OUT_P), out_dtype),
        grid=grid,
        in_specs=in_specs,
        out_specs=batch_spec(D_OUT_P),
        compiler_params=pltpu.CompilerParams(
            dimension_semantics=("parallel",),
            vmem_limit_bytes=vmem_limit),
    )(x_p, *weights)


def simplenet2_forward(x, params, *, tb=None, out_dtype=jnp.float32):
    """Convenience wrapper: x: (B, 236) f32; returns (B, 344) out_dtype."""
    B = x.shape[0]
    if tb is None:
        tb = _pick_tb(B)
    x_p = pad_input(x, tb)
    out_p = simplenet2_forward_padded(x_p, params, tb=tb, out_dtype=out_dtype)
    return out_p[:B, :D_OUT]


def init_params(key):
    """Deterministic init mimicking PyTorch Linear's U(-1/sqrt(fan_in), +1/sqrt(fan_in)).

    Returns logical (unpadded, f32) params; pack_params() pads + casts for the kernel.
    """
    def linear(key, fan_in, fan_out):
        kw, kb = jax.random.split(key)
        bound = 1.0 / jnp.sqrt(float(fan_in))
        w = jax.random.uniform(kw, (fan_in, fan_out), jnp.float32, -bound, bound)
        b = jax.random.uniform(kb, (fan_out,), jnp.float32, -bound, bound)
        return w, b

    k1, k2, k3, k4, k5 = jax.random.split(key, 5)
    w1, b1 = linear(k1, D_IN, H1)
    w2, b2 = linear(k2, H1, H2)
    w3, b3 = linear(k3, H2, D_RES)
    w4, b4 = linear(k4, D_RES + D_IN, H3)   # Linear(580, 512)
    w5, b5 = linear(k5, H3, D_OUT)
    # pre-split W4 to fuse the concat: rows [0:344] hit `res`, rows [344:580] hit `x`
    w4a = w4[:D_RES, :]
    w4b = w4[D_RES:, :]
    return (w1, b1, w2, b2, w3, b3, w4a, w4b, b4, w5, b5)


def pack_params(logical):
    """Zero-pad to lane multiples and cast weights to bf16 (biases stay f32)."""
    (w1, b1, w2, b2, w3, b3, w4a, w4b, b4, w5, b5) = logical

    def pad_w(w, rp, cp):
        out = jnp.zeros((rp, cp), jnp.float32).at[:w.shape[0], :w.shape[1]].set(w)
        return out.astype(jnp.bfloat16)

    def pad_b(b, cp):
        return jnp.zeros((1, cp), jnp.float32).at[0, :b.shape[0]].set(b)

    return (pad_w(w1, D_IN_P, H1_P),   pad_b(b1, H1_P),
            pad_w(w2, H1_P, H2_P),     pad_b(b2, H2_P),
            pad_w(w3, H2_P, D_RES_P),  pad_b(b3, D_RES_P),
            pad_w(w4a, D_RES_P, H3_P), pad_w(w4b, D_IN_P, H3_P), pad_b(b4, H3_P),
            pad_w(w5, H3_P, D_OUT_P),  pad_b(b5, D_OUT_P))


def reference_forward(x, logical_params):
    """Pure-JAX reference on unpadded params, matching the kernel's bf16-matmul /
    f32-accumulate numerics."""
    (w1, b1, w2, b2, w3, b3, w4a, w4b, b4, w5, b5) = logical_params
    bf = jnp.bfloat16

    def mm(a, w):
        return jnp.dot(a.astype(bf), w.astype(bf),
                       preferred_element_type=jnp.float32)

    h = jnp.maximum(mm(x, w1) + b1, 0.0)
    h = jnp.maximum(mm(h, w2) + b2, 0.0)
    res = mm(h, w3) + b3
    g = jnp.maximum(mm(res, w4a) + mm(x, w4b) + b4, 0.0)
    return mm(g, w5) + b5


if __name__ == "__main__":
    key = jax.random.PRNGKey(0)
    kx, kp = jax.random.split(key)

    # NOTE: B=8 is a latency test shape (MXU fill-bound); throughput tuning
    # (tb up to 1024, >=2 grid steps) only engages for large batches.
    B = 8
    x = jax.random.normal(kx, (B, D_IN), jnp.float32)

    logical = init_params(kp)
    params = pack_params(logical)

    out = simplenet2_forward(x, params)
    out = jax.block_until_ready(out)

    ref = reference_forward(x, logical)
    assert out.shape == (B, D_OUT)
    max_err = float(jnp.max(jnp.abs(out - ref)))
    assert jnp.allclose(out, ref, atol=1e-2, rtol=1e-2), \
        f"mismatch vs reference (max |err| = {max_err})"

    print("KERNEL_OK")
</pallas_src>

<mosaic_0001>
module attributes {stable_mosaic.version = 11 : i64} {
  func.func @simplenet2_kernel(%arg0: i32, %arg1: memref<16x256xbf16, #tpu.memory_space<vmem>>, %arg2: memref<256x256xbf16, #tpu.memory_space<vmem>>, %arg3: memref<1x256xf32, #tpu.memory_space<vmem>>, %arg4: memref<256x384xbf16, #tpu.memory_space<vmem>>, %arg5: memref<1x384xf32, #tpu.memory_space<vmem>>, %arg6: memref<384x384xbf16, #tpu.memory_space<vmem>>, %arg7: memref<1x384xf32, #tpu.memory_space<vmem>>, %arg8: memref<384x512xbf16, #tpu.memory_space<vmem>>, %arg9: memref<256x512xbf16, #tpu.memory_space<vmem>>, %arg10: memref<1x512xf32, #tpu.memory_space<vmem>>, %arg11: memref<512x384xbf16, #tpu.memory_space<vmem>>, %arg12: memref<1x384xf32, #tpu.memory_space<vmem>>, %arg13: memref<16x384xf32, #tpu.memory_space<vmem>>) attributes {dimension_semantics = [#tpu.dimension_semantics<parallel>], iteration_bounds = array<i64: 1>, scalar_prefetch = 0 : i64, scratch_operands = 0 : i64, tpu.core_type = #tpu.core_type<tc>, window_params = [{transform_indices = @transform_0, window_bounds = array<i64: 16, 256>}, {pipeline_mode = #tpu.pipeline_mode<synchronous>, transform_indices = @transform_1, window_bounds = array<i64: 256, 256>}, {pipeline_mode = #tpu.pipeline_mode<synchronous>, transform_indices = @transform_2, window_bounds = array<i64: 1, 256>}, {pipeline_mode = #tpu.pipeline_mode<synchronous>, transform_indices = @transform_3, window_bounds = array<i64: 256, 384>}, {pipeline_mode = #tpu.pipeline_mode<synchronous>, transform_indices = @transform_4, window_bounds = array<i64: 1, 384>}, {pipeline_mode = #tpu.pipeline_mode<synchronous>, transform_indices = @transform_5, window_bounds = array<i64: 384, 384>}, {pipeline_mode = #tpu.pipeline_mode<synchronous>, transform_indices = @transform_6, window_bounds = array<i64: 1, 384>}, {pipeline_mode = #tpu.pipeline_mode<synchronous>, transform_indices = @transform_7, window_bounds = array<i64: 384, 512>}, {pipeline_mode = #tpu.pipeline_mode<synchronous>, transform_indices = @transform_8, window_bounds = array<i64: 256, 512>}, {pipeline_mode = #tpu.pipeline_mode<synchronous>, transform_indices = @transform_9, window_bounds = array<i64: 1, 512>}, {pipeline_mode = #tpu.pipeline_mode<synchronous>, transform_indices = @transform_10, window_bounds = array<i64: 512, 384>}, {pipeline_mode = #tpu.pipeline_mode<synchronous>, transform_indices = @transform_11, window_bounds = array<i64: 1, 384>}, {transform_indices = @transform_12, window_bounds = array<i64: 16, 384>}]} {
    %c0 = arith.constant 0 : index
    %c0_0 = arith.constant 0 : index
    %0 = vector.load %arg1[%c0, %c0_0] : memref<16x256xbf16, #tpu.memory_space<vmem>>, vector<16x256xbf16>
    %c0_1 = arith.constant 0 : index
    %c0_2 = arith.constant 0 : index
    %1 = vector.load %arg2[%c0_1, %c0_2] : memref<256x256xbf16, #tpu.memory_space<vmem>>, vector<256x256xbf16>
    %cst = arith.constant dense<0.000000e+00> : vector<16x256xf32>
    %2 = tpu.matmul %0, %1, %cst {dimension_numbers = #tpu.dot_dimension_numbers<[1], [0], [0], [1], [0, 0, 1, 1], [], []>} : vector<16x256xbf16>, vector<256x256xbf16>, vector<16x256xf32> -> vector<16x256xf32>
    %c0_3 = arith.constant 0 : index
    %c0_4 = arith.constant 0 : index
    %3 = vector.load %arg3[%c0_3, %c0_4] : memref<1x256xf32, #tpu.memory_space<vmem>>, vector<1x256xf32>
    %4 = vector.broadcast %3 : vector<1x256xf32> to vector<16x256xf32>
    %5 = arith.addf %2, %4 : vector<16x256xf32>
    %cst_5 = arith.constant 0.000000e+00 : f32
    %6 = vector.broadcast %cst_5 : f32 to vector<16x256xf32>
    %7 = arith.maximumf %5, %6 : vector<16x256xf32>
    %8 = arith.truncf %7 : vector<16x256xf32> to vector<16x256xbf16>
    %c0_6 = arith.constant 0 : index
    %c0_7 = arith.constant 0 : index
    %9 = vector.load %arg4[%c0_6, %c0_7] : memref<256x384xbf16, #tpu.memory_space<vmem>>, vector<256x384xbf16>
    %cst_8 = arith.constant dense<0.000000e+00> : vector<16x384xf32>
    %10 = tpu.matmul %8, %9, %cst_8 {dimension_numbers = #tpu.dot_dimension_numbers<[1], [0], [0], [1], [0, 0, 1, 1], [], []>} : vector<16x256xbf16>, vector<256x384xbf16>, vector<16x384xf32> -> vector<16x384xf32>
    %c0_9 = arith.constant 0 : index
    %c0_10 = arith.constant 0 : index
    %11 = vector.load %arg5[%c0_9, %c0_10] : memref<1x384xf32, #tpu.memory_space<vmem>>, vector<1x384xf32>
    %12 = vector.broadcast %11 : vector<1x384xf32> to vector<16x384xf32>
    %13 = arith.addf %10, %12 : vector<16x384xf32>
    %cst_11 = arith.constant 0.000000e+00 : f32
    %14 = vector.broadcast %cst_11 : f32 to vector<16x384xf32>
    %15 = arith.maximumf %13, %14 : vector<16x384xf32>
    %16 = arith.truncf %15 : vector<16x384xf32> to vector<16x384xbf16>
    %c0_12 = arith.constant 0 : index
    %c0_13 = arith.constant 0 : index
    %17 = vector.load %arg6[%c0_12, %c0_13] : memref<384x384xbf16, #tpu.memory_space<vmem>>, vector<384x384xbf16>
    %cst_14 = arith.constant dense<0.000000e+00> : vector<16x384xf32>
    %18 = tpu.matmul %16, %17, %cst_14 {dimension_numbers = #tpu.dot_dimension_numbers<[1], [0], [0], [1], [0, 0, 1, 1], [], []>} : vector<16x384xbf16>, vector<384x384xbf16>, vector<16x384xf32> -> vector<16x384xf32>
    %c0_15 = arith.constant 0 : index
    %c0_16 = arith.constant 0 : index
    %19 = vector.load %arg7[%c0_15, %c0_16] : memref<1x384xf32, #tpu.memory_space<vmem>>, vector<1x384xf32>
    %20 = vector.broadcast %19 : vector<1x384xf32> to vector<16x384xf32>
    %21 = arith.addf %18, %20 : vector<16x384xf32>
    %22 = arith.truncf %21 : vector<16x384xf32> to vector<16x384xbf16>
    %c0_17 = arith.constant 0 : index
    %c0_18 = arith.constant 0 : index
    %23 = vector.load %arg8[%c0_17, %c0_18] : memref<384x512xbf16, #tpu.memory_space<vmem>>, vector<384x512xbf16>
    %cst_19 = arith.constant dense<0.000000e+00> : vector<16x512xf32>
    %24 = tpu.matmul %22, %23, %cst_19 {dimension_numbers = #tpu.dot_dimension_numbers<[1], [0], [0], [1], [0, 0, 1, 1], [], []>} : vector<16x384xbf16>, vector<384x512xbf16>, vector<16x512xf32> -> vector<16x512xf32>
    %c0_20 = arith.constant 0 : index
    %c0_21 = arith.constant 0 : index
    %25 = vector.load %arg9[%c0_20, %c0_21] : memref<256x512xbf16, #tpu.memory_space<vmem>>, vector<256x512xbf16>
    %cst_22 = arith.constant dense<0.000000e+00> : vector<16x512xf32>
    %26 = tpu.matmul %0, %25, %cst_22 {dimension_numbers = #tpu.dot_dimension_numbers<[1], [0], [0], [1], [0, 0, 1, 1], [], []>} : vector<16x256xbf16>, vector<256x512xbf16>, vector<16x512xf32> -> vector<16x512xf32>
    %27 = arith.addf %24, %26 : vector<16x512xf32>
    %c0_23 = arith.constant 0 : index
    %c0_24 = arith.constant 0 : index
    %28 = vector.load %arg10[%c0_23, %c0_24] : memref<1x512xf32, #tpu.memory_space<vmem>>, vector<1x512xf32>
    %29 = vector.broadcast %28 : vector<1x512xf32> to vector<16x512xf32>
    %30 = arith.addf %27, %29 : vector<16x512xf32>
    %cst_25 = arith.constant 0.000000e+00 : f32
    %31 = vector.broadcast %cst_25 : f32 to vector<16x512xf32>
    %32 = arith.maximumf %30, %31 : vector<16x512xf32>
    %33 = arith.truncf %32 : vector<16x512xf32> to vector<16x512xbf16>
    %c0_26 = arith.constant 0 : index
    %c0_27 = arith.constant 0 : index
    %34 = vector.load %arg11[%c0_26, %c0_27] : memref<512x384xbf16, #tpu.memory_space<vmem>>, vector<512x384xbf16>
    %cst_28 = arith.constant dense<0.000000e+00> : vector<16x384xf32>
    %35 = tpu.matmul %33, %34, %cst_28 {dimension_numbers = #tpu.dot_dimension_numbers<[1], [0], [0], [1], [0, 0, 1, 1], [], []>} : vector<16x512xbf16>, vector<512x384xbf16>, vector<16x384xf32> -> vector<16x384xf32>
    %c0_29 = arith.constant 0 : index
    %c0_30 = arith.constant 0 : index
    %36 = vector.load %arg12[%c0_29, %c0_30] : memref<1x384xf32, #tpu.memory_space<vmem>>, vector<1x384xf32>
    %37 = vector.broadcast %36 : vector<1x384xf32> to vector<16x384xf32>
    %38 = arith.addf %35, %37 : vector<16x384xf32>
    %c0_31 = arith.constant 0 : index
    %c0_32 = arith.constant 0 : index
    %39 = vector.load %arg13[%c0_31, %c0_32] : memref<16x384xf32, #tpu.memory_space<vmem>>, vector<16x384xf32>
    tpu.vector_store %arg13[%c0_31, %c0_32], %38 {strides = array<i32>} : memref<16x384xf32, #tpu.memory_space<vmem>>, vector<16x384xf32>,
    return
  }
  func.func @transform_0(%arg0: i32) -> (i32, i32) {
    %c0_i32 = arith.constant 0 : i32
    %c0_i32_0 = arith.constant 0 : i32
    return %arg0, %c0_i32 : i32, i32
  }
  func.func @transform_1(%arg0: i32) -> (i32, i32) {
    %c0_i32 = arith.constant 0 : i32
    %c0_i32_0 = arith.constant 0 : i32
    %c0_i32_1 = arith.constant 0 : i32
    return %c0_i32, %c0_i32_0 : i32, i32
  }
  func.func @transform_2(%arg0: i32) -> (i32, i32) {
    %c0_i32 = arith.constant 0 : i32
    %c0_i32_0 = arith.constant 0 : i32
    %c0_i32_1 = arith.constant 0 : i32
    return %c0_i32, %c0_i32_0 : i32, i32
  }
  func.func @transform_3(%arg0: i32) -> (i32, i32) {
    %c0_i32 = arith.constant 0 : i32
    %c0_i32_0 = arith.constant 0 : i32
    %c0_i32_1 = arith.constant 0 : i32
    return %c0_i32, %c0_i32_0 : i32, i32
  }
  func.func @transform_4(%arg0: i32) -> (i32, i32) {
    %c0_i32 = arith.constant 0 : i32
    %c0_i32_0 = arith.constant 0 : i32
    %c0_i32_1 = arith.constant 0 : i32
    return %c0_i32, %c0_i32_0 : i32, i32
  }
  func.func @transform_5(%arg0: i32) -> (i32, i32) {
    %c0_i32 = arith.constant 0 : i32
    %c0_i32_0 = arith.constant 0 : i32
    %c0_i32_1 = arith.constant 0 : i32
    return %c0_i32, %c0_i32_0 : i32, i32
  }
  func.func @transform_6(%arg0: i32) -> (i32, i32) {
    %c0_i32 = arith.constant 0 : i32
    %c0_i32_0 = arith.constant 0 : i32
    %c0_i32_1 = arith.constant 0 : i32
    return %c0_i32, %c0_i32_0 : i32, i32
  }
  func.func @transform_7(%arg0: i32) -> (i32, i32) {
    %c0_i32 = arith.constant 0 : i32
    %c0_i32_0 = arith.constant 0 : i32
    %c0_i32_1 = arith.constant 0 : i32
    return %c0_i32, %c0_i32_0 : i32, i32
  }
  func.func @transform_8(%arg0: i32) -> (i32, i32) {
    %c0_i32 = arith.constant 0 : i32
    %c0_i32_0 = arith.constant 0 : i32
    %c0_i32_1 = arith.constant 0 : i32
    return %c0_i32, %c0_i32_0 : i32, i32
  }
  func.func @transform_9(%arg0: i32) -> (i32, i32) {
    %c0_i32 = arith.constant 0 : i32
    %c0_i32_0 = arith.constant 0 : i32
    %c0_i32_1 = arith.constant 0 : i32
    return %c0_i32, %c0_i32_0 : i32, i32
  }
  func.func @transform_10(%arg0: i32) -> (i32, i32) {
    %c0_i32 = arith.constant 0 : i32
    %c0_i32_0 = arith.constant 0 : i32
    %c0_i32_1 = arith.constant 0 : i32
    return %c0_i32, %c0_i32_0 : i32, i32
  }
  func.func @transform_11(%arg0: i32) -> (i32, i32) {
    %c0_i32 = arith.constant 0 : i32
    %c0_i32_0 = arith.constant 0 : i32
    %c0_i32_1 = arith.constant 0 : i32
    return %c0_i32, %c0_i32_0 : i32, i32
  }
  func.func @transform_12(%arg0: i32) -> (i32, i32) {
    %c0_i32 = arith.constant 0 : i32
    %c0_i32_0 = arith.constant 0 : i32
    return %arg0, %c0_i32 : i32, i32
  }
}

</mosaic_0001>

<llo_original>
// kernel: tpu_custom_call.1
$region0: #{tpu_custom_call.1}
  #allocation0 [shape = 'u32[]', space=smem, size = 0x4, offset = 0x4, fixed_abs, tag = 'smem constant byte address 0x4 - core index']
  #allocation1 [shape = 'u32[144,128]{1,0:T(1,128)}', space=vmem, size = 0x12000, scoped, tag = 'internal scratch']
  %s0 = inlined_call_operand.hbm [shape: bf16[16,256], index: 0, kind: input, shape index: {}]
  %s1 = inlined_call_operand.hbm [shape: bf16[256,256], index: 1, kind: input, shape index: {}]
  %s2 = inlined_call_operand.hbm [shape: f32[1,256], index: 2, kind: input, shape index: {}]
  %s3 = inlined_call_operand.hbm [shape: bf16[256,384], index: 3, kind: input, shape index: {}]
  %s4 = inlined_call_operand.vmem [shape: f32[1,384], index: 4, kind: input, shape index: {}]
  %s5 = inlined_call_operand.hbm [shape: bf16[384,384], index: 5, kind: input, shape index: {}]
  %s6 = inlined_call_operand.vmem [shape: f32[1,384], index: 6, kind: input, shape index: {}]
  %s7 = inlined_call_operand.hbm [shape: bf16[384,512], index: 7, kind: input, shape index: {}]
  %s8 = inlined_call_operand.hbm [shape: bf16[256,512], index: 8, kind: input, shape index: {}]
  %s9 = inlined_call_operand.vmem [shape: f32[1,512], index: 9, kind: input, shape index: {}]
  %s10 = inlined_call_operand.hbm [shape: bf16[512,384], index: 10, kind: input, shape index: {}]
  %s11 = inlined_call_operand.vmem [shape: f32[1,384], index: 11, kind: input, shape index: {}]
  %s12 = inlined_call_operand.hbm [shape: f32[16,384], index: 12, kind: output, shape index: {}]
  %s13 = sld [smem:[#allocation0]]
  $region90: #{tpu_custom_call.1} parent=0
    _
  %s15 = ssub.s32 1, %s13
  %s16 = scalar_select 0, %s15, %s13
  $region1: #{tpu_custom_call.1} parent=0
    #allocation2 [shape = 'u8[8192]{0}', space=vmem, size = 0x2000, scoped, tag = 'input window, operand 0, single buffered']
    #allocation3 [shape = 's32[1]{0}', space=sflag, size = 0x4, scoped, tag = 'scoped memory for tpu_custom_call.1']
    #allocation4 [shape = 's32[1]{0}', space=sflag, size = 0x4, scoped, tag = 'scoped memory for tpu_custom_call.1']
    #allocation5 [shape = 'u8[131072]{0}', space=vmem, size = 0x20000, scoped, tag = 'input window, operand 1, single buffered']
    #allocation6 [shape = 's32[1]{0}', space=sflag, size = 0x4, scoped, tag = 'scoped memory for tpu_custom_call.1']
    #allocation7 [shape = 'u8[1024]{0}', space=vmem, size = 0x400, scoped, tag = 'input window, operand 2, single buffered']
    #allocation8 [shape = 'u8[196608]{0}', space=vmem, size = 0x30000, scoped, tag = 'input window, operand 3, single buffered']
    #allocation9 [shape = 's32[1]{0}', space=sflag, size = 0x4, scoped, tag = 'scoped memory for tpu_custom_call.1']
    #allocation10 [shape = 'u8[294912]{0}', space=vmem, size = 0x48000, scoped, tag = 'input window, operand 5, single buffered']
    #allocation11 [shape = 'u8[393216]{0}', space=vmem, size = 0x60000, scoped, tag = 'input window, operand 7, single buffered']
    #allocation12 [shape = 's32[1]{0}', space=sflag, size = 0x4, scoped, tag = 'scoped memory for tpu_custom_call.1']
    #allocation13 [shape = 'u8[262144]{0}', space=vmem, size = 0x40000, scoped, tag = 'input window, operand 8, single buffered']
    #allocation14 [shape = 'u8[393216]{0}', space=vmem, size = 0x60000, scoped, tag = 'input window, operand 10, single buffered']
    #allocation15 [shape = 's32[1]{0}', space=sflag, size = 0x4, scoped, tag = 'scoped memory for tpu_custom_call.1']
    #allocation16 [shape = 'u8[24576]{0}', space=vmem, size = 0x6000, scoped, tag = 'output window, operand 0, single buffered']
    %17 = vsyncpa [#allocation3], 0
    %18 = vsyncpa [#allocation6], 0
    %19 = vsyncpa [#allocation9], 0
    %20 = vsyncpa [#allocation12], 0
    %21 = vsyncpa [#allocation15], 0
    %22 = vsyncpa [#allocation4], 0
    // Predicated region
    $region2: #{tpu_custom_call.1} parent=1 // pred_check
      _
    $region3: #{tpu_custom_call.1} parent=1 // pred_check_branch
      %24 = sbr.rel (0) target = $region5
    $region4: #{tpu_custom_call.1} parent=1 // pred_region
      %s26 = ssub.s32 256, 256
      %27 = vsyncadd [#allocation3], %s26
      %s28 = sshll.u32 [#allocation2], 4
      %s29 = int_to_ptr.vmem [resolvable:$true] %s28
      %34 = dma.hbm_to_vmem [thread:$0]  %s0, 256, %s29, [#allocation3], 128, 128, 8
    $region5: #{tpu_custom_call.1} parent=1 // pred_fallthru
      _
    // Predicated region
    $region6: #{tpu_custom_call.1} parent=1 // pred_check
      _
    $region7: #{tpu_custom_call.1} parent=1 // pred_check_branch
      %36 = sbr.rel (0) target = $region9
    $region8: #{tpu_custom_call.1} parent=1 // pred_region
      %s38 = ssub.s32 4096, 4096
      %39 = vsyncadd [#allocation6], %s38
      %s40 = sshll.u32 [#allocation5], 4
      %s41 = int_to_ptr.vmem [resolvable:$true] %s40
      %46 = dma.hbm_to_vmem [thread:$0]  %s1, 4096, %s41, [#allocation6], 128, 128, 8
    $region9: #{tpu_custom_call.1} parent=1 // pred_fallthru
      _
    // Predicated region
    $region10: #{tpu_custom_call.1} parent=1 // pred_check
      _
    $region11: #{tpu_custom_call.1} parent=1 // pred_check_branch
      %48 = sbr.rel (0) target = $region13
    $region12: #{tpu_custom_call.1} parent=1 // pred_region
      %s50 = ssub.s32 32, 32
      %51 = vsyncadd [#allocation6], %s50
      %s53 = sshll.u32 [#allocation7], 4
      %s54 = int_to_ptr.vmem [resolvable:$true] %s53
      %56 = dma.hbm_to_vmem [thread:$0]  %s2, 32, %s54, [#allocation6]
    $region13: #{tpu_custom_call.1} parent=1 // pred_fallthru
      _
    // Predicated region
    $region14: #{tpu_custom_call.1} parent=1 // pred_check
      _
    $region15: #{tpu_custom_call.1} parent=1 // pred_check_branch
      %58 = sbr.rel (0) target = $region17
    $region16: #{tpu_custom_call.1} parent=1 // pred_region
      %s60 = ssub.s32 6144, 6144
      %61 = vsyncadd [#allocation9], %s60
      %s62 = sshll.u32 [#allocation8], 4
      %s63 = int_to_ptr.vmem [resolvable:$true] %s62
      %68 = dma.hbm_to_vmem [thread:$0]  %s3, 6144, %s63, [#allocation9], 192, 192, 12
    $region17: #{tpu_custom_call.1} parent=1 // pred_fallthru
      _
    // Predicated region
    $region18: #{tpu_custom_call.1} parent=1 // pred_check
      _
    $region19: #{tpu_custom_call.1} parent=1 // pred_check_branch
      %70 = sbr.rel (0) target = $region21
    $region20: #{tpu_custom_call.1} parent=1 // pred_region
      _
    $region21: #{tpu_custom_call.1} parent=1 // pred_fallthru
      _
    // Predicated region
    $region22: #{tpu_custom_call.1} parent=1 // pred_check
      _
    $region23: #{tpu_custom_call.1} parent=1 // pred_check_branch
      %72 = sbr.rel (0) target = $region25
    $region24: #{tpu_custom_call.1} parent=1 // pred_region
      %s74 = ssub.s32 9216, 9216
      %75 = vsyncadd [#allocation9], %s74
      %s76 = sshll.u32 [#allocation10], 4
      %s77 = int_to_ptr.vmem [resolvable:$true] %s76
      %82 = dma.hbm_to_vmem [thread:$0]  %s5, 9216, %s77, [#allocation9], 192, 192, 12
    $region25: #{tpu_custom_call.1} parent=1 // pred_fallthru
      _
    // Predicated region
    $region26: #{tpu_custom_call.1} parent=1 // pred_check
      _
    $region27: #{tpu_custom_call.1} parent=1 // pred_check_branch
      %84 = sbr.rel (0) target = $region29
    $region28: #{tpu_custom_call.1} parent=1 // pred_region
      _
    $region29: #{tpu_custom_call.1} parent=1 // pred_fallthru
      _
    // Predicated region
    $region30: #{tpu_custom_call.1} parent=1 // pred_check
      _
    $region31: #{tpu_custom_call.1} parent=1 // pred_check_branch
      %86 = sbr.rel (0) target = $region33
    $region32: #{tpu_custom_call.1} parent=1 // pred_region
      %s88 = ssub.s32 12288, 12288
      %89 = vsyncadd [#allocation12], %s88
      %s90 = sshll.u32 [#allocation11], 4
      %s91 = int_to_ptr.vmem [resolvable:$true] %s90
      %96 = dma.hbm_to_vmem [thread:$0]  %s7, 12288, %s91, [#allocation12], 256, 256, 16
    $region33: #{tpu_custom_call.1} parent=1 // pred_fallthru
      _
    // Predicated region
    $region34: #{tpu_custom_call.1} parent=1 // pred_check
      _
    $region35: #{tpu_custom_call.1} parent=1 // pred_check_branch
      %98 = sbr.rel (0) target = $region37
    $region36: #{tpu_custom_call.1} parent=1 // pred_region
      %s100 = ssub.s32 8192, 8192
      %101 = vsyncadd [#allocation12], %s100
      %s102 = sshll.u32 [#allocation13], 4
      %s103 = int_to_ptr.vmem [resolvable:$true] %s102
      %108 = dma.hbm_to_vmem [thread:$0]  %s8, 8192, %s103, [#allocation12], 256, 256, 16
    $region37: #{tpu_custom_call.1} parent=1 // pred_fallthru
      _
    // Predicated region
    $region38: #{tpu_custom_call.1} parent=1 // pred_check
      _
    $region39: #{tpu_custom_call.1} parent=1 // pred_check_branch
      %110 = sbr.rel (0) target = $region41
    $region40: #{tpu_custom_call.1} parent=1 // pred_region
      _
    $region41: #{tpu_custom_call.1} parent=1 // pred_fallthru
      _
    // Predicated region
    $region42: #{tpu_custom_call.1} parent=1 // pred_check
      _
    $region43: #{tpu_custom_call.1} parent=1 // pred_check_branch
      %112 = sbr.rel (0) target = $region45
    $region44: #{tpu_custom_call.1} parent=1 // pred_region
      %s114 = ssub.s32 12288, 12288
      %115 = vsyncadd [#allocation15], %s114
      %s116 = sshll.u32 [#allocation14], 4
      %s117 = int_to_ptr.vmem [resolvable:$true] %s116
      %122 = dma.hbm_to_vmem [thread:$0]  %s10, 12288, %s117, [#allocation15], 192, 192, 12
    $region45: #{tpu_custom_call.1} parent=1 // pred_fallthru
      _
    // Predicated region
    $region46: #{tpu_custom_call.1} parent=1 // pred_check
      _
    $region47: #{tpu_custom_call.1} parent=1 // pred_check_branch
      %124 = sbr.rel (0) target = $region49
    $region48: #{tpu_custom_call.1} parent=1 // pred_region
      _
    $region49: #{tpu_custom_call.1} parent=1 // pred_fallthru
      _
    // Predicated region
    $region50: #{tpu_custom_call.1} parent=1 // pred_check
      _
    $region51: #{tpu_custom_call.1} parent=1 // pred_check_branch
      %126 = sbr.rel (0) target = $region53
    $region52: #{tpu_custom_call.1} parent=1 // pred_region
      %127 = dma.done [#allocation3], 256
    $region53: #{tpu_custom_call.1} parent=1 // pred_fallthru
      _
    // Predicated region
    $region54: #{tpu_custom_call.1} parent=1 // pred_check
      _
    $region55: #{tpu_custom_call.1} parent=1 // pred_check_branch
      %129 = sbr.rel (0) target = $region57
    $region56: #{tpu_custom_call.1} parent=1 // pred_region
      %130 = dma.done [#allocation6], 4096
    $region57: #{tpu_custom_call.1} parent=1 // pred_fallthru
      _
    // Predicated region
    $region58: #{tpu_custom_call.1} parent=1 // pred_check
      _
    $region59: #{tpu_custom_call.1} parent=1 // pred_check_branch
      %132 = sbr.rel (0) target = $region61
    $region60: #{tpu_custom_call.1} parent=1 // pred_region
      %133 = dma.done [#allocation6], 32
    $region61: #{tpu_custom_call.1} parent=1 // pred_fallthru
      _
    // Predicated region
    $region62: #{tpu_custom_call.1} parent=1 // pred_check
      _
    $region63: #{tpu_custom_call.1} parent=1 // pred_check_branch
      %135 = sbr.rel (0) target = $region65
    $region64: #{tpu_custom_call.1} parent=1 // pred_region
      %136 = dma.done [#allocation9], 6144
    $region65: #{tpu_custom_call.1} parent=1 // pred_fallthru
      _
    // Predicated region
    $region66: #{tpu_custom_call.1} parent=1 // pred_check
      _
    $region67: #{tpu_custom_call.1} parent=1 // pred_check_branch
      %138 = sbr.rel (0) target = $region69
    $region68: #{tpu_custom_call.1} parent=1 // pred_region
      %139 = dma.done [#allocation9], 9216
    $region69: #{tpu_custom_call.1} parent=1 // pred_fallthru
      _
    // Predicated region
    $region70: #{tpu_custom_call.1} parent=1 // pred_check
      _
    $region71: #{tpu_custom_call.1} parent=1 // pred_check_branch
      %141 = sbr.rel (0) target = $region73
    $region72: #{tpu_custom_call.1} parent=1 // pred_region
      %142 = dma.done [#allocation12], 12288
    $region73: #{tpu_custom_call.1} parent=1 // pred_fallthru
      _
    // Predicated region
    $region74: #{tpu_custom_call.1} parent=1 // pred_check
      _
    $region75: #{tpu_custom_call.1} parent=1 // pred_check_branch
      %144 = sbr.rel (0) target = $region77
    $region76: #{tpu_custom_call.1} parent=1 // pred_region
      %145 = dma.done [#allocation12], 8192
    $region77: #{tpu_custom_call.1} parent=1 // pred_fallthru
      _
    // Predicated region
    $region78: #{tpu_custom_call.1} parent=1 // pred_check
      _
    $region79: #{tpu_custom_call.1} parent=1 // pred_check_branch
      %147 = sbr.rel (0) target = $region81
    $region80: #{tpu_custom_call.1} parent=1 // pred_region
      %148 = dma.done [#allocation15], 12288
    $region81: #{tpu_custom_call.1} parent=1 // pred_fallthru
      _
    %v150 = vld [vmem:[#allocation2] sm:$0xff]
    %v151 = vld [vmem:[#allocation2 + $0x8] sm:$0xff]
    %v152 = vld [vmem:[#allocation5] sm:$0xff]
    %v153 = vld [vmem:[#allocation5 + $0x8] sm:$0xff]
    %v154 = vld [vmem:[#allocation5 + $0x10] sm:$0xff]
    %v155 = vld [vmem:[#allocation5 + $0x18] sm:$0xff]
    %v156 = vld [vmem:[#allocation5 + $0x20] sm:$0xff]
    %v157 = vld [vmem:[#allocation5 + $0x28] sm:$0xff]
    %v158 = vld [vmem:[#allocation5 + $0x30] sm:$0xff]
    %v159 = vld [vmem:[#allocation5 + $0x38] sm:$0xff]
    %v160 = vld [vmem:[#allocation5 + $0x40] sm:$0xff]
    %v161 = vld [vmem:[#allocation5 + $0x48] sm:$0xff]
    %v162 = vld [vmem:[#allocation5 + $0x50] sm:$0xff]
    %v163 = vld [vmem:[#allocation5 + $0x58] sm:$0xff]
    %v164 = vld [vmem:[#allocation5 + $0x60] sm:$0xff]
    %v165 = vld [vmem:[#allocation5 + $0x68] sm:$0xff]
    %v166 = vld [vmem:[#allocation5 + $0x70] sm:$0xff]
    %v167 = vld [vmem:[#allocation5 + $0x78] sm:$0xff]
    %v168 = vld [vmem:[#allocation5 + $0x80] sm:$0xff]
    %v169 = vld [vmem:[#allocation5 + $0x88] sm:$0xff]
    %v170 = vld [vmem:[#allocation5 + $0x90] sm:$0xff]
    %v171 = vld [vmem:[#allocation5 + $0x98] sm:$0xff]
    %v172 = vld [vmem:[#allocation5 + $0xa0] sm:$0xff]
    %v173 = vld [vmem:[#allocation5 + $0xa8] sm:$0xff]
    %v174 = vld [vmem:[#allocation5 + $0xb0] sm:$0xff]
    %v175 = vld [vmem:[#allocation5 + $0xb8] sm:$0xff]
    %v176 = vld [vmem:[#allocation5 + $0xc0] sm:$0xff]
    %v177 = vld [vmem:[#allocation5 + $0xc8] sm:$0xff]
    %v178 = vld [vmem:[#allocation5 + $0xd0] sm:$0xff]
    %v179 = vld [vmem:[#allocation5 + $0xd8] sm:$0xff]
    %v180 = vld [vmem:[#allocation5 + $0xe0] sm:$0xff]
    %v181 = vld [vmem:[#allocation5 + $0xe8] sm:$0xff]
    %v182 = vld [vmem:[#allocation5 + $0xf0] sm:$0xff]
    %v183 = vld [vmem:[#allocation5 + $0xf8] sm:$0xff]
    %v184 = vld [vmem:[#allocation7] sm:$0x3]
    %v186 = vlaneseq
    %v187 = vshrl.u32 %v186, 7
    %v188 = vsub.s32 0, %v187
    %v189 = vrot.slane %v184, %v188
    %v190 = vlaneseq
    %v191 = vshrl.u32 %v190, 7
    %v192 = vsub.s32 1, %v191
    %v193 = vrot.slane %v184, %v192
    %v198 = vunpack.c.l.b16 %v150
    %v199 = vunpack.c.h.b16 %v150
    %v200 = vunpack.c.l.b16 %v151
    %v201 = vunpack.c.h.b16 %v151
    %v202 = vpack.c.b16 %v200, %v198
    %v203 = vpack.c.b16 %v201, %v199
    %v238 = vunpack.c.l.b16 %v152
    %v239 = vunpack.c.h.b16 %v152
    %v240 = vunpack.c.l.b16 %v153
    %v241 = vunpack.c.h.b16 %v153
    %v242 = vunpack.c.l.b16 %v154
    %v243 = vunpack.c.h.b16 %v154
    %v244 = vunpack.c.l.b16 %v155
    %v245 = vunpack.c.h.b16 %v155
    %v246 = vunpack.c.l.b16 %v156
    %v247 = vunpack.c.h.b16 %v156
    %v248 = vunpack.c.l.b16 %v157
    %v249 = vunpack.c.h.b16 %v157
    %v250 = vunpack.c.l.b16 %v158
    %v251 = vunpack.c.h.b16 %v158
    %v252 = vunpack.c.l.b16 %v159
    %v253 = vunpack.c.h.b16 %v159
    %v254 = vunpack.c.l.b16 %v160
    %v255 = vunpack.c.h.b16 %v160
    %v256 = vunpack.c.l.b16 %v161
    %v257 = vunpack.c.h.b16 %v161
    %v258 = vunpack.c.l.b16 %v162
    %v259 = vunpack.c.h.b16 %v162
    %v260 = vunpack.c.l.b16 %v163
    %v261 = vunpack.c.h.b16 %v163
    %v262 = vunpack.c.l.b16 %v164
    %v263 = vunpack.c.h.b16 %v164
    %v264 = vunpack.c.l.b16 %v165
    %v265 = vunpack.c.h.b16 %v165
    %v266 = vunpack.c.l.b16 %v166
    %v267 = vunpack.c.h.b16 %v166
    %v268 = vunpack.c.l.b16 %v167
    %v269 = vunpack.c.h.b16 %v167
    %v270 = vunpack.c.l.b16 %v168
    %v271 = vunpack.c.h.b16 %v168
    %v272 = vunpack.c.l.b16 %v169
    %v273 = vunpack.c.h.b16 %v169
    %v274 = vunpack.c.l.b16 %v170
    %v275 = vunpack.c.h.b16 %v170
    %v276 = vunpack.c.l.b16 %v171
    %v277 = vunpack.c.h.b16 %v171
    %v278 = vunpack.c.l.b16 %v172
    %v279 = vunpack.c.h.b16 %v172
    %v280 = vunpack.c.l.b16 %v173
    %v281 = vunpack.c.h.b16 %v173
    %v282 = vunpack.c.l.b16 %v174
    %v283 = vunpack.c.h.b16 %v174
    %v284 = vunpack.c.l.b16 %v175
    %v285 = vunpack.c.h.b16 %v175
    %v286 = vunpack.c.l.b16 %v176
    %v287 = vunpack.c.h.b16 %v176
    %v288 = vunpack.c.l.b16 %v177
    %v289 = vunpack.c.h.b16 %v177
    %v290 = vunpack.c.l.b16 %v178
    %v291 = vunpack.c.h.b16 %v178
    %v292 = vunpack.c.l.b16 %v179
    %v293 = vunpack.c.h.b16 %v179
    %v294 = vunpack.c.l.b16 %v180
    %v295 = vunpack.c.h.b16 %v180
    %v296 = vunpack.c.l.b16 %v181
    %v297 = vunpack.c.h.b16 %v181
    %v298 = vunpack.c.l.b16 %v182
    %v299 = vunpack.c.h.b16 %v182
    %v300 = vunpack.c.l.b16 %v183
    %v301 = vunpack.c.h.b16 %v183
    %v302 = vpack.c.b16 %v240, %v238
    %v303 = vpack.c.b16 %v241, %v239
    %v304 = vpack.c.b16 %v244, %v242
    %v305 = vpack.c.b16 %v245, %v243
    %v306 = vpack.c.b16 %v248, %v246
    %v307 = vpack.c.b16 %v249, %v247
    %v308 = vpack.c.b16 %v252, %v250
    %v309 = vpack.c.b16 %v253, %v251
    %v310 = vpack.c.b16 %v256, %v254
    %v311 = vpack.c.b16 %v257, %v255
    %v312 = vpack.c.b16 %v260, %v258
    %v313 = vpack.c.b16 %v261, %v259
    %v314 = vpack.c.b16 %v264, %v262
    %v315 = vpack.c.b16 %v265, %v263
    %v316 = vpack.c.b16 %v268, %v266
    %v317 = vpack.c.b16 %v269, %v267
    %v318 = vpack.c.b16 %v272, %v270
    %v319 = vpack.c.b16 %v273, %v271
    %v320 = vpack.c.b16 %v276, %v274
    %v321 = vpack.c.b16 %v277, %v275
    %v322 = vpack.c.b16 %v280, %v278
    %v323 = vpack.c.b16 %v281, %v279
    %v324 = vpack.c.b16 %v284, %v282
    %v325 = vpack.c.b16 %v285, %v283
    %v326 = vpack.c.b16 %v288, %v286
    %v327 = vpack.c.b16 %v289, %v287
    %v328 = vpack.c.b16 %v292, %v290
    %v329 = vpack.c.b16 %v293, %v291
    %v330 = vpack.c.b16 %v296, %v294
    %v331 = vpack.c.b16 %v297, %v295
    %v332 = vpack.c.b16 %v300, %v298
    %v333 = vpack.c.b16 %v301, %v299
    %366 = vmatprep.subr.bf16.mxu0 %v317
    %367 = vmatpush1.bf16.msra.mxu0 %v316
    %368 = vmatprep.subr.bf16.mxu0 %v315
    %369 = vmatpush1.bf16.msra.mxu0 %v314
    %370 = vmatprep.subr.bf16.mxu0 %v313
    %371 = vmatpush1.bf16.msra.mxu0 %v312
    %372 = vmatprep.subr.bf16.mxu0 %v311
    %373 = vmatpush1.bf16.msra.mxu0 %v310
    %374 = vmatprep.subr.bf16.mxu0 %v309
    %375 = vmatpush1.bf16.msra.mxu0 %v308
    %376 = vmatprep.subr.bf16.mxu0 %v307
    %377 = vmatpush1.bf16.msra.mxu0 %v306
    %378 = vmatprep.subr.bf16.mxu0 %v305
    %379 = vmatpush1.bf16.msra.mxu0 %v304
    %380 = vmatprep.subr.bf16.mxu0 %v303
    %381 = vmatpush1.bf16.msra.mxu0 %v302
    %382 = vmatprep.subr.bf16.mxu0 %v333
    %383 = vmatpush2.bf16.msra.mxu0 %v332
    %384 = vmatprep.subr.bf16.mxu0 %v331
    %385 = vmatpush2.bf16.msra.mxu0 %v330
    %386 = vmatprep.subr.bf16.mxu0 %v329
    %387 = vmatpush2.bf16.msra.mxu0 %v328
    %388 = vmatprep.subr.bf16.mxu0 %v327
    %389 = vmatpush2.bf16.msra.mxu0 %v326
    %390 = vmatprep.subr.bf16.mxu0 %v325
    %391 = vmatpush2.bf16.msra.mxu0 %v324
    %392 = vmatprep.subr.bf16.mxu0 %v323
    %393 = vmatpush2.bf16.msra.mxu0 %v322
    %394 = vmatprep.subr.bf16.mxu0 %v321
    %395 = vmatpush2.bf16.msra.mxu0 %v320
    %396 = vmatprep.subr.bf16.mxu0 %v319
    %397 = vmatpush2.bf16.msra.mxu0 %v318
    %398 = vmatprep.mubr.bf16.mxu0 %v203
    %399 = vmatmul.mubr.bf16.gmra.mxu0 %v202
    %v400 = vpop.f32.mrf.mxu0
    %v401 = vadd.f32 %v189, %v400
    %v402 = vpop.f32.mrf.mxu0
    %v403 = vadd.f32 %v193, %v402
    %v404 = vpop.f32.mrf.mxu0
    %v405 = vadd.f32 %v189, %v404
    %v406 = vpop.f32.mrf.mxu0
    %v407 = vadd.f32 %v193, %v406
    %408 = vdwg.mxu0
    %v409 = vmax.f32 %v401, 0.0
    %v410 = vmax.f32 %v403, 0.0
    %v411 = vmax.f32 %v405, 0.0
    %v412 = vmax.f32 %v407, 0.0
    %v413 = vpack.c.bf16 %v411, %v409
    %v414 = vpack.c.bf16 %v412, %v410
    %v415 = vld [vmem:[#allocation8] sm:$0xff]
    %v416 = vld [vmem:[#allocation8 + $0x8] sm:$0xf]
    %v417 = vld [vmem:[#allocation8 + $0xc] sm:$0xff]
    %v418 = vld [vmem:[#allocation8 + $0x14] sm:$0xf]
    %v419 = vld [vmem:[#allocation8 + $0x18] sm:$0xff]
    %v420 = vld [vmem:[#allocation8 + $0x20] sm:$0xf]
    %v421 = vld [vmem:[#allocation8 + $0x24] sm:$0xff]
    %v422 = vld [vmem:[#allocation8 + $0x2c] sm:$0xf]
    %v423 = vld [vmem:[#allocation8 + $0x30] sm:$0xff]
    %v424 = vld [vmem:[#allocation8 + $0x38] sm:$0xf]
    %v425 = vld [vmem:[#allocation8 + $0x3c] sm:$0xff]
    %v426 = vld [vmem:[#allocation8 + $0x44] sm:$0xf]
    %v427 = vld [vmem:[#allocation8 + $0x48] sm:$0xff]
    %v428 = vld [vmem:[#allocation8 + $0x50] sm:$0xf]
    %v429 = vld [vmem:[#allocation8 + $0x54] sm:$0xff]
    %v430 = vld [vmem:[#allocation8 + $0x5c] sm:$0xf]
    %v431 = vld [vmem:[#allocation8 + $0x60] sm:$0xff]
    %v432 = vld [vmem:[#allocation8 + $0x68] sm:$0xf]
    %v433 = vld [vmem:[#allocation8 + $0x6c] sm:$0xff]
    %v434 = vld [vmem:[#allocation8 + $0x74] sm:$0xf]
    %v435 = vld [vmem:[#allocation8 + $0x78] sm:$0xff]
    %v436 = vld [vmem:[#allocation8 + $0x80] sm:$0xf]
    %v437 = vld [vmem:[#allocation8 + $0x84] sm:$0xff]
    %v438 = vld [vmem:[#allocation8 + $0x8c] sm:$0xf]
    %v439 = vld [vmem:[#allocation8 + $0x90] sm:$0xff]
    %v440 = vld [vmem:[#allocation8 + $0x98] sm:$0xf]
    %v441 = vld [vmem:[#allocation8 + $0x9c] sm:$0xff]
    %v442 = vld [vmem:[#allocation8 + $0xa4] sm:$0xf]
    %v443 = vld [vmem:[#allocation8 + $0xa8] sm:$0xff]
    %v444 = vld [vmem:[#allocation8 + $0xb0] sm:$0xf]
    %v445 = vld [vmem:[#allocation8 + $0xb4] sm:$0xff]
    %v446 = vld [vmem:[#allocation8 + $0xbc] sm:$0xf]
    %v447 = vld [vmem:[#allocation8 + $0xc0] sm:$0xff]
    %v448 = vld [vmem:[#allocation8 + $0xc8] sm:$0xf]
    %v449 = vld [vmem:[#allocation8 + $0xcc] sm:$0xff]
    %v450 = vld [vmem:[#allocation8 + $0xd4] sm:$0xf]
    %v451 = vld [vmem:[#allocation8 + $0xd8] sm:$0xff]
    %v452 = vld [vmem:[#allocation8 + $0xe0] sm:$0xf]
    %v453 = vld [vmem:[#allocation8 + $0xe4] sm:$0xff]
    %v454 = vld [vmem:[#allocation8 + $0xec] sm:$0xf]
    %v455 = vld [vmem:[#allocation8 + $0xf0] sm:$0xff]
    %v456 = vld [vmem:[#allocation8 + $0xf8] sm:$0xf]
    %v457 = vld [vmem:[#allocation8 + $0xfc] sm:$0xff]
    %v458 = vld [vmem:[#allocation8 + $0x104] sm:$0xf]
    %v459 = vld [vmem:[#allocation8 + $0x108] sm:$0xff]
    %v460 = vld [vmem:[#allocation8 + $0x110] sm:$0xf]
    %v461 = vld [vmem:[#allocation8 + $0x114] sm:$0xff]
    %v462 = vld [vmem:[#allocation8 + $0x11c] sm:$0xf]
    %v463 = vld [vmem:[#allocation8 + $0x120] sm:$0xff]
    %v464 = vld [vmem:[#allocation8 + $0x128] sm:$0xf]
    %v465 = vld [vmem:[#allocation8 + $0x12c] sm:$0xff]
    %v466 = vld [vmem:[#allocation8 + $0x134] sm:$0xf]
    %v467 = vld [vmem:[#allocation8 + $0x138] sm:$0xff]
    %v468 = vld [vmem:[#allocation8 + $0x140] sm:$0xf]
    %v469 = vld [vmem:[#allocation8 + $0x144] sm:$0xff]
    %v470 = vld [vmem:[#allocation8 + $0x14c] sm:$0xf]
    %v471 = vld [vmem:[#allocation8 + $0x150] sm:$0xff]
    %v472 = vld [vmem:[#allocation8 + $0x158] sm:$0xf]
    %v473 = vld [vmem:[#allocation8 + $0x15c] sm:$0xff]
    %v474 = vld [vmem:[#allocation8 + $0x164] sm:$0xf]
    %v475 = vld [vmem:[#allocation8 + $0x168] sm:$0xff]
    %v476 = vld [vmem:[#allocation8 + $0x170] sm:$0xf]
    %v477 = vld [vmem:[#allocation8 + $0x174] sm:$0xff]
    %v478 = vld [vmem:[#allocation8 + $0x17c] sm:$0xf]
    %v479 = vld [vmem:[%s4] sm:$0x7]
    %v481 = vlaneseq
    %v482 = vshrl.u32 %v481, 7
    %v483 = vsub.s32 0, %v482
    %v484 = vrot.slane %v479, %v483
    %v485 = vlaneseq
    %v486 = vshrl.u32 %v485, 7
    %v487 = vsub.s32 1, %v486
    %v488 = vrot.slane %v479, %v487
    %v489 = vlaneseq
    %v490 = vshrl.u32 %v489, 7
    %v491 = vsub.s32 2, %v490
    %v492 = vrot.slane %v479, %v491
    %v560 = vunpack.c.l.b16 %v415
    %v561 = vunpack.c.h.b16 %v415
    %v562 = vunpack.c.l.b16 %v416
    %v563 = vunpack.c.l.b16 %v417
    %v564 = vunpack.c.h.b16 %v417
    %v565 = vunpack.c.l.b16 %v418
    %v566 = vunpack.c.l.b16 %v419
    %v567 = vunpack.c.h.b16 %v419
    %v568 = vunpack.c.l.b16 %v420
    %v569 = vunpack.c.l.b16 %v421
    %v570 = vunpack.c.h.b16 %v421
    %v571 = vunpack.c.l.b16 %v422
    %v572 = vunpack.c.l.b16 %v423
    %v573 = vunpack.c.h.b16 %v423
    %v574 = vunpack.c.l.b16 %v424
    %v575 = vunpack.c.l.b16 %v425
    %v576 = vunpack.c.h.b16 %v425
    %v577 = vunpack.c.l.b16 %v426
    %v578 = vunpack.c.l.b16 %v427
    %v579 = vunpack.c.h.b16 %v427
    %v580 = vunpack.c.l.b16 %v428
    %v581 = vunpack.c.l.b16 %v429
    %v582 = vunpack.c.h.b16 %v429
    %v583 = vunpack.c.l.b16 %v430
    %v584 = vunpack.c.l.b16 %v431
    %v585 = vunpack.c.h.b16 %v431
    %v586 = vunpack.c.l.b16 %v432
    %v587 = vunpack.c.l.b16 %v433
    %v588 = vunpack.c.h.b16 %v433
    %v589 = vunpack.c.l.b16 %v434
    %v590 = vunpack.c.l.b16 %v435
    %v591 = vunpack.c.h.b16 %v435
    %v592 = vunpack.c.l.b16 %v436
    %v593 = vunpack.c.l.b16 %v437
    %v594 = vunpack.c.h.b16 %v437
    %v595 = vunpack.c.l.b16 %v438
    %v596 = vunpack.c.l.b16 %v439
    %v597 = vunpack.c.h.b16 %v439
    %v598 = vunpack.c.l.b16 %v440
    %v599 = vunpack.c.l.b16 %v441
    %v600 = vunpack.c.h.b16 %v441
    %v601 = vunpack.c.l.b16 %v442
    %v602 = vunpack.c.l.b16 %v443
    %v603 = vunpack.c.h.b16 %v443
    %v604 = vunpack.c.l.b16 %v444
    %v605 = vunpack.c.l.b16 %v445
    %v606 = vunpack.c.h.b16 %v445
    %v607 = vunpack.c.l.b16 %v446
    %v608 = vunpack.c.l.b16 %v447
    %v609 = vunpack.c.h.b16 %v447
    %v610 = vunpack.c.l.b16 %v448
    %v611 = vunpack.c.l.b16 %v449
    %v612 = vunpack.c.h.b16 %v449
    %v613 = vunpack.c.l.b16 %v450
    %v614 = vunpack.c.l.b16 %v451
    %v615 = vunpack.c.h.b16 %v451
    %v616 = vunpack.c.l.b16 %v452
    %v617 = vunpack.c.l.b16 %v453
    %v618 = vunpack.c.h.b16 %v453
    %v619 = vunpack.c.l.b16 %v454
    %v620 = vunpack.c.l.b16 %v455
    %v621 = vunpack.c.h.b16 %v455
    %v622 = vunpack.c.l.b16 %v456
    %v623 = vunpack.c.l.b16 %v457
    %v624 = vunpack.c.h.b16 %v457
    %v625 = vunpack.c.l.b16 %v458
    %v626 = vunpack.c.l.b16 %v459
    %v627 = vunpack.c.h.b16 %v459
    %v628 = vunpack.c.l.b16 %v460
    %v629 = vunpack.c.l.b16 %v461
    %v630 = vunpack.c.h.b16 %v461
    %v631 = vunpack.c.l.b16 %v462
    %v632 = vunpack.c.l.b16 %v463
    %v633 = vunpack.c.h.b16 %v463
    %v634 = vunpack.c.l.b16 %v464
    %v635 = vunpack.c.l.b16 %v465
    %v636 = vunpack.c.h.b16 %v465
    %v637 = vunpack.c.l.b16 %v466
    %v638 = vunpack.c.l.b16 %v467
    %v639 = vunpack.c.h.b16 %v467
    %v640 = vunpack.c.l.b16 %v468
    %v641 = vunpack.c.l.b16 %v469
    %v642 = vunpack.c.h.b16 %v469
    %v643 = vunpack.c.l.b16 %v470
    %v644 = vunpack.c.l.b16 %v471
    %v645 = vunpack.c.h.b16 %v471
    %v646 = vunpack.c.l.b16 %v472
    %v647 = vunpack.c.l.b16 %v473
    %v648 = vunpack.c.h.b16 %v473
    %v649 = vunpack.c.l.b16 %v474
    %v650 = vunpack.c.l.b16 %v475
    %v651 = vunpack.c.h.b16 %v475
    %v652 = vunpack.c.l.b16 %v476
    %v653 = vunpack.c.l.b16 %v477
    %v654 = vunpack.c.h.b16 %v477
    %v655 = vunpack.c.l.b16 %v478
    %v656 = vpack.c.b16 %v563, %v560
    %v657 = vpack.c.b16 %v564, %v561
    %v658 = vpack.c.b16 %v565, %v562
    %v659 = vpack.c.b16 %v569, %v566
    %v660 = vpack.c.b16 %v570, %v567
    %v661 = vpack.c.b16 %v571, %v568
    %v662 = vpack.c.b16 %v575, %v572
    %v663 = vpack.c.b16 %v576, %v573
    %v664 = vpack.c.b16 %v577, %v574
    %v665 = vpack.c.b16 %v581, %v578
    %v666 = vpack.c.b16 %v582, %v579
    %v667 = vpack.c.b16 %v583, %v580
    %v668 = vpack.c.b16 %v587, %v584
    %v669 = vpack.c.b16 %v588, %v585
    %v670 = vpack.c.b16 %v589, %v586
    %v671 = vpack.c.b16 %v593, %v590
    %v672 = vpack.c.b16 %v594, %v591
    %v673 = vpack.c.b16 %v595, %v592
    %v674 = vpack.c.b16 %v599, %v596
    %v675 = vpack.c.b16 %v600, %v597
    %v676 = vpack.c.b16 %v601, %v598
    %v677 = vpack.c.b16 %v605, %v602
    %v678 = vpack.c.b16 %v606, %v603
    %v679 = vpack.c.b16 %v607, %v604
    %v680 = vpack.c.b16 %v611, %v608
    %v681 = vpack.c.b16 %v612, %v609
    %v682 = vpack.c.b16 %v613, %v610
    %v683 = vpack.c.b16 %v617, %v614
    %v684 = vpack.c.b16 %v618, %v615
    %v685 = vpack.c.b16 %v619, %v616
    %v686 = vpack.c.b16 %v623, %v620
    %v687 = vpack.c.b16 %v624, %v621
    %v688 = vpack.c.b16 %v625, %v622
    %v689 = vpack.c.b16 %v629, %v626
    %v690 = vpack.c.b16 %v630, %v627
    %v691 = vpack.c.b16 %v631, %v628
    %v692 = vpack.c.b16 %v635, %v632
    %v693 = vpack.c.b16 %v636, %v633
    %v694 = vpack.c.b16 %v637, %v634
    %v695 = vpack.c.b16 %v641, %v638
    %v696 = vpack.c.b16 %v642, %v639
    %v697 = vpack.c.b16 %v643, %v640
    %v698 = vpack.c.b16 %v647, %v644
    %v699 = vpack.c.b16 %v648, %v645
    %v700 = vpack.c.b16 %v649, %v646
    %v701 = vpack.c.b16 %v653, %v650
    %v702 = vpack.c.b16 %v654, %v651
    %v703 = vpack.c.b16 %v655, %v652
    %752 = vmatprep.subr.bf16.mxu0 %v678
    %753 = vmatpush1.bf16.msra.mxu0 %v677
    %754 = vmatprep.subr.bf16.mxu0 %v675
    %755 = vmatpush1.bf16.msra.mxu0 %v674
    %756 = vmatprep.subr.bf16.mxu0 %v672
    %757 = vmatpush1.bf16.msra.mxu0 %v671
    %758 = vmatprep.subr.bf16.mxu0 %v669
    %759 = vmatpush1.bf16.msra.mxu0 %v668
    %760 = vmatprep.subr.bf16.mxu0 %v666
    %761 = vmatpush1.bf16.msra.mxu0 %v665
    %762 = vmatprep.subr.bf16.mxu0 %v663
    %763 = vmatpush1.bf16.msra.mxu0 %v662
    %764 = vmatprep.subr.bf16.mxu0 %v660
    %765 = vmatpush1.bf16.msra.mxu0 %v659
    %766 = vmatprep.subr.bf16.mxu0 %v657
    %767 = vmatpush1.bf16.msra.mxu0 %v656
    %768 = vmatprep.subr.bf16.mxu0 %v702
    %769 = vmatpush2.bf16.msra.mxu0 %v701
    %770 = vmatprep.subr.bf16.mxu0 %v699
    %771 = vmatpush2.bf16.msra.mxu0 %v698
    %772 = vmatprep.subr.bf16.mxu0 %v696
    %773 = vmatpush2.bf16.msra.mxu0 %v695
    %774 = vmatprep.subr.bf16.mxu0 %v693
    %775 = vmatpush2.bf16.msra.mxu0 %v692
    %776 = vmatprep.subr.bf16.mxu0 %v690
    %777 = vmatpush2.bf16.msra.mxu0 %v689
    %778 = vmatprep.subr.bf16.mxu0 %v687
    %779 = vmatpush2.bf16.msra.mxu0 %v686
    %780 = vmatprep.subr.bf16.mxu0 %v684
    %781 = vmatpush2.bf16.msra.mxu0 %v683
    %782 = vmatprep.subr.bf16.mxu0 %v681
    %783 = vmatpush2.bf16.msra.mxu0 %v680
    %784 = vmatprep.mubr.bf16.mxu0 %v414
    %785 = vmatmul.mubr.bf16.gmra.mxu0 %v413
    %v786 = vpop.f32.mrf.mxu0
    %v787 = vadd.f32 %v484, %v786
    %v788 = vpop.f32.mrf.mxu0
    %v789 = vadd.f32 %v488, %v788
    %v790 = vpop.f32.mrf.mxu0
    %v791 = vadd.f32 %v484, %v790
    %v792 = vpop.f32.mrf.mxu0
    %v793 = vadd.f32 %v488, %v792
    %794 = vdwg.mxu0
    %795 = vmatprep.subr.bf16.mxu0 0
    %796 = vmatpush1.bf16.msra.mxu0 %v679
    %797 = vmatprep.subr.bf16.mxu0 0
    %798 = vmatpush1.bf16.msra.mxu0 %v676
    %799 = vmatprep.subr.bf16.mxu0 0
    %800 = vmatpush1.bf16.msra.mxu0 %v673
    %801 = vmatprep.subr.bf16.mxu0 0
    %802 = vmatpush1.bf16.msra.mxu0 %v670
    %803 = vmatprep.subr.bf16.mxu0 0
    %804 = vmatpush1.bf16.msra.mxu0 %v667
    %805 = vmatprep.subr.bf16.mxu0 0
    %806 = vmatpush1.bf16.msra.mxu0 %v664
    %807 = vmatprep.subr.bf16.mxu0 0
    %808 = vmatpush1.bf16.msra.mxu0 %v661
    %809 = vmatprep.subr.bf16.mxu0 0
    %810 = vmatpush1.bf16.msra.mxu0 %v658
    %811 = vmatprep.subr.bf16.mxu0 0
    %812 = vmatpush2.bf16.msra.mxu0 %v703
    %813 = vmatprep.subr.bf16.mxu0 0
    %814 = vmatpush2.bf16.msra.mxu0 %v700
    %815 = vmatprep.subr.bf16.mxu0 0
    %816 = vmatpush2.bf16.msra.mxu0 %v697
    %817 = vmatprep.subr.bf16.mxu0 0
    %818 = vmatpush2.bf16.msra.mxu0 %v694
    %819 = vmatprep.subr.bf16.mxu0 0
    %820 = vmatpush2.bf16.msra.mxu0 %v691
    %821 = vmatprep.subr.bf16.mxu0 0
    %822 = vmatpush2.bf16.msra.mxu0 %v688
    %823 = vmatprep.subr.bf16.mxu0 0
    %824 = vmatpush2.bf16.msra.mxu0 %v685
    %825 = vmatprep.subr.bf16.mxu0 0
    %826 = vmatpush2.bf16.msra.mxu0 %v682
    %827 = vmatprep.mubr.bf16.mxu0 %v414
    %828 = vmatmul.mubr.bf16.gmra.mxu0 %v413
    %v829 = vpop.f32.mrf.mxu0
    %v830 = vadd.f32 %v492, %v829
    %v831 = vpop.f32.mrf.mxu0
    %v832 = vpop.f32.mrf.mxu0
    %v833 = vadd.f32 %v492, %v832
    %v834 = vpop.f32.mrf.mxu0
    %835 = vdwg.mxu0
    %v836 = vmax.f32 %v787, 0.0
    %v837 = vmax.f32 %v789, 0.0
    %v838 = vmax.f32 %v830, 0.0
    %v839 = vmax.f32 %v791, 0.0
    %v840 = vmax.f32 %v793, 0.0
    %v841 = vmax.f32 %v833, 0.0
    %v842 = vpack.c.bf16 %v839, %v836
    %v843 = vpack.c.bf16 %v840, %v837
    %v844 = vpack.c.bf16 %v841, %v838
    %v845 = vld [vmem:[#allocation10] sm:$0xff]
    %v846 = vld [vmem:[#allocation10 + $0x8] sm:$0xf]
    %v847 = vld [vmem:[#allocation10 + $0xc] sm:$0xff]
    %v848 = vld [vmem:[#allocation10 + $0x14] sm:$0xf]
    %v849 = vld [vmem:[#allocation10 + $0x18] sm:$0xff]
    %v850 = vld [vmem:[#allocation10 + $0x20] sm:$0xf]
    %v851 = vld [vmem:[#allocation10 + $0x24] sm:$0xff]
    %v852 = vld [vmem:[#allocation10 + $0x2c] sm:$0xf]
    %v853 = vld [vmem:[#allocation10 + $0x30] sm:$0xff]
    %v854 = vld [vmem:[#allocation10 + $0x38] sm:$0xf]
    %v855 = vld [vmem:[#allocation10 + $0x3c] sm:$0xff]
    %v856 = vld [vmem:[#allocation10 + $0x44] sm:$0xf]
    %v857 = vld [vmem:[#allocation10 + $0x48] sm:$0xff]
    %v858 = vld [vmem:[#allocation10 + $0x50] sm:$0xf]
    %v859 = vld [vmem:[#allocation10 + $0x54] sm:$0xff]
    %v860 = vld [vmem:[#allocation10 + $0x5c] sm:$0xf]
    %v861 = vld [vmem:[#allocation10 + $0x60] sm:$0xff]
    %v862 = vld [vmem:[#allocation10 + $0x68] sm:$0xf]
    %v863 = vld [vmem:[#allocation10 + $0x6c] sm:$0xff]
    %v864 = vld [vmem:[#allocation10 + $0x74] sm:$0xf]
    %v865 = vld [vmem:[#allocation10 + $0x78] sm:$0xff]
    %v866 = vld [vmem:[#allocation10 + $0x80] sm:$0xf]
    %v867 = vld [vmem:[#allocation10 + $0x84] sm:$0xff]
    %v868 = vld [vmem:[#allocation10 + $0x8c] sm:$0xf]
    %v869 = vld [vmem:[#allocation10 + $0x90] sm:$0xff]
    %v870 = vld [vmem:[#allocation10 + $0x98] sm:$0xf]
    %v871 = vld [vmem:[#allocation10 + $0x9c] sm:$0xff]
    %v872 = vld [vmem:[#allocation10 + $0xa4] sm:$0xf]
    %v873 = vld [vmem:[#allocation10 + $0xa8] sm:$0xff]
    %v874 = vld [vmem:[#allocation10 + $0xb0] sm:$0xf]
    %v875 = vld [vmem:[#allocation10 + $0xb4] sm:$0xff]
    %v876 = vld [vmem:[#allocation10 + $0xbc] sm:$0xf]
    %v877 = vld [vmem:[#allocation10 + $0xc0] sm:$0xff]
    %v878 = vld [vmem:[#allocation10 + $0xc8] sm:$0xf]
    %v879 = vld [vmem:[#allocation10 + $0xcc] sm:$0xff]
    %v880 = vld [vmem:[#allocation10 + $0xd4] sm:$0xf]
    %v881 = vld [vmem:[#allocation10 + $0xd8] sm:$0xff]
    %v882 = vld [vmem:[#allocation10 + $0xe0] sm:$0xf]
    %v883 = vld [vmem:[#allocation10 + $0xe4] sm:$0xff]
    %v884 = vld [vmem:[#allocation10 + $0xec] sm:$0xf]
    %v885 = vld [vmem:[#allocation10 + $0xf0] sm:$0xff]
    %v886 = vld [vmem:[#allocation10 + $0xf8] sm:$0xf]
    %v887 = vld [vmem:[#allocation10 + $0xfc] sm:$0xff]
    %v888 = vld [vmem:[#allocation10 + $0x104] sm:$0xf]
    %v889 = vld [vmem:[#allocation10 + $0x108] sm:$0xff]
    %v890 = vld [vmem:[#allocation10 + $0x110] sm:$0xf]
    %v891 = vld [vmem:[#allocation10 + $0x114] sm:$0xff]
    %v892 = vld [vmem:[#allocation10 + $0x11c] sm:$0xf]
    %v893 = vld [vmem:[#allocation10 + $0x120] sm:$0xff]
    %v894 = vld [vmem:[#allocation10 + $0x128] sm:$0xf]
    %v895 = vld [vmem:[#allocation10 + $0x12c] sm:$0xff]
    %v896 = vld [vmem:[#allocation10 + $0x134] sm:$0xf]
    %v897 = vld [vmem:[#allocation10 + $0x138] sm:$0xff]
    %v898 = vld [vmem:[#allocation10 + $0x140] sm:$0xf]
    %v899 = vld [vmem:[#allocation10 + $0x144] sm:$0xff]
    %v900 = vld [vmem:[#allocation10 + $0x14c] sm:$0xf]
    %v901 = vld [vmem:[#allocation10 + $0x150] sm:$0xff]
    %v902 = vld [vmem:[#allocation10 + $0x158] sm:$0xf]
    %v903 = vld [vmem:[#allocation10 + $0x15c] sm:$0xff]
    %v904 = vld [vmem:[#allocation10 + $0x164] sm:$0xf]
    %v905 = vld [vmem:[#allocation10 + $0x168] sm:$0xff]
    %v906 = vld [vmem:[#allocation10 + $0x170] sm:$0xf]
    %v907 = vld [vmem:[#allocation10 + $0x174] sm:$0xff]
    %v908 = vld [vmem:[#allocation10 + $0x17c] sm:$0xf]
    %v909 = vld [vmem:[#allocation10 + $0x180] sm:$0xff]
    %v910 = vld [vmem:[#allocation10 + $0x188] sm:$0xf]
    %v911 = vld [vmem:[#allocation10 + $0x18c] sm:$0xff]
    %v912 = vld [vmem:[#allocation10 + $0x194] sm:$0xf]
    %v913 = vld [vmem:[#allocation10 + $0x198] sm:$0xff]
    %v914 = vld [vmem:[#allocation10 + $0x1a0] sm:$0xf]
    %v915 = vld [vmem:[#allocation10 + $0x1a4] sm:$0xff]
    %v916 = vld [vmem:[#allocation10 + $0x1ac] sm:$0xf]
    %v917 = vld [vmem:[#allocation10 + $0x1b0] sm:$0xff]
    %v918 = vld [vmem:[#allocation10 + $0x1b8] sm:$0xf]
    %v919 = vld [vmem:[#allocation10 + $0x1bc] sm:$0xff]
    %v920 = vld [vmem:[#allocation10 + $0x1c4] sm:$0xf]
    %v921 = vld [vmem:[#allocation10 + $0x1c8] sm:$0xff]
    %v922 = vld [vmem:[#allocation10 + $0x1d0] sm:$0xf]
    %v923 = vld [vmem:[#allocation10 + $0x1d4] sm:$0xff]
    %v924 = vld [vmem:[#allocation10 + $0x1dc] sm:$0xf]
    %v925 = vld [vmem:[#allocation10 + $0x1e0] sm:$0xff]
    %v926 = vld [vmem:[#allocation10 + $0x1e8] sm:$0xf]
    %v927 = vld [vmem:[#allocation10 + $0x1ec] sm:$0xff]
    %v928 = vld [vmem:[#allocation10 + $0x1f4] sm:$0xf]
    %v929 = vld [vmem:[#allocation10 + $0x1f8] sm:$0xff]
    %v930 = vld [vmem:[#allocation10 + $0x200] sm:$0xf]
    %v931 = vld [vmem:[#allocation10 + $0x204] sm:$0xff]
    %v932 = vld [vmem:[#allocation10 + $0x20c] sm:$0xf]
    %v933 = vld [vmem:[#allocation10 + $0x210] sm:$0xff]
    %v934 = vld [vmem:[#allocation10 + $0x218] sm:$0xf]
    %v935 = vld [vmem:[#allocation10 + $0x21c] sm:$0xff]
    %v936 = vld [vmem:[#allocation10 + $0x224] sm:$0xf]
    %v937 = vld [vmem:[#allocation10 + $0x228] sm:$0xff]
    %v938 = vld [vmem:[#allocation10 + $0x230] sm:$0xf]
    %v939 = vld [vmem:[#allocation10 + $0x234] sm:$0xff]
    %v940 = vld [vmem:[#allocation10 + $0x23c] sm:$0xf]
    %v941 = vld [vmem:[%s6] sm:$0x7]
    %v943 = vlaneseq
    %v944 = vshrl.u32 %v943, 7
    %v945 = vsub.s32 0, %v944
    %v946 = vrot.slane %v941, %v945
    %v947 = vlaneseq
    %v948 = vshrl.u32 %v947, 7
    %v949 = vsub.s32 1, %v948
    %v950 = vrot.slane %v941, %v949
    %v951 = vlaneseq
    %v952 = vshrl.u32 %v951, 7
    %v953 = vsub.s32 2, %v952
    %v954 = vrot.slane %v941, %v953
    %v1054 = vunpack.c.l.b16 %v845
    %v1055 = vunpack.c.h.b16 %v845
    %v1056 = vunpack.c.l.b16 %v846
    %v1057 = vunpack.c.l.b16 %v847
    %v1058 = vunpack.c.h.b16 %v847
    %v1059 = vunpack.c.l.b16 %v848
    %v1060 = vunpack.c.l.b16 %v849
    %v1061 = vunpack.c.h.b16 %v849
    %v1062 = vunpack.c.l.b16 %v850
    %v1063 = vunpack.c.l.b16 %v851
    %v1064 = vunpack.c.h.b16 %v851
    %v1065 = vunpack.c.l.b16 %v852
    %v1066 = vunpack.c.l.b16 %v853
    %v1067 = vunpack.c.h.b16 %v853
    %v1068 = vunpack.c.l.b16 %v854
    %v1069 = vunpack.c.l.b16 %v855
    %v1070 = vunpack.c.h.b16 %v855
    %v1071 = vunpack.c.l.b16 %v856
    %v1072 = vunpack.c.l.b16 %v857
    %v1073 = vunpack.c.h.b16 %v857
    %v1074 = vunpack.c.l.b16 %v858
    %v1075 = vunpack.c.l.b16 %v859
    %v1076 = vunpack.c.h.b16 %v859
    %v1077 = vunpack.c.l.b16 %v860
    %v1078 = vunpack.c.l.b16 %v861
    %v1079 = vunpack.c.h.b16 %v861
    %v1080 = vunpack.c.l.b16 %v862
    %v1081 = vunpack.c.l.b16 %v863
    %v1082 = vunpack.c.h.b16 %v863
    %v1083 = vunpack.c.l.b16 %v864
    %v1084 = vunpack.c.l.b16 %v865
    %v1085 = vunpack.c.h.b16 %v865
    %v1086 = vunpack.c.l.b16 %v866
    %v1087 = vunpack.c.l.b16 %v867
    %v1088 = vunpack.c.h.b16 %v867
    %v1089 = vunpack.c.l.b16 %v868
    %v1090 = vunpack.c.l.b16 %v869
    %v1091 = vunpack.c.h.b16 %v869
    %v1092 = vunpack.c.l.b16 %v870
    %v1093 = vunpack.c.l.b16 %v871
    %v1094 = vunpack.c.h.b16 %v871
    %v1095 = vunpack.c.l.b16 %v872
    %v1096 = vunpack.c.l.b16 %v873
    %v1097 = vunpack.c.h.b16 %v873
    %v1098 = vunpack.c.l.b16 %v874
    %v1099 = vunpack.c.l.b16 %v875
    %v1100 = vunpack.c.h.b16 %v875
    %v1101 = vunpack.c.l.b16 %v876
    %v1102 = vunpack.c.l.b16 %v877
    %v1103 = vunpack.c.h.b16 %v877
    %v1104 = vunpack.c.l.b16 %v878
    %v1105 = vunpack.c.l.b16 %v879
    %v1106 = vunpack.c.h.b16 %v879
    %v1107 = vunpack.c.l.b16 %v880
    %v1108 = vunpack.c.l.b16 %v881
    %v1109 = vunpack.c.h.b16 %v881
    %v1110 = vunpack.c.l.b16 %v882
    %v1111 = vunpack.c.l.b16 %v883
    %v1112 = vunpack.c.h.b16 %v883
    %v1113 = vunpack.c.l.b16 %v884
    %v1114 = vunpack.c.l.b16 %v885
    %v1115 = vunpack.c.h.b16 %v885
    %v1116 = vunpack.c.l.b16 %v886
    %v1117 = vunpack.c.l.b16 %v887
    %v1118 = vunpack.c.h.b16 %v887
    %v1119 = vunpack.c.l.b16 %v888
    %v1120 = vunpack.c.l.b16 %v889
    %v1121 = vunpack.c.h.b16 %v889
    %v1122 = vunpack.c.l.b16 %v890
    %v1123 = vunpack.c.l.b16 %v891
    %v1124 = vunpack.c.h.b16 %v891
    %v1125 = vunpack.c.l.b16 %v892
    %v1126 = vunpack.c.l.b16 %v893
    %v1127 = vunpack.c.h.b16 %v893
    %v1128 = vunpack.c.l.b16 %v894
    %v1129 = vunpack.c.l.b16 %v895
    %v1130 = vunpack.c.h.b16 %v895
    %v1131 = vunpack.c.l.b16 %v896
    %v1132 = vunpack.c.l.b16 %v897
    %v1133 = vunpack.c.h.b16 %v897
    %v1134 = vunpack.c.l.b16 %v898
    %v1135 = vunpack.c.l.b16 %v899
    %v1136 = vunpack.c.h.b16 %v899
    %v1137 = vunpack.c.l.b16 %v900
    %v1138 = vunpack.c.l.b16 %v901
    %v1139 = vunpack.c.h.b16 %v901
    %v1140 = vunpack.c.l.b16 %v902
    %v1141 = vunpack.c.l.b16 %v903
    %v1142 = vunpack.c.h.b16 %v903
    %v1143 = vunpack.c.l.b16 %v904
    %v1144 = vunpack.c.l.b16 %v905
    %v1145 = vunpack.c.h.b16 %v905
    %v1146 = vunpack.c.l.b16 %v906
    %v1147 = vunpack.c.l.b16 %v907
    %v1148 = vunpack.c.h.b16 %v907
    %v1149 = vunpack.c.l.b16 %v908
    %v1150 = vunpack.c.l.b16 %v909
    %v1151 = vunpack.c.h.b16 %v909
    %v1152 = vunpack.c.l.b16 %v910
    %v1153 = vunpack.c.l.b16 %v911
    %v1154 = vunpack.c.h.b16 %v911
    %v1155 = vunpack.c.l.b16 %v912
    %v1156 = vunpack.c.l.b16 %v913
    %v1157 = vunpack.c.h.b16 %v913
    %v1158 = vunpack.c.l.b16 %v914
    %v1159 = vunpack.c.l.b16 %v915
    %v1160 = vunpack.c.h.b16 %v915
    %v1161 = vunpack.c.l.b16 %v916
    %v1162 = vunpack.c.l.b16 %v917
    %v1163 = vunpack.c.h.b16 %v917
    %v1164 = vunpack.c.l.b16 %v918
    %v1165 = vunpack.c.l.b16 %v919
    %v1166 = vunpack.c.h.b16 %v919
    %v1167 = vunpack.c.l.b16 %v920
    %v1168 = vunpack.c.l.b16 %v921
    %v1169 = vunpack.c.h.b16 %v921
    %v1170 = vunpack.c.l.b16 %v922
    %v1171 = vunpack.c.l.b16 %v923
    %v1172 = vunpack.c.h.b16 %v923
    %v1173 = vunpack.c.l.b16 %v924
    %v1174 = vunpack.c.l.b16 %v925
    %v1175 = vunpack.c.h.b16 %v925
    %v1176 = vunpack.c.l.b16 %v926
    %v1177 = vunpack.c.l.b16 %v927
    %v1178 = vunpack.c.h.b16 %v927
    %v1179 = vunpack.c.l.b16 %v928
    %v1180 = vunpack.c.l.b16 %v929
    %v1181 = vunpack.c.h.b16 %v929
    %v1182 = vunpack.c.l.b16 %v930
    %v1183 = vunpack.c.l.b16 %v931
    %v1184 = vunpack.c.h.b16 %v931
    %v1185 = vunpack.c.l.b16 %v932
    %v1186 = vunpack.c.l.b16 %v933
    %v1187 = vunpack.c.h.b16 %v933
    %v1188 = vunpack.c.l.b16 %v934
    %v1189 = vunpack.c.l.b16 %v935
    %v1190 = vunpack.c.h.b16 %v935
    %v1191 = vunpack.c.l.b16 %v936
    %v1192 = vunpack.c.l.b16 %v937
    %v1193 = vunpack.c.h.b16 %v937
    %v1194 = vunpack.c.l.b16 %v938
    %v1195 = vunpack.c.l.b16 %v939
    %v1196 = vunpack.c.h.b16 %v939
    %v1197 = vunpack.c.l.b16 %v940
    %v1198 = vpack.c.b16 %v1057, %v1054
    %v1199 = vpack.c.b16 %v1058, %v1055
    %v1200 = vpack.c.b16 %v1059, %v1056
    %v1201 = vpack.c.b16 %v1063, %v1060
    %v1202 = vpack.c.b16 %v1064, %v1061
    %v1203 = vpack.c.b16 %v1065, %v1062
    %v1204 = vpack.c.b16 %v1069, %v1066
    %v1205 = vpack.c.b16 %v1070, %v1067
    %v1206 = vpack.c.b16 %v1071, %v1068
    %v1207 = vpack.c.b16 %v1075, %v1072
    %v1208 = vpack.c.b16 %v1076, %v1073
    %v1209 = vpack.c.b16 %v1077, %v1074
    %v1210 = vpack.c.b16 %v1081, %v1078
    %v1211 = vpack.c.b16 %v1082, %v1079
    %v1212 = vpack.c.b16 %v1083, %v1080
    %v1213 = vpack.c.b16 %v1087, %v1084
    %v1214 = vpack.c.b16 %v1088, %v1085
    %v1215 = vpack.c.b16 %v1089, %v1086
    %v1216 = vpack.c.b16 %v1093, %v1090
    %v1217 = vpack.c.b16 %v1094, %v1091
    %v1218 = vpack.c.b16 %v1095, %v1092
    %v1219 = vpack.c.b16 %v1099, %v1096
    %v1220 = vpack.c.b16 %v1100, %v1097
    %v1221 = vpack.c.b16 %v1101, %v1098
    %v1222 = vpack.c.b16 %v1105, %v1102
    %v1223 = vpack.c.b16 %v1106, %v1103
    %v1224 = vpack.c.b16 %v1107, %v1104
    %v1225 = vpack.c.b16 %v1111, %v1108
    %v1226 = vpack.c.b16 %v1112, %v1109
    %v1227 = vpack.c.b16 %v1113, %v1110
    %v1228 = vpack.c.b16 %v1117, %v1114
    %v1229 = vpack.c.b16 %v1118, %v1115
    %v1230 = vpack.c.b16 %v1119, %v1116
    %v1231 = vpack.c.b16 %v1123, %v1120
    %v1232 = vpack.c.b16 %v1124, %v1121
    %v1233 = vpack.c.b16 %v1125, %v1122
    %v1234 = vpack.c.b16 %v1129, %v1126
    %v1235 = vpack.c.b16 %v1130, %v1127
    %v1236 = vpack.c.b16 %v1131, %v1128
    %v1237 = vpack.c.b16 %v1135, %v1132
    %v1238 = vpack.c.b16 %v1136, %v1133
    %v1239 = vpack.c.b16 %v1137, %v1134
    %v1240 = vpack.c.b16 %v1141, %v1138
    %v1241 = vpack.c.b16 %v1142, %v1139
    %v1242 = vpack.c.b16 %v1143, %v1140
    %v1243 = vpack.c.b16 %v1147, %v1144
    %v1244 = vpack.c.b16 %v1148, %v1145
    %v1245 = vpack.c.b16 %v1149, %v1146
    %v1246 = vpack.c.b16 %v1153, %v1150
    %v1247 = vpack.c.b16 %v1154, %v1151
    %v1248 = vpack.c.b16 %v1155, %v1152
    %v1249 = vpack.c.b16 %v1159, %v1156
    %v1250 = vpack.c.b16 %v1160, %v1157
    %v1251 = vpack.c.b16 %v1161, %v1158
    %v1252 = vpack.c.b16 %v1165, %v1162
    %v1253 = vpack.c.b16 %v1166, %v1163
    %v1254 = vpack.c.b16 %v1167, %v1164
    %v1255 = vpack.c.b16 %v1171, %v1168
    %v1256 = vpack.c.b16 %v1172, %v1169
    %v1257 = vpack.c.b16 %v1173, %v1170
    %v1258 = vpack.c.b16 %v1177, %v1174
    %v1259 = vpack.c.b16 %v1178, %v1175
    %v1260 = vpack.c.b16 %v1179, %v1176
    %v1261 = vpack.c.b16 %v1183, %v1180
    %v1262 = vpack.c.b16 %v1184, %v1181
    %v1263 = vpack.c.b16 %v1185, %v1182
    %v1264 = vpack.c.b16 %v1189, %v1186
    %v1265 = vpack.c.b16 %v1190, %v1187
    %v1266 = vpack.c.b16 %v1191, %v1188
    %v1267 = vpack.c.b16 %v1195, %v1192
    %v1268 = vpack.c.b16 %v1196, %v1193
    %v1269 = vpack.c.b16 %v1197, %v1194
    %1342 = vmatprep.subr.bf16.mxu0 %v1220
    %1343 = vmatpush1.bf16.msra.mxu0 %v1219
    %1344 = vmatprep.subr.bf16.mxu0 %v1217
    %1345 = vmatpush1.bf16.msra.mxu0 %v1216
    %1346 = vmatprep.subr.bf16.mxu0 %v1214
    %1347 = vmatpush1.bf16.msra.mxu0 %v1213
    %1348 = vmatprep.subr.bf16.mxu0 %v1211
    %1349 = vmatpush1.bf16.msra.mxu0 %v1210
    %1350 = vmatprep.subr.bf16.mxu0 %v1208
    %1351 = vmatpush1.bf16.msra.mxu0 %v1207
    %1352 = vmatprep.subr.bf16.mxu0 %v1205
    %1353 = vmatpush1.bf16.msra.mxu0 %v1204
    %1354 = vmatprep.subr.bf16.mxu0 %v1202
    %1355 = vmatpush1.bf16.msra.mxu0 %v1201
    %1356 = vmatprep.subr.bf16.mxu0 %v1199
    %1357 = vmatpush1.bf16.msra.mxu0 %v1198
    %1358 = vmatprep.subr.bf16.mxu0 %v1244
    %1359 = vmatpush2.bf16.msra.mxu0 %v1243
    %1360 = vmatprep.subr.bf16.mxu0 %v1241
    %1361 = vmatpush2.bf16.msra.mxu0 %v1240
    %1362 = vmatprep.subr.bf16.mxu0 %v1238
    %1363 = vmatpush2.bf16.msra.mxu0 %v1237
    %1364 = vmatprep.subr.bf16.mxu0 %v1235
    %1365 = vmatpush2.bf16.msra.mxu0 %v1234
    %1366 = vmatprep.subr.bf16.mxu0 %v1232
    %1367 = vmatpush2.bf16.msra.mxu0 %v1231
    %1368 = vmatprep.subr.bf16.mxu0 %v1229
    %1369 = vmatpush2.bf16.msra.mxu0 %v1228
    %1370 = vmatprep.subr.bf16.mxu0 %v1226
    %1371 = vmatpush2.bf16.msra.mxu0 %v1225
    %1372 = vmatprep.subr.bf16.mxu0 %v1223
    %1373 = vmatpush2.bf16.msra.mxu0 %v1222
    %1374 = vmatprep.mubr.bf16.mxu0 %v843
    %1375 = vmatmul.mubr.bf16.gmra.mxu0 %v842
    %v1376 = vpop.f32.mrf.mxu0
    %v1377 = vadd.f32 %v946, %v1376
    %v1378 = vpop.f32.mrf.mxu0
    %v1379 = vadd.f32 %v950, %v1378
    %v1380 = vpop.f32.mrf.mxu0
    %v1381 = vadd.f32 %v946, %v1380
    %v1382 = vpop.f32.mrf.mxu0
    %v1383 = vadd.f32 %v950, %v1382
    %1384 = vdwg.mxu0
    %1385 = vmatprep.subr.bf16.mxu0 %v1268
    %1386 = vmatpush1.bf16.msra.mxu0 %v1267
    %1387 = vmatprep.subr.bf16.mxu0 %v1265
    %1388 = vmatpush1.bf16.msra.mxu0 %v1264
    %1389 = vmatprep.subr.bf16.mxu0 %v1262
    %1390 = vmatpush1.bf16.msra.mxu0 %v1261
    %1391 = vmatprep.subr.bf16.mxu0 %v1259
    %1392 = vmatpush1.bf16.msra.mxu0 %v1258
    %1393 = vmatprep.subr.bf16.mxu0 %v1256
    %1394 = vmatpush1.bf16.msra.mxu0 %v1255
    %1395 = vmatprep.subr.bf16.mxu0 %v1253
    %1396 = vmatpush1.bf16.msra.mxu0 %v1252
    %1397 = vmatprep.subr.bf16.mxu0 %v1250
    %1398 = vmatpush1.bf16.msra.mxu0 %v1249
    %1399 = vmatprep.subr.bf16.mxu0 %v1247
    %1400 = vmatpush1.bf16.msra.mxu0 %v1246
    %1401 = vmatprep.subr.bf16.mxu0 0
    %1402 = vmatpush2.bf16.msra.mxu0 0
    %1403 = vmatprep.subr.bf16.mxu0 0
    %1404 = vmatpush2.bf16.msra.mxu0 0
    %1405 = vmatprep.subr.bf16.mxu0 0
    %1406 = vmatpush2.bf16.msra.mxu0 0
    %1407 = vmatprep.subr.bf16.mxu0 0
    %1408 = vmatpush2.bf16.msra.mxu0 0
    %1409 = vmatprep.subr.bf16.mxu0 0
    %1410 = vmatpush2.bf16.msra.mxu0 0
    %1411 = vmatprep.subr.bf16.mxu0 0
    %1412 = vmatpush2.bf16.msra.mxu0 0
    %1413 = vmatprep.subr.bf16.mxu0 0
    %1414 = vmatpush2.bf16.msra.mxu0 0
    %1415 = vmatprep.subr.bf16.mxu0 0
    %1416 = vmatpush2.bf16.msra.mxu0 0
    %1417 = vmatprep.mubr.bf16.mxu0 0
    %1418 = vmatmul.mubr.bf16.gmra.mxu0 %v844
    %v1419 = vpop.f32.mrf.mxu0
    %v1420 = vadd.f32 %v1377, %v1419
    %v1421 = vpop.f32.mrf.mxu0
    %v1422 = vadd.f32 %v1379, %v1421
    %v1423 = vpop.f32.mrf.mxu0
    %v1424 = vadd.f32 %v1381, %v1423
    %v1425 = vpop.f32.mrf.mxu0
    %v1426 = vadd.f32 %v1383, %v1425
    %1427 = vdwg.mxu0
    %1428 = vmatprep.subr.bf16.mxu0 0
    %1429 = vmatpush1.bf16.msra.mxu0 %v1221
    %1430 = vmatprep.subr.bf16.mxu0 0
    %1431 = vmatpush1.bf16.msra.mxu0 %v1218
    %1432 = vmatprep.subr.bf16.mxu0 0
    %1433 = vmatpush1.bf16.msra.mxu0 %v1215
    %1434 = vmatprep.subr.bf16.mxu0 0
    %1435 = vmatpush1.bf16.msra.mxu0 %v1212
    %1436 = vmatprep.subr.bf16.mxu0 0
    %1437 = vmatpush1.bf16.msra.mxu0 %v1209
    %1438 = vmatprep.subr.bf16.mxu0 0
    %1439 = vmatpush1.bf16.msra.mxu0 %v1206
    %1440 = vmatprep.subr.bf16.mxu0 0
    %1441 = vmatpush1.bf16.msra.mxu0 %v1203
    %1442 = vmatprep.subr.bf16.mxu0 0
    %1443 = vmatpush1.bf16.msra.mxu0 %v1200
    %1444 = vmatprep.subr.bf16.mxu0 0
    %1445 = vmatpush2.bf16.msra.mxu0 %v1245
    %1446 = vmatprep.subr.bf16.mxu0 0
    %1447 = vmatpush2.bf16.msra.mxu0 %v1242
    %1448 = vmatprep.subr.bf16.mxu0 0
    %1449 = vmatpush2.bf16.msra.mxu0 %v1239
    %1450 = vmatprep.subr.bf16.mxu0 0
    %1451 = vmatpush2.bf16.msra.mxu0 %v1236
    %1452 = vmatprep.subr.bf16.mxu0 0
    %1453 = vmatpush2.bf16.msra.mxu0 %v1233
    %1454 = vmatprep.subr.bf16.mxu0 0
    %1455 = vmatpush2.bf16.msra.mxu0 %v1230
    %1456 = vmatprep.subr.bf16.mxu0 0
    %1457 = vmatpush2.bf16.msra.mxu0 %v1227
    %1458 = vmatprep.subr.bf16.mxu0 0
    %1459 = vmatpush2.bf16.msra.mxu0 %v1224
    %1460 = vmatprep.mubr.bf16.mxu0 %v843
    %1461 = vmatmul.mubr.bf16.gmra.mxu0 %v842
    %v1462 = vpop.f32.mrf.mxu0
    %v1463 = vadd.f32 %v954, %v1462
    %v1464 = vpop.f32.mrf.mxu0
    %v1465 = vpop.f32.mrf.mxu0
    %v1466 = vadd.f32 %v954, %v1465
    %v1467 = vpop.f32.mrf.mxu0
    %1468 = vdwg.mxu0
    %1469 = vmatprep.subr.bf16.mxu0 0
    %1470 = vmatpush1.bf16.msra.mxu0 %v1269
    %1471 = vmatprep.subr.bf16.mxu0 0
    %1472 = vmatpush1.bf16.msra.mxu0 %v1266
    %1473 = vmatprep.subr.bf16.mxu0 0
    %1474 = vmatpush1.bf16.msra.mxu0 %v1263
    %1475 = vmatprep.subr.bf16.mxu0 0
    %1476 = vmatpush1.bf16.msra.mxu0 %v1260
    %1477 = vmatprep.subr.bf16.mxu0 0
    %1478 = vmatpush1.bf16.msra.mxu0 %v1257
    %1479 = vmatprep.subr.bf16.mxu0 0
    %1480 = vmatpush1.bf16.msra.mxu0 %v1254
    %1481 = vmatprep.subr.bf16.mxu0 0
    %1482 = vmatpush1.bf16.msra.mxu0 %v1251
    %1483 = vmatprep.subr.bf16.mxu0 0
    %1484 = vmatpush1.bf16.msra.mxu0 %v1248
    %1485 = vmatprep.subr.bf16.mxu0 0
    %1486 = vmatpush2.bf16.msra.mxu0 0
    %1487 = vmatprep.subr.bf16.mxu0 0
    %1488 = vmatpush2.bf16.msra.mxu0 0
    %1489 = vmatprep.subr.bf16.mxu0 0
    %1490 = vmatpush2.bf16.msra.mxu0 0
    %1491 = vmatprep.subr.bf16.mxu0 0
    %1492 = vmatpush2.bf16.msra.mxu0 0
    %1493 = vmatprep.subr.bf16.mxu0 0
    %1494 = vmatpush2.bf16.msra.mxu0 0
    %1495 = vmatprep.subr.bf16.mxu0 0
    %1496 = vmatpush2.bf16.msra.mxu0 0
    %1497 = vmatprep.subr.bf16.mxu0 0
    %1498 = vmatpush2.bf16.msra.mxu0 0
    %1499 = vmatprep.subr.bf16.mxu0 0
    %1500 = vmatpush2.bf16.msra.mxu0 0
    %1501 = vmatprep.mubr.bf16.mxu0 0
    %1502 = vmatmul.mubr.bf16.gmra.mxu0 %v844
    %v1503 = vpop.f32.mrf.mxu0
    %v1504 = vadd.f32 %v1463, %v1503
    %v1505 = vpop.f32.mrf.mxu0
    %v1506 = vpop.f32.mrf.mxu0
    %v1507 = vadd.f32 %v1466, %v1506
    %v1508 = vpop.f32.mrf.mxu0
    %1509 = vdwg.mxu0
    %v1510 = vpack.c.bf16 %v1424, %v1420
    %v1511 = vpack.c.bf16 %v1426, %v1422
    %v1512 = vpack.c.bf16 %v1507, %v1504
    %v1513 = vld [vmem:[#allocation11] sm:$0xff]
    %v1514 = vld [vmem:[#allocation11 + $0x8] sm:$0xff]
    %v1515 = vld [vmem:[#allocation11 + $0x10] sm:$0xff]
    %v1516 = vld [vmem:[#allocation11 + $0x18] sm:$0xff]
    %v1517 = vld [vmem:[#allocation11 + $0x20] sm:$0xff]
    %v1518 = vld [vmem:[#allocation11 + $0x28] sm:$0xff]
    %v1519 = vld [vmem:[#allocation11 + $0x30] sm:$0xff]
    %v1520 = vld [vmem:[#allocation11 + $0x38] sm:$0xff]
    %v1521 = vld [vmem:[#allocation11 + $0x40] sm:$0xff]
    %v1522 = vld [vmem:[#allocation11 + $0x48] sm:$0xff]
    %v1523 = vld [vmem:[#allocation11 + $0x50] sm:$0xff]
    %v1524 = vld [vmem:[#allocation11 + $0x58] sm:$0xff]
    %v1525 = vld [vmem:[#allocation11 + $0x60] sm:$0xff]
    %v1526 = vld [vmem:[#allocation11 + $0x68] sm:$0xff]
    %v1527 = vld [vmem:[#allocation11 + $0x70] sm:$0xff]
    %v1528 = vld [vmem:[#allocation11 + $0x78] sm:$0xff]
    %v1529 = vld [vmem:[#allocation11 + $0x80] sm:$0xff]
    %v1530 = vld [vmem:[#allocation11 + $0x88] sm:$0xff]
    %v1531 = vld [vmem:[#allocation11 + $0x90] sm:$0xff]
    %v1532 = vld [vmem:[#allocation11 + $0x98] sm:$0xff]
    %v1533 = vld [vmem:[#allocation11 + $0xa0] sm:$0xff]
    %v1534 = vld [vmem:[#allocation11 + $0xa8] sm:$0xff]
    %v1535 = vld [vmem:[#allocation11 + $0xb0] sm:$0xff]
    %v1536 = vld [vmem:[#allocation11 + $0xb8] sm:$0xff]
    %v1537 = vld [vmem:[#allocation11 + $0xc0] sm:$0xff]
    %v1538 = vld [vmem:[#allocation11 + $0xc8] sm:$0xff]
    %v1539 = vld [vmem:[#allocation11 + $0xd0] sm:$0xff]
    %v1540 = vld [vmem:[#allocation11 + $0xd8] sm:$0xff]
    %v1541 = vld [vmem:[#allocation11 + $0xe0] sm:$0xff]
    %v1542 = vld [vmem:[#allocation11 + $0xe8] sm:$0xff]
    %v1543 = vld [vmem:[#allocation11 + $0xf0] sm:$0xff]
    %v1544 = vld [vmem:[#allocation11 + $0xf8] sm:$0xff]
    %v1545 = vld [vmem:[#allocation11 + $0x100] sm:$0xff]
    %v1546 = vld [vmem:[#allocation11 + $0x108] sm:$0xff]
    %v1547 = vld [vmem:[#allocation11 + $0x110] sm:$0xff]
    %v1548 = vld [vmem:[#allocation11 + $0x118] sm:$0xff]
    %v1549 = vld [vmem:[#allocation11 + $0x120] sm:$0xff]
    %v1550 = vld [vmem:[#allocation11 + $0x128] sm:$0xff]
    %v1551 = vld [vmem:[#allocation11 + $0x130] sm:$0xff]
    %v1552 = vld [vmem:[#allocation11 + $0x138] sm:$0xff]
    %v1553 = vld [vmem:[#allocation11 + $0x140] sm:$0xff]
    %v1554 = vld [vmem:[#allocation11 + $0x148] sm:$0xff]
    %v1555 = vld [vmem:[#allocation11 + $0x150] sm:$0xff]
    %v1556 = vld [vmem:[#allocation11 + $0x158] sm:$0xff]
    %v1557 = vld [vmem:[#allocation11 + $0x160] sm:$0xff]
    %v1558 = vld [vmem:[#allocation11 + $0x168] sm:$0xff]
    %v1559 = vld [vmem:[#allocation11 + $0x170] sm:$0xff]
    %v1560 = vld [vmem:[#allocation11 + $0x178] sm:$0xff]
    %v1561 = vld [vmem:[#allocation11 + $0x180] sm:$0xff]
    %v1562 = vld [vmem:[#allocation11 + $0x188] sm:$0xff]
    %v1563 = vld [vmem:[#allocation11 + $0x190] sm:$0xff]
    %v1564 = vld [vmem:[#allocation11 + $0x198] sm:$0xff]
    %v1565 = vld [vmem:[#allocation11 + $0x1a0] sm:$0xff]
    %v1566 = vld [vmem:[#allocation11 + $0x1a8] sm:$0xff]
    %v1567 = vld [vmem:[#allocation11 + $0x1b0] sm:$0xff]
    %v1568 = vld [vmem:[#allocation11 + $0x1b8] sm:$0xff]
    %v1569 = vld [vmem:[#allocation11 + $0x1c0] sm:$0xff]
    %v1570 = vld [vmem:[#allocation11 + $0x1c8] sm:$0xff]
    %v1571 = vld [vmem:[#allocation11 + $0x1d0] sm:$0xff]
    %v1572 = vld [vmem:[#allocation11 + $0x1d8] sm:$0xff]
    %v1573 = vld [vmem:[#allocation11 + $0x1e0] sm:$0xff]
    %v1574 = vld [vmem:[#allocation11 + $0x1e8] sm:$0xff]
    %v1575 = vld [vmem:[#allocation11 + $0x1f0] sm:$0xff]
    %v1576 = vld [vmem:[#allocation11 + $0x1f8] sm:$0xff]
    %v1577 = vld [vmem:[#allocation11 + $0x200] sm:$0xff]
    %v1578 = vld [vmem:[#allocation11 + $0x208] sm:$0xff]
    %v1579 = vld [vmem:[#allocation11 + $0x210] sm:$0xff]
    %v1580 = vld [vmem:[#allocation11 + $0x218] sm:$0xff]
    %v1581 = vld [vmem:[#allocation11 + $0x220] sm:$0xff]
    %v1582 = vld [vmem:[#allocation11 + $0x228] sm:$0xff]
    %v1583 = vld [vmem:[#allocation11 + $0x230] sm:$0xff]
    %v1584 = vld [vmem:[#allocation11 + $0x238] sm:$0xff]
    %v1585 = vld [vmem:[#allocation11 + $0x240] sm:$0xff]
    %v1586 = vld [vmem:[#allocation11 + $0x248] sm:$0xff]
    %v1587 = vld [vmem:[#allocation11 + $0x250] sm:$0xff]
    %v1588 = vld [vmem:[#allocation11 + $0x258] sm:$0xff]
    %v1589 = vld [vmem:[#allocation11 + $0x260] sm:$0xff]
    %v1590 = vld [vmem:[#allocation11 + $0x268] sm:$0xff]
    %v1591 = vld [vmem:[#allocation11 + $0x270] sm:$0xff]
    %v1592 = vld [vmem:[#allocation11 + $0x278] sm:$0xff]
    %v1593 = vld [vmem:[#allocation11 + $0x280] sm:$0xff]
    %v1594 = vld [vmem:[#allocation11 + $0x288] sm:$0xff]
    %v1595 = vld [vmem:[#allocation11 + $0x290] sm:$0xff]
    %v1596 = vld [vmem:[#allocation11 + $0x298] sm:$0xff]
    %v1597 = vld [vmem:[#allocation11 + $0x2a0] sm:$0xff]
    %v1598 = vld [vmem:[#allocation11 + $0x2a8] sm:$0xff]
    %v1599 = vld [vmem:[#allocation11 + $0x2b0] sm:$0xff]
    %v1600 = vld [vmem:[#allocation11 + $0x2b8] sm:$0xff]
    %v1601 = vld [vmem:[#allocation11 + $0x2c0] sm:$0xff]
    %v1602 = vld [vmem:[#allocation11 + $0x2c8] sm:$0xff]
    %v1603 = vld [vmem:[#allocation11 + $0x2d0] sm:$0xff]
    %v1604 = vld [vmem:[#allocation11 + $0x2d8] sm:$0xff]
    %v1605 = vld [vmem:[#allocation11 + $0x2e0] sm:$0xff]
    %v1606 = vld [vmem:[#allocation11 + $0x2e8] sm:$0xff]
    %v1607 = vld [vmem:[#allocation11 + $0x2f0] sm:$0xff]
    %v1608 = vld [vmem:[#allocation11 + $0x2f8] sm:$0xff]
    %v1609 = vld [vmem:[#allocation13] sm:$0xff]
    %v1610 = vld [vmem:[#allocation13 + $0x8] sm:$0xff]
    %v1611 = vld [vmem:[#allocation13 + $0x10] sm:$0xff]
    %v1612 = vld [vmem:[#allocation13 + $0x18] sm:$0xff]
    %v1613 = vld [vmem:[#allocation13 + $0x20] sm:$0xff]
    %v1614 = vld [vmem:[#allocation13 + $0x28] sm:$0xff]
    %v1615 = vld [vmem:[#allocation13 + $0x30] sm:$0xff]
    %v1616 = vld [vmem:[#allocation13 + $0x38] sm:$0xff]
    %v1617 = vld [vmem:[#allocation13 + $0x40] sm:$0xff]
    %v1618 = vld [vmem:[#allocation13 + $0x48] sm:$0xff]
    %v1619 = vld [vmem:[#allocation13 + $0x50] sm:$0xff]
    %v1620 = vld [vmem:[#allocation13 + $0x58] sm:$0xff]
    %v1621 = vld [vmem:[#allocation13 + $0x60] sm:$0xff]
    %v1622 = vld [vmem:[#allocation13 + $0x68] sm:$0xff]
    %v1623 = vld [vmem:[#allocation13 + $0x70] sm:$0xff]
    %v1624 = vld [vmem:[#allocation13 + $0x78] sm:$0xff]
    %v1625 = vld [vmem:[#allocation13 + $0x80] sm:$0xff]
    %v1626 = vld [vmem:[#allocation13 + $0x88] sm:$0xff]
    %v1627 = vld [vmem:[#allocation13 + $0x90] sm:$0xff]
    %v1628 = vld [vmem:[#allocation13 + $0x98] sm:$0xff]
    %v1629 = vld [vmem:[#allocation13 + $0xa0] sm:$0xff]
    %v1630 = vld [vmem:[#allocation13 + $0xa8] sm:$0xff]
    %v1631 = vld [vmem:[#allocation13 + $0xb0] sm:$0xff]
    %v1632 = vld [vmem:[#allocation13 + $0xb8] sm:$0xff]
    %v1633 = vld [vmem:[#allocation13 + $0xc0] sm:$0xff]
    %v1634 = vld [vmem:[#allocation13 + $0xc8] sm:$0xff]
    %v1635 = vld [vmem:[#allocation13 + $0xd0] sm:$0xff]
    %v1636 = vld [vmem:[#allocation13 + $0xd8] sm:$0xff]
    %v1637 = vld [vmem:[#allocation13 + $0xe0] sm:$0xff]
    %v1638 = vld [vmem:[#allocation13 + $0xe8] sm:$0xff]
    %v1639 = vld [vmem:[#allocation13 + $0xf0] sm:$0xff]
    %v1640 = vld [vmem:[#allocation13 + $0xf8] sm:$0xff]
    %v1641 = vld [vmem:[#allocation13 + $0x100] sm:$0xff]
    %v1642 = vld [vmem:[#allocation13 + $0x108] sm:$0xff]
    %v1643 = vld [vmem:[#allocation13 + $0x110] sm:$0xff]
    %v1644 = vld [vmem:[#allocation13 + $0x118] sm:$0xff]
    %v1645 = vld [vmem:[#allocation13 + $0x120] sm:$0xff]
    %v1646 = vld [vmem:[#allocation13 + $0x128] sm:$0xff]
    %v1647 = vld [vmem:[#allocation13 + $0x130] sm:$0xff]
    %v1648 = vld [vmem:[#allocation13 + $0x138] sm:$0xff]
    %v1649 = vld [vmem:[#allocation13 + $0x140] sm:$0xff]
    %v1650 = vld [vmem:[#allocation13 + $0x148] sm:$0xff]
    %v1651 = vld [vmem:[#allocation13 + $0x150] sm:$0xff]
    %v1652 = vld [vmem:[#allocation13 + $0x158] sm:$0xff]
    %v1653 = vld [vmem:[#allocation13 + $0x160] sm:$0xff]
    %v1654 = vld [vmem:[#allocation13 + $0x168] sm:$0xff]
    %v1655 = vld [vmem:[#allocation13 + $0x170] sm:$0xff]
    %v1656 = vld [vmem:[#allocation13 + $0x178] sm:$0xff]
    %v1657 = vld [vmem:[#allocation13 + $0x180] sm:$0xff]
    %v1658 = vld [vmem:[#allocation13 + $0x188] sm:$0xff]
    %v1659 = vld [vmem:[#allocation13 + $0x190] sm:$0xff]
    %v1660 = vld [vmem:[#allocation13 + $0x198] sm:$0xff]
    %v1661 = vld [vmem:[#allocation13 + $0x1a0] sm:$0xff]
    %v1662 = vld [vmem:[#allocation13 + $0x1a8] sm:$0xff]
    %v1663 = vld [vmem:[#allocation13 + $0x1b0] sm:$0xff]
    %v1664 = vld [vmem:[#allocation13 + $0x1b8] sm:$0xff]
    %v1665 = vld [vmem:[#allocation13 + $0x1c0] sm:$0xff]
    %v1666 = vld [vmem:[#allocation13 + $0x1c8] sm:$0xff]
    %v1667 = vld [vmem:[#allocation13 + $0x1d0] sm:$0xff]
    %v1668 = vld [vmem:[#allocation13 + $0x1d8] sm:$0xff]
    %v1669 = vld [vmem:[#allocation13 + $0x1e0] sm:$0xff]
    %v1670 = vld [vmem:[#allocation13 + $0x1e8] sm:$0xff]
    %v1671 = vld [vmem:[#allocation13 + $0x1f0] sm:$0xff]
    %v1672 = vld [vmem:[#allocation13 + $0x1f8] sm:$0xff]
    %v1737 = vunpack.c.l.b16 %v1609
    %v1738 = vunpack.c.h.b16 %v1609
    %v1739 = vunpack.c.l.b16 %v1610
    %v1740 = vunpack.c.h.b16 %v1610
    %v1741 = vunpack.c.l.b16 %v1611
    %v1742 = vunpack.c.h.b16 %v1611
    %v1743 = vunpack.c.l.b16 %v1612
    %v1744 = vunpack.c.h.b16 %v1612
    %v1745 = vunpack.c.l.b16 %v1613
    %v1746 = vunpack.c.h.b16 %v1613
    %v1747 = vunpack.c.l.b16 %v1614
    %v1748 = vunpack.c.h.b16 %v1614
    %v1749 = vunpack.c.l.b16 %v1615
    %v1750 = vunpack.c.h.b16 %v1615
    %v1751 = vunpack.c.l.b16 %v1616
    %v1752 = vunpack.c.h.b16 %v1616
    %v1753 = vunpack.c.l.b16 %v1617
    %v1754 = vunpack.c.h.b16 %v1617
    %v1755 = vunpack.c.l.b16 %v1618
    %v1756 = vunpack.c.h.b16 %v1618
    %v1757 = vunpack.c.l.b16 %v1619
    %v1758 = vunpack.c.h.b16 %v1619
    %v1759 = vunpack.c.l.b16 %v1620
    %v1760 = vunpack.c.h.b16 %v1620
    %v1761 = vunpack.c.l.b16 %v1621
    %v1762 = vunpack.c.h.b16 %v1621
    %v1763 = vunpack.c.l.b16 %v1622
    %v1764 = vunpack.c.h.b16 %v1622
    %v1765 = vunpack.c.l.b16 %v1623
    %v1766 = vunpack.c.h.b16 %v1623
    %v1767 = vunpack.c.l.b16 %v1624
    %v1768 = vunpack.c.h.b16 %v1624
    %v1769 = vunpack.c.l.b16 %v1625
    %v1770 = vunpack.c.h.b16 %v1625
    %v1771 = vunpack.c.l.b16 %v1626
    %v1772 = vunpack.c.h.b16 %v1626
    %v1773 = vunpack.c.l.b16 %v1627
    %v1774 = vunpack.c.h.b16 %v1627
    %v1775 = vunpack.c.l.b16 %v1628
    %v1776 = vunpack.c.h.b16 %v1628
    %v1777 = vunpack.c.l.b16 %v1629
    %v1778 = vunpack.c.h.b16 %v1629
    %v1779 = vunpack.c.l.b16 %v1630
    %v1780 = vunpack.c.h.b16 %v1630
    %v1781 = vunpack.c.l.b16 %v1631
    %v1782 = vunpack.c.h.b16 %v1631
    %v1783 = vunpack.c.l.b16 %v1632
    %v1784 = vunpack.c.h.b16 %v1632
    %v1785 = vunpack.c.l.b16 %v1633
    %v1786 = vunpack.c.h.b16 %v1633
    %v1787 = vunpack.c.l.b16 %v1634
    %v1788 = vunpack.c.h.b16 %v1634
    %v1789 = vunpack.c.l.b16 %v1635
    %v1790 = vunpack.c.h.b16 %v1635
    %v1791 = vunpack.c.l.b16 %v1636
    %v1792 = vunpack.c.h.b16 %v1636
    %v1793 = vunpack.c.l.b16 %v1637
    %v1794 = vunpack.c.h.b16 %v1637
    %v1795 = vunpack.c.l.b16 %v1638
    %v1796 = vunpack.c.h.b16 %v1638
    %v1797 = vunpack.c.l.b16 %v1639
    %v1798 = vunpack.c.h.b16 %v1639
    %v1799 = vunpack.c.l.b16 %v1640
    %v1800 = vunpack.c.h.b16 %v1640
    %v1801 = vunpack.c.l.b16 %v1641
    %v1802 = vunpack.c.h.b16 %v1641
    %v1803 = vunpack.c.l.b16 %v1642
    %v1804 = vunpack.c.h.b16 %v1642
    %v1805 = vunpack.c.l.b16 %v1643
    %v1806 = vunpack.c.h.b16 %v1643
    %v1807 = vunpack.c.l.b16 %v1644
    %v1808 = vunpack.c.h.b16 %v1644
    %v1809 = vunpack.c.l.b16 %v1645
    %v1810 = vunpack.c.h.b16 %v1645
    %v1811 = vunpack.c.l.b16 %v1646
    %v1812 = vunpack.c.h.b16 %v1646
    %v1813 = vunpack.c.l.b16 %v1647
    %v1814 = vunpack.c.h.b16 %v1647
    %v1815 = vunpack.c.l.b16 %v1648
    %v1816 = vunpack.c.h.b16 %v1648
    %v1817 = vunpack.c.l.b16 %v1649
    %v1818 = vunpack.c.h.b16 %v1649
    %v1819 = vunpack.c.l.b16 %v1650
    %v1820 = vunpack.c.h.b16 %v1650
    %v1821 = vunpack.c.l.b16 %v1651
    %v1822 = vunpack.c.h.b16 %v1651
    %v1823 = vunpack.c.l.b16 %v1652
    %v1824 = vunpack.c.h.b16 %v1652
    %v1825 = vunpack.c.l.b16 %v1653
    %v1826 = vunpack.c.h.b16 %v1653
    %v1827 = vunpack.c.l.b16 %v1654
    %v1828 = vunpack.c.h.b16 %v1654
    %v1829 = vunpack.c.l.b16 %v1655
    %v1830 = vunpack.c.h.b16 %v1655
    %v1831 = vunpack.c.l.b16 %v1656
    %v1832 = vunpack.c.h.b16 %v1656
    %v1833 = vunpack.c.l.b16 %v1657
    %v1834 = vunpack.c.h.b16 %v1657
    %v1835 = vunpack.c.l.b16 %v1658
    %v1836 = vunpack.c.h.b16 %v1658
    %v1837 = vunpack.c.l.b16 %v1659
    %v1838 = vunpack.c.h.b16 %v1659
    %v1839 = vunpack.c.l.b16 %v1660
    %v1840 = vunpack.c.h.b16 %v1660
    %v1841 = vunpack.c.l.b16 %v1661
    %v1842 = vunpack.c.h.b16 %v1661
    %v1843 = vunpack.c.l.b16 %v1662
    %v1844 = vunpack.c.h.b16 %v1662
    %v1845 = vunpack.c.l.b16 %v1663
    %v1846 = vunpack.c.h.b16 %v1663
    %v1847 = vunpack.c.l.b16 %v1664
    %v1848 = vunpack.c.h.b16 %v1664
    %v1849 = vunpack.c.l.b16 %v1665
    %v1850 = vunpack.c.h.b16 %v1665
    %v1851 = vunpack.c.l.b16 %v1666
    %v1852 = vunpack.c.h.b16 %v1666
    %v1853 = vunpack.c.l.b16 %v1667
    %v1854 = vunpack.c.h.b16 %v1667
    %v1855 = vunpack.c.l.b16 %v1668
    %v1856 = vunpack.c.h.b16 %v1668
    %v1857 = vunpack.c.l.b16 %v1669
    %v1858 = vunpack.c.h.b16 %v1669
    %v1859 = vunpack.c.l.b16 %v1670
    %v1860 = vunpack.c.h.b16 %v1670
    %v1861 = vunpack.c.l.b16 %v1671
    %v1862 = vunpack.c.h.b16 %v1671
    %v1863 = vunpack.c.l.b16 %v1672
    %v1864 = vunpack.c.h.b16 %v1672
    %v1865 = vpack.c.b16 %v1741, %v1737
    %v1866 = vpack.c.b16 %v1742, %v1738
    %v1867 = vpack.c.b16 %v1743, %v1739
    %v1868 = vpack.c.b16 %v1744, %v1740
    %v1869 = vpack.c.b16 %v1749, %v1745
    %v1870 = vpack.c.b16 %v1750, %v1746
    %v1871 = vpack.c.b16 %v1751, %v1747
    %v1872 = vpack.c.b16 %v1752, %v1748
    %v1873 = vpack.c.b16 %v1757, %v1753
    %v1874 = vpack.c.b16 %v1758, %v1754
    %v1875 = vpack.c.b16 %v1759, %v1755
    %v1876 = vpack.c.b16 %v1760, %v1756
    %v1877 = vpack.c.b16 %v1765, %v1761
    %v1878 = vpack.c.b16 %v1766, %v1762
    %v1879 = vpack.c.b16 %v1767, %v1763
    %v1880 = vpack.c.b16 %v1768, %v1764
    %v1881 = vpack.c.b16 %v1773, %v1769
    %v1882 = vpack.c.b16 %v1774, %v1770
    %v1883 = vpack.c.b16 %v1775, %v1771
    %v1884 = vpack.c.b16 %v1776, %v1772
    %v1885 = vpack.c.b16 %v1781, %v1777
    %v1886 = vpack.c.b16 %v1782, %v1778
    %v1887 = vpack.c.b16 %v1783, %v1779
    %v1888 = vpack.c.b16 %v1784, %v1780
    %v1889 = vpack.c.b16 %v1789, %v1785
    %v1890 = vpack.c.b16 %v1790, %v1786
    %v1891 = vpack.c.b16 %v1791, %v1787
    %v1892 = vpack.c.b16 %v1792, %v1788
    %v1893 = vpack.c.b16 %v1797, %v1793
    %v1894 = vpack.c.b16 %v1798, %v1794
    %v1895 = vpack.c.b16 %v1799, %v1795
    %v1896 = vpack.c.b16 %v1800, %v1796
    %v1897 = vpack.c.b16 %v1805, %v1801
    %v1898 = vpack.c.b16 %v1806, %v1802
    %v1899 = vpack.c.b16 %v1807, %v1803
    %v1900 = vpack.c.b16 %v1808, %v1804
    %v1901 = vpack.c.b16 %v1813, %v1809
    %v1902 = vpack.c.b16 %v1814, %v1810
    %v1903 = vpack.c.b16 %v1815, %v1811
    %v1904 = vpack.c.b16 %v1816, %v1812
    %v1905 = vpack.c.b16 %v1821, %v1817
    %v1906 = vpack.c.b16 %v1822, %v1818
    %v1907 = vpack.c.b16 %v1823, %v1819
    %v1908 = vpack.c.b16 %v1824, %v1820
    %v1909 = vpack.c.b16 %v1829, %v1825
    %v1910 = vpack.c.b16 %v1830, %v1826
    %v1911 = vpack.c.b16 %v1831, %v1827
    %v1912 = vpack.c.b16 %v1832, %v1828
    %v1913 = vpack.c.b16 %v1837, %v1833
    %v1914 = vpack.c.b16 %v1838, %v1834
    %v1915 = vpack.c.b16 %v1839, %v1835
    %v1916 = vpack.c.b16 %v1840, %v1836
    %v1917 = vpack.c.b16 %v1845, %v1841
    %v1918 = vpack.c.b16 %v1846, %v1842
    %v1919 = vpack.c.b16 %v1847, %v1843
    %v1920 = vpack.c.b16 %v1848, %v1844
    %v1921 = vpack.c.b16 %v1853, %v1849
    %v1922 = vpack.c.b16 %v1854, %v1850
    %v1923 = vpack.c.b16 %v1855, %v1851
    %v1924 = vpack.c.b16 %v1856, %v1852
    %v1925 = vpack.c.b16 %v1861, %v1857
    %v1926 = vpack.c.b16 %v1862, %v1858
    %v1927 = vpack.c.b16 %v1863, %v1859
    %v1928 = vpack.c.b16 %v1864, %v1860
    %1993 = vmatprep.subr.bf16.mxu0 %v1894
    %1994 = vmatpush1.bf16.msra.mxu0 %v1893
    %1995 = vmatprep.subr.bf16.mxu0 %v1890
    %1996 = vmatpush1.bf16.msra.mxu0 %v1889
    %1997 = vmatprep.subr.bf16.mxu0 %v1886
    %1998 = vmatpush1.bf16.msra.mxu0 %v1885
    %1999 = vmatprep.subr.bf16.mxu0 %v1882
    %2000 = vmatpush1.bf16.msra.mxu0 %v1881
    %2001 = vmatprep.subr.bf16.mxu0 %v1878
    %2002 = vmatpush1.bf16.msra.mxu0 %v1877
    %2003 = vmatprep.subr.bf16.mxu0 %v1874
    %2004 = vmatpush1.bf16.msra.mxu0 %v1873
    %2005 = vmatprep.subr.bf16.mxu0 %v1870
    %2006 = vmatpush1.bf16.msra.mxu0 %v1869
    %2007 = vmatprep.subr.bf16.mxu0 %v1866
    %2008 = vmatpush1.bf16.msra.mxu0 %v1865
    %2009 = vmatprep.subr.bf16.mxu0 %v1926
    %2010 = vmatpush2.bf16.msra.mxu0 %v1925
    %2011 = vmatprep.subr.bf16.mxu0 %v1922
    %2012 = vmatpush2.bf16.msra.mxu0 %v1921
    %2013 = vmatprep.subr.bf16.mxu0 %v1918
    %2014 = vmatpush2.bf16.msra.mxu0 %v1917
    %2015 = vmatprep.subr.bf16.mxu0 %v1914
    %2016 = vmatpush2.bf16.msra.mxu0 %v1913
    %2017 = vmatprep.subr.bf16.mxu0 %v1910
    %2018 = vmatpush2.bf16.msra.mxu0 %v1909
    %2019 = vmatprep.subr.bf16.mxu0 %v1906
    %2020 = vmatpush2.bf16.msra.mxu0 %v1905
    %2021 = vmatprep.subr.bf16.mxu0 %v1902
    %2022 = vmatpush2.bf16.msra.mxu0 %v1901
    %2023 = vmatprep.subr.bf16.mxu0 %v1898
    %2024 = vmatpush2.bf16.msra.mxu0 %v1897
    %2025 = vmatprep.mubr.bf16.mxu0 %v203
    %2026 = vmatmul.mubr.bf16.gmra.mxu0 %v202
    %v2027 = vpop.f32.mrf.mxu0
    %v2028 = vadd.f32 0.0, %v2027
    %v2029 = vpop.f32.mrf.mxu0
    %v2030 = vadd.f32 0.0, %v2029
    %v2031 = vpop.f32.mrf.mxu0
    %v2032 = vadd.f32 0.0, %v2031
    %v2033 = vpop.f32.mrf.mxu0
    %v2034 = vadd.f32 0.0, %v2033
    %2035 = vdwg.mxu0
    %2036 = vmatprep.subr.bf16.mxu0 %v1896
    %2037 = vmatpush1.bf16.msra.mxu0 %v1895
    %2038 = vmatprep.subr.bf16.mxu0 %v1892
    %2039 = vmatpush1.bf16.msra.mxu0 %v1891
    %2040 = vmatprep.subr.bf16.mxu0 %v1888
    %2041 = vmatpush1.bf16.msra.mxu0 %v1887
    %2042 = vmatprep.subr.bf16.mxu0 %v1884
    %2043 = vmatpush1.bf16.msra.mxu0 %v1883
    %2044 = vmatprep.subr.bf16.mxu0 %v1880
    %2045 = vmatpush1.bf16.msra.mxu0 %v1879
    %2046 = vmatprep.subr.bf16.mxu0 %v1876
    %2047 = vmatpush1.bf16.msra.mxu0 %v1875
    %2048 = vmatprep.subr.bf16.mxu0 %v1872
    %2049 = vmatpush1.bf16.msra.mxu0 %v1871
    %2050 = vmatprep.subr.bf16.mxu0 %v1868
    %2051 = vmatpush1.bf16.msra.mxu0 %v1867
    %2052 = vmatprep.subr.bf16.mxu0 %v1928
    %2053 = vmatpush2.bf16.msra.mxu0 %v1927
    %2054 = vmatprep.subr.bf16.mxu0 %v1924
    %2055 = vmatpush2.bf16.msra.mxu0 %v1923
    %2056 = vmatprep.subr.bf16.mxu0 %v1920
    %2057 = vmatpush2.bf16.msra.mxu0 %v1919
    %2058 = vmatprep.subr.bf16.mxu0 %v1916
    %2059 = vmatpush2.bf16.msra.mxu0 %v1915
    %2060 = vmatprep.subr.bf16.mxu0 %v1912
    %2061 = vmatpush2.bf16.msra.mxu0 %v1911
    %2062 = vmatprep.subr.bf16.mxu0 %v1908
    %2063 = vmatpush2.bf16.msra.mxu0 %v1907
    %2064 = vmatprep.subr.bf16.mxu0 %v1904
    %2065 = vmatpush2.bf16.msra.mxu0 %v1903
    %2066 = vmatprep.subr.bf16.mxu0 %v1900
    %2067 = vmatpush2.bf16.msra.mxu0 %v1899
    %2068 = vmatprep.mubr.bf16.mxu0 %v203
    %2069 = vmatmul.mubr.bf16.gmra.mxu0 %v202
    %v2070 = vpop.f32.mrf.mxu0
    %v2071 = vadd.f32 0.0, %v2070
    %v2072 = vpop.f32.mrf.mxu0
    %v2073 = vadd.f32 0.0, %v2072
    %v2074 = vpop.f32.mrf.mxu0
    %v2075 = vadd.f32 0.0, %v2074
    %v2076 = vpop.f32.mrf.mxu0
    %v2077 = vadd.f32 0.0, %v2076
    %2078 = vdwg.mxu0
    %v2175 = vunpack.c.l.b16 %v1513
    %v2176 = vunpack.c.h.b16 %v1513
    %v2177 = vunpack.c.l.b16 %v1514
    %v2178 = vunpack.c.h.b16 %v1514
    %v2179 = vunpack.c.l.b16 %v1515
    %v2180 = vunpack.c.h.b16 %v1515
    %v2181 = vunpack.c.l.b16 %v1516
    %v2182 = vunpack.c.h.b16 %v1516
    %v2183 = vunpack.c.l.b16 %v1517
    %v2184 = vunpack.c.h.b16 %v1517
    %v2185 = vunpack.c.l.b16 %v1518
    %v2186 = vunpack.c.h.b16 %v1518
    %v2187 = vunpack.c.l.b16 %v1519
    %v2188 = vunpack.c.h.b16 %v1519
    %v2189 = vunpack.c.l.b16 %v1520
    %v2190 = vunpack.c.h.b16 %v1520
    %v2191 = vunpack.c.l.b16 %v1521
    %v2192 = vunpack.c.h.b16 %v1521
    %v2193 = vunpack.c.l.b16 %v1522
    %v2194 = vunpack.c.h.b16 %v1522
    %v2195 = vunpack.c.l.b16 %v1523
    %v2196 = vunpack.c.h.b16 %v1523
    %v2197 = vunpack.c.l.b16 %v1524
    %v2198 = vunpack.c.h.b16 %v1524
    %v2199 = vunpack.c.l.b16 %v1525
    %v2200 = vunpack.c.h.b16 %v1525
    %v2201 = vunpack.c.l.b16 %v1526
    %v2202 = vunpack.c.h.b16 %v1526
    %v2203 = vunpack.c.l.b16 %v1527
    %v2204 = vunpack.c.h.b16 %v1527
    %v2205 = vunpack.c.l.b16 %v1528
    %v2206 = vunpack.c.h.b16 %v1528
    %v2207 = vunpack.c.l.b16 %v1529
    %v2208 = vunpack.c.h.b16 %v1529
    %v2209 = vunpack.c.l.b16 %v1530
    %v2210 = vunpack.c.h.b16 %v1530
    %v2211 = vunpack.c.l.b16 %v1531
    %v2212 = vunpack.c.h.b16 %v1531
    %v2213 = vunpack.c.l.b16 %v1532
    %v2214 = vunpack.c.h.b16 %v1532
    %v2215 = vunpack.c.l.b16 %v1533
    %v2216 = vunpack.c.h.b16 %v1533
    %v2217 = vunpack.c.l.b16 %v1534
    %v2218 = vunpack.c.h.b16 %v1534
    %v2219 = vunpack.c.l.b16 %v1535
    %v2220 = vunpack.c.h.b16 %v1535
    %v2221 = vunpack.c.l.b16 %v1536
    %v2222 = vunpack.c.h.b16 %v1536
    %v2223 = vunpack.c.l.b16 %v1537
    %v2224 = vunpack.c.h.b16 %v1537
    %v2225 = vunpack.c.l.b16 %v1538
    %v2226 = vunpack.c.h.b16 %v1538
    %v2227 = vunpack.c.l.b16 %v1539
    %v2228 = vunpack.c.h.b16 %v1539
    %v2229 = vunpack.c.l.b16 %v1540
    %v2230 = vunpack.c.h.b16 %v1540
    %v2231 = vunpack.c.l.b16 %v1541
    %v2232 = vunpack.c.h.b16 %v1541
    %v2233 = vunpack.c.l.b16 %v1542
    %v2234 = vunpack.c.h.b16 %v1542
    %v2235 = vunpack.c.l.b16 %v1543
    %v2236 = vunpack.c.h.b16 %v1543
    %v2237 = vunpack.c.l.b16 %v1544
    %v2238 = vunpack.c.h.b16 %v1544
    %v2239 = vunpack.c.l.b16 %v1545
    %v2240 = vunpack.c.h.b16 %v1545
    %v2241 = vunpack.c.l.b16 %v1546
    %v2242 = vunpack.c.h.b16 %v1546
    %v2243 = vunpack.c.l.b16 %v1547
    %v2244 = vunpack.c.h.b16 %v1547
    %v2245 = vunpack.c.l.b16 %v1548
    %v2246 = vunpack.c.h.b16 %v1548
    %v2247 = vunpack.c.l.b16 %v1549
    %v2248 = vunpack.c.h.b16 %v1549
    %v2249 = vunpack.c.l.b16 %v1550
    %v2250 = vunpack.c.h.b16 %v1550
    %v2251 = vunpack.c.l.b16 %v1551
    %v2252 = vunpack.c.h.b16 %v1551
    %v2253 = vunpack.c.l.b16 %v1552
    %v2254 = vunpack.c.h.b16 %v1552
    %v2255 = vunpack.c.l.b16 %v1553
    %v2256 = vunpack.c.h.b16 %v1553
    %v2257 = vunpack.c.l.b16 %v1554
    %v2258 = vunpack.c.h.b16 %v1554
    %v2259 = vunpack.c.l.b16 %v1555
    %v2260 = vunpack.c.h.b16 %v1555
    %v2261 = vunpack.c.l.b16 %v1556
    %v2262 = vunpack.c.h.b16 %v1556
    %v2263 = vunpack.c.l.b16 %v1557
    %v2264 = vunpack.c.h.b16 %v1557
    %v2265 = vunpack.c.l.b16 %v1558
    %v2266 = vunpack.c.h.b16 %v1558
    %v2267 = vunpack.c.l.b16 %v1559
    %v2268 = vunpack.c.h.b16 %v1559
    %v2269 = vunpack.c.l.b16 %v1560
    %v2270 = vunpack.c.h.b16 %v1560
    %v2271 = vunpack.c.l.b16 %v1561
    %v2272 = vunpack.c.h.b16 %v1561
    %v2273 = vunpack.c.l.b16 %v1562
    %v2274 = vunpack.c.h.b16 %v1562
    %v2275 = vunpack.c.l.b16 %v1563
    %v2276 = vunpack.c.h.b16 %v1563
    %v2277 = vunpack.c.l.b16 %v1564
    %v2278 = vunpack.c.h.b16 %v1564
    %v2279 = vunpack.c.l.b16 %v1565
    %v2280 = vunpack.c.h.b16 %v1565
    %v2281 = vunpack.c.l.b16 %v1566
    %v2282 = vunpack.c.h.b16 %v1566
    %v2283 = vunpack.c.l.b16 %v1567
    %v2284 = vunpack.c.h.b16 %v1567
    %v2285 = vunpack.c.l.b16 %v1568
    %v2286 = vunpack.c.h.b16 %v1568
    %v2287 = vunpack.c.l.b16 %v1569
    %v2288 = vunpack.c.h.b16 %v1569
    %v2289 = vunpack.c.l.b16 %v1570
    %v2290 = vunpack.c.h.b16 %v1570
    %v2291 = vunpack.c.l.b16 %v1571
    %v2292 = vunpack.c.h.b16 %v1571
    %v2293 = vunpack.c.l.b16 %v1572
    %v2294 = vunpack.c.h.b16 %v1572
    %v2295 = vunpack.c.l.b16 %v1573
    %v2296 = vunpack.c.h.b16 %v1573
    %v2297 = vunpack.c.l.b16 %v1574
    %v2298 = vunpack.c.h.b16 %v1574
    %v2299 = vunpack.c.l.b16 %v1575
    %v2300 = vunpack.c.h.b16 %v1575
    %v2301 = vunpack.c.l.b16 %v1576
    %v2302 = vunpack.c.h.b16 %v1576
    %v2303 = vunpack.c.l.b16 %v1577
    %v2304 = vunpack.c.h.b16 %v1577
    %v2305 = vunpack.c.l.b16 %v1578
    %v2306 = vunpack.c.h.b16 %v1578
    %v2307 = vunpack.c.l.b16 %v1579
    %v2308 = vunpack.c.h.b16 %v1579
    %v2309 = vunpack.c.l.b16 %v1580
    %v2310 = vunpack.c.h.b16 %v1580
    %v2311 = vunpack.c.l.b16 %v1581
    %v2312 = vunpack.c.h.b16 %v1581
    %v2313 = vunpack.c.l.b16 %v1582
    %v2314 = vunpack.c.h.b16 %v1582
    %v2315 = vunpack.c.l.b16 %v1583
    %v2316 = vunpack.c.h.b16 %v1583
    %v2317 = vunpack.c.l.b16 %v1584
    %v2318 = vunpack.c.h.b16 %v1584
    %v2319 = vunpack.c.l.b16 %v1585
    %v2320 = vunpack.c.h.b16 %v1585
    %v2321 = vunpack.c.l.b16 %v1586
    %v2322 = vunpack.c.h.b16 %v1586
    %v2323 = vunpack.c.l.b16 %v1587
    %v2324 = vunpack.c.h.b16 %v1587
    %v2325 = vunpack.c.l.b16 %v1588
    %v2326 = vunpack.c.h.b16 %v1588
    %v2327 = vunpack.c.l.b16 %v1589
    %v2328 = vunpack.c.h.b16 %v1589
    %v2329 = vunpack.c.l.b16 %v1590
    %v2330 = vunpack.c.h.b16 %v1590
    %v2331 = vunpack.c.l.b16 %v1591
    %v2332 = vunpack.c.h.b16 %v1591
    %v2333 = vunpack.c.l.b16 %v1592
    %v2334 = vunpack.c.h.b16 %v1592
    %v2335 = vunpack.c.l.b16 %v1593
    %v2336 = vunpack.c.h.b16 %v1593
    %v2337 = vunpack.c.l.b16 %v1594
    %v2338 = vunpack.c.h.b16 %v1594
    %v2339 = vunpack.c.l.b16 %v1595
    %v2340 = vunpack.c.h.b16 %v1595
    %v2341 = vunpack.c.l.b16 %v1596
    %v2342 = vunpack.c.h.b16 %v1596
    %v2343 = vunpack.c.l.b16 %v1597
    %v2344 = vunpack.c.h.b16 %v1597
    %v2345 = vunpack.c.l.b16 %v1598
    %v2346 = vunpack.c.h.b16 %v1598
    %v2347 = vunpack.c.l.b16 %v1599
    %v2348 = vunpack.c.h.b16 %v1599
    %v2349 = vunpack.c.l.b16 %v1600
    %v2350 = vunpack.c.h.b16 %v1600
    %v2351 = vunpack.c.l.b16 %v1601
    %v2352 = vunpack.c.h.b16 %v1601
    %v2353 = vunpack.c.l.b16 %v1602
    %v2354 = vunpack.c.h.b16 %v1602
    %v2355 = vunpack.c.l.b16 %v1603
    %v2356 = vunpack.c.h.b16 %v1603
    %v2357 = vunpack.c.l.b16 %v1604
    %v2358 = vunpack.c.h.b16 %v1604
    %v2359 = vunpack.c.l.b16 %v1605
    %v2360 = vunpack.c.h.b16 %v1605
    %v2361 = vunpack.c.l.b16 %v1606
    %v2362 = vunpack.c.h.b16 %v1606
    %v2363 = vunpack.c.l.b16 %v1607
    %v2364 = vunpack.c.h.b16 %v1607
    %v2365 = vunpack.c.l.b16 %v1608
    %v2366 = vunpack.c.h.b16 %v1608
    %v2367 = vpack.c.b16 %v2179, %v2175
    %v2368 = vpack.c.b16 %v2180, %v2176
    %v2369 = vpack.c.b16 %v2181, %v2177
    %v2370 = vpack.c.b16 %v2182, %v2178
    %v2371 = vpack.c.b16 %v2187, %v2183
    %v2372 = vpack.c.b16 %v2188, %v2184
    %v2373 = vpack.c.b16 %v2189, %v2185
    %v2374 = vpack.c.b16 %v2190, %v2186
    %v2375 = vpack.c.b16 %v2195, %v2191
    %v2376 = vpack.c.b16 %v2196, %v2192
    %v2377 = vpack.c.b16 %v2197, %v2193
    %v2378 = vpack.c.b16 %v2198, %v2194
    %v2379 = vpack.c.b16 %v2203, %v2199
    %v2380 = vpack.c.b16 %v2204, %v2200
    %v2381 = vpack.c.b16 %v2205, %v2201
    %v2382 = vpack.c.b16 %v2206, %v2202
    %v2383 = vpack.c.b16 %v2211, %v2207
    %v2384 = vpack.c.b16 %v2212, %v2208
    %v2385 = vpack.c.b16 %v2213, %v2209
    %v2386 = vpack.c.b16 %v2214, %v2210
    %v2387 = vpack.c.b16 %v2219, %v2215
    %v2388 = vpack.c.b16 %v2220, %v2216
    %v2389 = vpack.c.b16 %v2221, %v2217
    %v2390 = vpack.c.b16 %v2222, %v2218
    %v2391 = vpack.c.b16 %v2227, %v2223
    %v2392 = vpack.c.b16 %v2228, %v2224
    %v2393 = vpack.c.b16 %v2229, %v2225
    %v2394 = vpack.c.b16 %v2230, %v2226
    %v2395 = vpack.c.b16 %v2235, %v2231
    %v2396 = vpack.c.b16 %v2236, %v2232
    %v2397 = vpack.c.b16 %v2237, %v2233
    %v2398 = vpack.c.b16 %v2238, %v2234
    %v2399 = vpack.c.b16 %v2243, %v2239
    %v2400 = vpack.c.b16 %v2244, %v2240
    %v2401 = vpack.c.b16 %v2245, %v2241
    %v2402 = vpack.c.b16 %v2246, %v2242
    %v2403 = vpack.c.b16 %v2251, %v2247
    %v2404 = vpack.c.b16 %v2252, %v2248
    %v2405 = vpack.c.b16 %v2253, %v2249
    %v2406 = vpack.c.b16 %v2254, %v2250
    %v2407 = vpack.c.b16 %v2259, %v2255
    %v2408 = vpack.c.b16 %v2260, %v2256
    %v2409 = vpack.c.b16 %v2261, %v2257
    %v2410 = vpack.c.b16 %v2262, %v2258
    %v2411 = vpack.c.b16 %v2267, %v2263
    %v2412 = vpack.c.b16 %v2268, %v2264
    %v2413 = vpack.c.b16 %v2269, %v2265
    %v2414 = vpack.c.b16 %v2270, %v2266
    %v2415 = vpack.c.b16 %v2275, %v2271
    %v2416 = vpack.c.b16 %v2276, %v2272
    %v2417 = vpack.c.b16 %v2277, %v2273
    %v2418 = vpack.c.b16 %v2278, %v2274
    %v2419 = vpack.c.b16 %v2283, %v2279
    %v2420 = vpack.c.b16 %v2284, %v2280
    %v2421 = vpack.c.b16 %v2285, %v2281
    %v2422 = vpack.c.b16 %v2286, %v2282
    %v2423 = vpack.c.b16 %v2291, %v2287
    %v2424 = vpack.c.b16 %v2292, %v2288
    %v2425 = vpack.c.b16 %v2293, %v2289
    %v2426 = vpack.c.b16 %v2294, %v2290
    %v2427 = vpack.c.b16 %v2299, %v2295
    %v2428 = vpack.c.b16 %v2300, %v2296
    %v2429 = vpack.c.b16 %v2301, %v2297
    %v2430 = vpack.c.b16 %v2302, %v2298
    %v2431 = vpack.c.b16 %v2307, %v2303
    %v2432 = vpack.c.b16 %v2308, %v2304
    %v2433 = vpack.c.b16 %v2309, %v2305
    %v2434 = vpack.c.b16 %v2310, %v2306
    %v2435 = vpack.c.b16 %v2315, %v2311
    %v2436 = vpack.c.b16 %v2316, %v2312
    %v2437 = vpack.c.b16 %v2317, %v2313
    %v2438 = vpack.c.b16 %v2318, %v2314
    %v2439 = vpack.c.b16 %v2323, %v2319
    %v2440 = vpack.c.b16 %v2324, %v2320
    %v2441 = vpack.c.b16 %v2325, %v2321
    %v2442 = vpack.c.b16 %v2326, %v2322
    %v2443 = vpack.c.b16 %v2331, %v2327
    %v2444 = vpack.c.b16 %v2332, %v2328
    %v2445 = vpack.c.b16 %v2333, %v2329
    %v2446 = vpack.c.b16 %v2334, %v2330
    %v2447 = vpack.c.b16 %v2339, %v2335
    %v2448 = vpack.c.b16 %v2340, %v2336
    %v2449 = vpack.c.b16 %v2341, %v2337
    %v2450 = vpack.c.b16 %v2342, %v2338
    %v2451 = vpack.c.b16 %v2347, %v2343
    %v2452 = vpack.c.b16 %v2348, %v2344
    %v2453 = vpack.c.b16 %v2349, %v2345
    %v2454 = vpack.c.b16 %v2350, %v2346
    %v2455 = vpack.c.b16 %v2355, %v2351
    %v2456 = vpack.c.b16 %v2356, %v2352
    %v2457 = vpack.c.b16 %v2357, %v2353
    %v2458 = vpack.c.b16 %v2358, %v2354
    %v2459 = vpack.c.b16 %v2363, %v2359
    %v2460 = vpack.c.b16 %v2364, %v2360
    %v2461 = vpack.c.b16 %v2365, %v2361
    %v2462 = vpack.c.b16 %v2366, %v2362
    %2559 = vmatprep.subr.bf16.mxu0 %v2396
    %2560 = vmatpush1.bf16.msra.mxu0 %v2395
    %2561 = vmatprep.subr.bf16.mxu0 %v2392
    %2562 = vmatpush1.bf16.msra.mxu0 %v2391
    %2563 = vmatprep.subr.bf16.mxu0 %v2388
    %2564 = vmatpush1.bf16.msra.mxu0 %v2387
    %2565 = vmatprep.subr.bf16.mxu0 %v2384
    %2566 = vmatpush1.bf16.msra.mxu0 %v2383
    %2567 = vmatprep.subr.bf16.mxu0 %v2380
    %2568 = vmatpush1.bf16.msra.mxu0 %v2379
    %2569 = vmatprep.subr.bf16.mxu0 %v2376
    %2570 = vmatpush1.bf16.msra.mxu0 %v2375
    %2571 = vmatprep.subr.bf16.mxu0 %v2372
    %2572 = vmatpush1.bf16.msra.mxu0 %v2371
    %2573 = vmatprep.subr.bf16.mxu0 %v2368
    %2574 = vmatpush1.bf16.msra.mxu0 %v2367
    %2575 = vmatprep.subr.bf16.mxu0 %v2428
    %2576 = vmatpush2.bf16.msra.mxu0 %v2427
    %2577 = vmatprep.subr.bf16.mxu0 %v2424
    %2578 = vmatpush2.bf16.msra.mxu0 %v2423
    %2579 = vmatprep.subr.bf16.mxu0 %v2420
    %2580 = vmatpush2.bf16.msra.mxu0 %v2419
    %2581 = vmatprep.subr.bf16.mxu0 %v2416
    %2582 = vmatpush2.bf16.msra.mxu0 %v2415
    %2583 = vmatprep.subr.bf16.mxu0 %v2412
    %2584 = vmatpush2.bf16.msra.mxu0 %v2411
    %2585 = vmatprep.subr.bf16.mxu0 %v2408
    %2586 = vmatpush2.bf16.msra.mxu0 %v2407
    %2587 = vmatprep.subr.bf16.mxu0 %v2404
    %2588 = vmatpush2.bf16.msra.mxu0 %v2403
    %2589 = vmatprep.subr.bf16.mxu0 %v2400
    %2590 = vmatpush2.bf16.msra.mxu0 %v2399
    %2591 = vmatprep.mubr.bf16.mxu0 %v1511
    %2592 = vmatmul.mubr.bf16.gmra.mxu0 %v1510
    %v2593 = vpop.f32.mrf.mxu0
    %v2594 = vadd.f32 %v2028, %v2593
    %v2595 = vpop.f32.mrf.mxu0
    %v2596 = vadd.f32 %v2030, %v2595
    %v2597 = vpop.f32.mrf.mxu0
    %v2598 = vadd.f32 %v2032, %v2597
    %v2599 = vpop.f32.mrf.mxu0
    %v2600 = vadd.f32 %v2034, %v2599
    %2601 = vdwg.mxu0
    %2602 = vmatprep.subr.bf16.mxu0 %v2460
    %2603 = vmatpush1.bf16.msra.mxu0 %v2459
    %2604 = vmatprep.subr.bf16.mxu0 %v2456
    %2605 = vmatpush1.bf16.msra.mxu0 %v2455
    %2606 = vmatprep.subr.bf16.mxu0 %v2452
    %2607 = vmatpush1.bf16.msra.mxu0 %v2451
    %2608 = vmatprep.subr.bf16.mxu0 %v2448
    %2609 = vmatpush1.bf16.msra.mxu0 %v2447
    %2610 = vmatprep.subr.bf16.mxu0 %v2444
    %2611 = vmatpush1.bf16.msra.mxu0 %v2443
    %2612 = vmatprep.subr.bf16.mxu0 %v2440
    %2613 = vmatpush1.bf16.msra.mxu0 %v2439
    %2614 = vmatprep.subr.bf16.mxu0 %v2436
    %2615 = vmatpush1.bf16.msra.mxu0 %v2435
    %2616 = vmatprep.subr.bf16.mxu0 %v2432
    %2617 = vmatpush1.bf16.msra.mxu0 %v2431
    %2618 = vmatprep.subr.bf16.mxu0 0
    %2619 = vmatpush2.bf16.msra.mxu0 0
    %2620 = vmatprep.subr.bf16.mxu0 0
    %2621 = vmatpush2.bf16.msra.mxu0 0
    %2622 = vmatprep.subr.bf16.mxu0 0
    %2623 = vmatpush2.bf16.msra.mxu0 0
    %2624 = vmatprep.subr.bf16.mxu0 0
    %2625 = vmatpush2.bf16.msra.mxu0 0
    %2626 = vmatprep.subr.bf16.mxu0 0
    %2627 = vmatpush2.bf16.msra.mxu0 0
    %2628 = vmatprep.subr.bf16.mxu0 0
    %2629 = vmatpush2.bf16.msra.mxu0 0
    %2630 = vmatprep.subr.bf16.mxu0 0
    %2631 = vmatpush2.bf16.msra.mxu0 0
    %2632 = vmatprep.subr.bf16.mxu0 0
    %2633 = vmatpush2.bf16.msra.mxu0 0
    %2634 = vmatprep.mubr.bf16.mxu0 0
    %2635 = vmatmul.mubr.bf16.gmra.mxu0 %v1512
    %v2636 = vpop.f32.mrf.mxu0
    %v2637 = vadd.f32 %v2594, %v2636
    %v2638 = vpop.f32.mrf.mxu0
    %v2639 = vadd.f32 %v2596, %v2638
    %v2640 = vpop.f32.mrf.mxu0
    %v2641 = vadd.f32 %v2598, %v2640
    %v2642 = vpop.f32.mrf.mxu0
    %v2643 = vadd.f32 %v2600, %v2642
    %2644 = vdwg.mxu0
    %2645 = vmatprep.subr.bf16.mxu0 %v2398
    %2646 = vmatpush1.bf16.msra.mxu0 %v2397
    %2647 = vmatprep.subr.bf16.mxu0 %v2394
    %2648 = vmatpush1.bf16.msra.mxu0 %v2393
    %2649 = vmatprep.subr.bf16.mxu0 %v2390
    %2650 = vmatpush1.bf16.msra.mxu0 %v2389
    %2651 = vmatprep.subr.bf16.mxu0 %v2386
    %2652 = vmatpush1.bf16.msra.mxu0 %v2385
    %2653 = vmatprep.subr.bf16.mxu0 %v2382
    %2654 = vmatpush1.bf16.msra.mxu0 %v2381
    %2655 = vmatprep.subr.bf16.mxu0 %v2378
    %2656 = vmatpush1.bf16.msra.mxu0 %v2377
    %2657 = vmatprep.subr.bf16.mxu0 %v2374
    %2658 = vmatpush1.bf16.msra.mxu0 %v2373
    %2659 = vmatprep.subr.bf16.mxu0 %v2370
    %2660 = vmatpush1.bf16.msra.mxu0 %v2369
    %2661 = vmatprep.subr.bf16.mxu0 %v2430
    %2662 = vmatpush2.bf16.msra.mxu0 %v2429
    %2663 = vmatprep.subr.bf16.mxu0 %v2426
    %2664 = vmatpush2.bf16.msra.mxu0 %v2425
    %2665 = vmatprep.subr.bf16.mxu0 %v2422
    %2666 = vmatpush2.bf16.msra.mxu0 %v2421
    %2667 = vmatprep.subr.bf16.mxu0 %v2418
    %2668 = vmatpush2.bf16.msra.mxu0 %v2417
    %2669 = vmatprep.subr.bf16.mxu0 %v2414
    %2670 = vmatpush2.bf16.msra.mxu0 %v2413
    %2671 = vmatprep.subr.bf16.mxu0 %v2410
    %2672 = vmatpush2.bf16.msra.mxu0 %v2409
    %2673 = vmatprep.subr.bf16.mxu0 %v2406
    %2674 = vmatpush2.bf16.msra.mxu0 %v2405
    %2675 = vmatprep.subr.bf16.mxu0 %v2402
    %2676 = vmatpush2.bf16.msra.mxu0 %v2401
    %2677 = vmatprep.mubr.bf16.mxu0 %v1511
    %2678 = vmatmul.mubr.bf16.gmra.mxu0 %v1510
    %v2679 = vpop.f32.mrf.mxu0
    %v2680 = vadd.f32 %v2071, %v2679
    %v2681 = vpop.f32.mrf.mxu0
    %v2682 = vadd.f32 %v2073, %v2681
    %v2683 = vpop.f32.mrf.mxu0
    %v2684 = vadd.f32 %v2075, %v2683
    %v2685 = vpop.f32.mrf.mxu0
    %v2686 = vadd.f32 %v2077, %v2685
    %2687 = vdwg.mxu0
    %2688 = vmatprep.subr.bf16.mxu0 %v2462
    %2689 = vmatpush1.bf16.msra.mxu0 %v2461
    %2690 = vmatprep.subr.bf16.mxu0 %v2458
    %2691 = vmatpush1.bf16.msra.mxu0 %v2457
    %2692 = vmatprep.subr.bf16.mxu0 %v2454
    %2693 = vmatpush1.bf16.msra.mxu0 %v2453
    %2694 = vmatprep.subr.bf16.mxu0 %v2450
    %2695 = vmatpush1.bf16.msra.mxu0 %v2449
    %2696 = vmatprep.subr.bf16.mxu0 %v2446
    %2697 = vmatpush1.bf16.msra.mxu0 %v2445
    %2698 = vmatprep.subr.bf16.mxu0 %v2442
    %2699 = vmatpush1.bf16.msra.mxu0 %v2441
    %2700 = vmatprep.subr.bf16.mxu0 %v2438
    %2701 = vmatpush1.bf16.msra.mxu0 %v2437
    %2702 = vmatprep.subr.bf16.mxu0 %v2434
    %2703 = vmatpush1.bf16.msra.mxu0 %v2433
    %2704 = vmatprep.subr.bf16.mxu0 0
    %2705 = vmatpush2.bf16.msra.mxu0 0
    %2706 = vmatprep.subr.bf16.mxu0 0
    %2707 = vmatpush2.bf16.msra.mxu0 0
    %2708 = vmatprep.subr.bf16.mxu0 0
    %2709 = vmatpush2.bf16.msra.mxu0 0
    %2710 = vmatprep.subr.bf16.mxu0 0
    %2711 = vmatpush2.bf16.msra.mxu0 0
    %2712 = vmatprep.subr.bf16.mxu0 0
    %2713 = vmatpush2.bf16.msra.mxu0 0
    %2714 = vmatprep.subr.bf16.mxu0 0
    %2715 = vmatpush2.bf16.msra.mxu0 0
    %2716 = vmatprep.subr.bf16.mxu0 0
    %2717 = vmatpush2.bf16.msra.mxu0 0
    %2718 = vmatprep.subr.bf16.mxu0 0
    %2719 = vmatpush2.bf16.msra.mxu0 0
    %2720 = vmatprep.mubr.bf16.mxu0 0
    %2721 = vmatmul.mubr.bf16.gmra.mxu0 %v1512
    %v2722 = vpop.f32.mrf.mxu0
    %v2723 = vadd.f32 %v2680, %v2722
    %v2724 = vpop.f32.mrf.mxu0
    %v2725 = vadd.f32 %v2682, %v2724
    %v2726 = vpop.f32.mrf.mxu0
    %v2727 = vadd.f32 %v2684, %v2726
    %v2728 = vpop.f32.mrf.mxu0
    %v2729 = vadd.f32 %v2686, %v2728
    %2730 = vdwg.mxu0
    %v2731 = vld [vmem:[%s9] sm:$0xf]
    %v2733 = vlaneseq
    %v2734 = vshrl.u32 %v2733, 7
    %v2735 = vsub.s32 0, %v2734
    %v2736 = vrot.slane %v2731, %v2735
    %v2737 = vlaneseq
    %v2738 = vshrl.u32 %v2737, 7
    %v2739 = vsub.s32 1, %v2738
    %v2740 = vrot.slane %v2731, %v2739
    %v2741 = vlaneseq
    %v2742 = vshrl.u32 %v2741, 7
    %v2743 = vsub.s32 2, %v2742
    %v2744 = vrot.slane %v2731, %v2743
    %v2745 = vlaneseq
    %v2746 = vshrl.u32 %v2745, 7
    %v2747 = vsub.s32 3, %v2746
    %v2748 = vrot.slane %v2731, %v2747
    %v2753 = vadd.f32 %v2637, %v2736
    %v2754 = vadd.f32 %v2639, %v2740
    %v2755 = vadd.f32 %v2723, %v2744
    %v2756 = vadd.f32 %v2725, %v2748
    %v2757 = vadd.f32 %v2641, %v2736
    %v2758 = vadd.f32 %v2643, %v2740
    %v2759 = vadd.f32 %v2727, %v2744
    %v2760 = vadd.f32 %v2729, %v2748
    %v2761 = vmax.f32 %v2753, 0.0
    %v2762 = vmax.f32 %v2754, 0.0
    %v2763 = vmax.f32 %v2755, 0.0
    %v2764 = vmax.f32 %v2756, 0.0
    %v2765 = vmax.f32 %v2757, 0.0
    %v2766 = vmax.f32 %v2758, 0.0
    %v2767 = vmax.f32 %v2759, 0.0
    %v2768 = vmax.f32 %v2760, 0.0
    %v2769 = vpack.c.bf16 %v2765, %v2761
    %v2770 = vpack.c.bf16 %v2766, %v2762
    %v2771 = vpack.c.bf16 %v2767, %v2763
    %v2772 = vpack.c.bf16 %v2768, %v2764
    %v2773 = vld [vmem:[#allocation14] sm:$0xff]
    %v2774 = vld [vmem:[#allocation14 + $0x8] sm:$0xf]
    %v2775 = vld [vmem:[#allocation14 + $0xc] sm:$0xff]
    %v2776 = vld [vmem:[#allocation14 + $0x14] sm:$0xf]
    %v2777 = vld [vmem:[#allocation14 + $0x18] sm:$0xff]
    %v2778 = vld [vmem:[#allocation14 + $0x20] sm:$0xf]
    %v2779 = vld [vmem:[#allocation14 + $0x24] sm:$0xff]
    %v2780 = vld [vmem:[#allocation14 + $0x2c] sm:$0xf]
    %v2781 = vld [vmem:[#allocation14 + $0x30] sm:$0xff]
    %v2782 = vld [vmem:[#allocation14 + $0x38] sm:$0xf]
    %v2783 = vld [vmem:[#allocation14 + $0x3c] sm:$0xff]
    %v2784 = vld [vmem:[#allocation14 + $0x44] sm:$0xf]
    %v2785 = vld [vmem:[#allocation14 + $0x48] sm:$0xff]
    %v2786 = vld [vmem:[#allocation14 + $0x50] sm:$0xf]
    %v2787 = vld [vmem:[#allocation14 + $0x54] sm:$0xff]
    %v2788 = vld [vmem:[#allocation14 + $0x5c] sm:$0xf]
    %v2789 = vld [vmem:[#allocation14 + $0x60] sm:$0xff]
    %v2790 = vld [vmem:[#allocation14 + $0x68] sm:$0xf]
    %v2791 = vld [vmem:[#allocation14 + $0x6c] sm:$0xff]
    %v2792 = vld [vmem:[#allocation14 + $0x74] sm:$0xf]
    %v2793 = vld [vmem:[#allocation14 + $0x78] sm:$0xff]
    %v2794 = vld [vmem:[#allocation14 + $0x80] sm:$0xf]
    %v2795 = vld [vmem:[#allocation14 + $0x84] sm:$0xff]
    %v2796 = vld [vmem:[#allocation14 + $0x8c] sm:$0xf]
    %v2797 = vld [vmem:[#allocation14 + $0x90] sm:$0xff]
    %v2798 = vld [vmem:[#allocation14 + $0x98] sm:$0xf]
    %v2799 = vld [vmem:[#allocation14 + $0x9c] sm:$0xff]
    %v2800 = vld [vmem:[#allocation14 + $0xa4] sm:$0xf]
    %v2801 = vld [vmem:[#allocation14 + $0xa8] sm:$0xff]
    %v2802 = vld [vmem:[#allocation14 + $0xb0] sm:$0xf]
    %v2803 = vld [vmem:[#allocation14 + $0xb4] sm:$0xff]
    %v2804 = vld [vmem:[#allocation14 + $0xbc] sm:$0xf]
    %v2805 = vld [vmem:[#allocation14 + $0xc0] sm:$0xff]
    %v2806 = vld [vmem:[#allocation14 + $0xc8] sm:$0xf]
    %v2807 = vld [vmem:[#allocation14 + $0xcc] sm:$0xff]
    %v2808 = vld [vmem:[#allocation14 + $0xd4] sm:$0xf]
    %v2809 = vld [vmem:[#allocation14 + $0xd8] sm:$0xff]
    %v2810 = vld [vmem:[#allocation14 + $0xe0] sm:$0xf]
    %v2811 = vld [vmem:[#allocation14 + $0xe4] sm:$0xff]
    %v2812 = vld [vmem:[#allocation14 + $0xec] sm:$0xf]
    %v2813 = vld [vmem:[#allocation14 + $0xf0] sm:$0xff]
    %v2814 = vld [vmem:[#allocation14 + $0xf8] sm:$0xf]
    %v2815 = vld [vmem:[#allocation14 + $0xfc] sm:$0xff]
    %v2816 = vld [vmem:[#allocation14 + $0x104] sm:$0xf]
    %v2817 = vld [vmem:[#allocation14 + $0x108] sm:$0xff]
    %v2818 = vld [vmem:[#allocation14 + $0x110] sm:$0xf]
    %v2819 = vld [vmem:[#allocation14 + $0x114] sm:$0xff]
    %v2820 = vld [vmem:[#allocation14 + $0x11c] sm:$0xf]
    %v2821 = vld [vmem:[#allocation14 + $0x120] sm:$0xff]
    %v2822 = vld [vmem:[#allocation14 + $0x128] sm:$0xf]
    %v2823 = vld [vmem:[#allocation14 + $0x12c] sm:$0xff]
    %v2824 = vld [vmem:[#allocation14 + $0x134] sm:$0xf]
    %v2825 = vld [vmem:[#allocation14 + $0x138] sm:$0xff]
    %v2826 = vld [vmem:[#allocation14 + $0x140] sm:$0xf]
    %v2827 = vld [vmem:[#allocation14 + $0x144] sm:$0xff]
    %v2828 = vld [vmem:[#allocation14 + $0x14c] sm:$0xf]
    %v2829 = vld [vmem:[#allocation14 + $0x150] sm:$0xff]
    %v2830 = vld [vmem:[#allocation14 + $0x158] sm:$0xf]
    %v2831 = vld [vmem:[#allocation14 + $0x15c] sm:$0xff]
    %v2832 = vld [vmem:[#allocation14 + $0x164] sm:$0xf]
    %v2833 = vld [vmem:[#allocation14 + $0x168] sm:$0xff]
    %v2834 = vld [vmem:[#allocation14 + $0x170] sm:$0xf]
    %v2835 = vld [vmem:[#allocation14 + $0x174] sm:$0xff]
    %v2836 = vld [vmem:[#allocation14 + $0x17c] sm:$0xf]
    %v2837 = vld [vmem:[#allocation14 + $0x180] sm:$0xff]
    %v2838 = vld [vmem:[#allocation14 + $0x188] sm:$0xf]
    %v2839 = vld [vmem:[#allocation14 + $0x18c] sm:$0xff]
    %v2840 = vld [vmem:[#allocation14 + $0x194] sm:$0xf]
    %v2841 = vld [vmem:[#allocation14 + $0x198] sm:$0xff]
    %v2842 = vld [vmem:[#allocation14 + $0x1a0] sm:$0xf]
    %v2843 = vld [vmem:[#allocation14 + $0x1a4] sm:$0xff]
    %v2844 = vld [vmem:[#allocation14 + $0x1ac] sm:$0xf]
    %v2845 = vld [vmem:[#allocation14 + $0x1b0] sm:$0xff]
    %v2846 = vld [vmem:[#allocation14 + $0x1b8] sm:$0xf]
    %v2847 = vld [vmem:[#allocation14 + $0x1bc] sm:$0xff]
    %v2848 = vld [vmem:[#allocation14 + $0x1c4] sm:$0xf]
    %v2849 = vld [vmem:[#allocation14 + $0x1c8] sm:$0xff]
    %v2850 = vld [vmem:[#allocation14 + $0x1d0] sm:$0xf]
    %v2851 = vld [vmem:[#allocation14 + $0x1d4] sm:$0xff]
    %v2852 = vld [vmem:[#allocation14 + $0x1dc] sm:$0xf]
    %v2853 = vld [vmem:[#allocation14 + $0x1e0] sm:$0xff]
    %v2854 = vld [vmem:[#allocation14 + $0x1e8] sm:$0xf]
    %v2855 = vld [vmem:[#allocation14 + $0x1ec] sm:$0xff]
    %v2856 = vld [vmem:[#allocation14 + $0x1f4] sm:$0xf]
    %v2857 = vld [vmem:[#allocation14 + $0x1f8] sm:$0xff]
    %v2858 = vld [vmem:[#allocation14 + $0x200] sm:$0xf]
    %v2859 = vld [vmem:[#allocation14 + $0x204] sm:$0xff]
    %v2860 = vld [vmem:[#allocation14 + $0x20c] sm:$0xf]
    %v2861 = vld [vmem:[#allocation14 + $0x210] sm:$0xff]
    %v2862 = vld [vmem:[#allocation14 + $0x218] sm:$0xf]
    %v2863 = vld [vmem:[#allocation14 + $0x21c] sm:$0xff]
    %v2864 = vld [vmem:[#allocation14 + $0x224] sm:$0xf]
    %v2865 = vld [vmem:[#allocation14 + $0x228] sm:$0xff]
    %v2866 = vld [vmem:[#allocation14 + $0x230] sm:$0xf]
    %v2867 = vld [vmem:[#allocation14 + $0x234] sm:$0xff]
    %v2868 = vld [vmem:[#allocation14 + $0x23c] sm:$0xf]
    %v2869 = vld [vmem:[#allocation14 + $0x240] sm:$0xff]
    %v2870 = vld [vmem:[#allocation14 + $0x248] sm:$0xf]
    %v2871 = vld [vmem:[#allocation14 + $0x24c] sm:$0xff]
    %v2872 = vld [vmem:[#allocation14 + $0x254] sm:$0xf]
    %v2873 = vld [vmem:[#allocation14 + $0x258] sm:$0xff]
    %v2874 = vld [vmem:[#allocation14 + $0x260] sm:$0xf]
    %v2875 = vld [vmem:[#allocation14 + $0x264] sm:$0xff]
    %v2876 = vld [vmem:[#allocation14 + $0x26c] sm:$0xf]
    %v2877 = vld [vmem:[#allocation14 + $0x270] sm:$0xff]
    %v2878 = vld [vmem:[#allocation14 + $0x278] sm:$0xf]
    %v2879 = vld [vmem:[#allocation14 + $0x27c] sm:$0xff]
    %v2880 = vld [vmem:[#allocation14 + $0x284] sm:$0xf]
    %v2881 = vld [vmem:[#allocation14 + $0x288] sm:$0xff]
    %v2882 = vld [vmem:[#allocation14 + $0x290] sm:$0xf]
    %v2883 = vld [vmem:[#allocation14 + $0x294] sm:$0xff]
    %v2884 = vld [vmem:[#allocation14 + $0x29c] sm:$0xf]
    %v2885 = vld [vmem:[#allocation14 + $0x2a0] sm:$0xff]
    %v2886 = vld [vmem:[#allocation14 + $0x2a8] sm:$0xf]
    %v2887 = vld [vmem:[#allocation14 + $0x2ac] sm:$0xff]
    %v2888 = vld [vmem:[#allocation14 + $0x2b4] sm:$0xf]
    %v2889 = vld [vmem:[#allocation14 + $0x2b8] sm:$0xff]
    %v2890 = vld [vmem:[#allocation14 + $0x2c0] sm:$0xf]
    %v2891 = vld [vmem:[#allocation14 + $0x2c4] sm:$0xff]
    %v2892 = vld [vmem:[#allocation14 + $0x2cc] sm:$0xf]
    %v2893 = vld [vmem:[#allocation14 + $0x2d0] sm:$0xff]
    %v2894 = vld [vmem:[#allocation14 + $0x2d8] sm:$0xf]
    %v2895 = vld [vmem:[#allocation14 + $0x2dc] sm:$0xff]
    %v2896 = vld [vmem:[#allocation14 + $0x2e4] sm:$0xf]
    %v2897 = vld [vmem:[#allocation14 + $0x2e8] sm:$0xff]
    %v2898 = vld [vmem:[#allocation14 + $0x2f0] sm:$0xf]
    %v2899 = vld [vmem:[#allocation14 + $0x2f4] sm:$0xff]
    %v2900 = vld [vmem:[#allocation14 + $0x2fc] sm:$0xf]
    %v2901 = vld [vmem:[%s11] sm:$0x7]
    %v2903 = vlaneseq
    %v2904 = vshrl.u32 %v2903, 7
    %v2905 = vsub.s32 0, %v2904
    %v2906 = vrot.slane %v2901, %v2905
    %v2907 = vlaneseq
    %v2908 = vshrl.u32 %v2907, 7
    %v2909 = vsub.s32 1, %v2908
    %v2910 = vrot.slane %v2901, %v2909
    %v2911 = vlaneseq
    %v2912 = vshrl.u32 %v2911, 7
    %v2913 = vsub.s32 2, %v2912
    %v2914 = vrot.slane %v2901, %v2913
    %v3046 = vunpack.c.l.b16 %v2773
    %v3047 = vunpack.c.h.b16 %v2773
    %v3048 = vunpack.c.l.b16 %v2774
    %v3049 = vunpack.c.l.b16 %v2775
    %v3050 = vunpack.c.h.b16 %v2775
    %v3051 = vunpack.c.l.b16 %v2776
    %v3052 = vunpack.c.l.b16 %v2777
    %v3053 = vunpack.c.h.b16 %v2777
    %v3054 = vunpack.c.l.b16 %v2778
    %v3055 = vunpack.c.l.b16 %v2779
    %v3056 = vunpack.c.h.b16 %v2779
    %v3057 = vunpack.c.l.b16 %v2780
    %v3058 = vunpack.c.l.b16 %v2781
    %v3059 = vunpack.c.h.b16 %v2781
    %v3060 = vunpack.c.l.b16 %v2782
    %v3061 = vunpack.c.l.b16 %v2783
    %v3062 = vunpack.c.h.b16 %v2783
    %v3063 = vunpack.c.l.b16 %v2784
    %v3064 = vunpack.c.l.b16 %v2785
    %v3065 = vunpack.c.h.b16 %v2785
    %v3066 = vunpack.c.l.b16 %v2786
    %v3067 = vunpack.c.l.b16 %v2787
    %v3068 = vunpack.c.h.b16 %v2787
    %v3069 = vunpack.c.l.b16 %v2788
    %v3070 = vunpack.c.l.b16 %v2789
    %v3071 = vunpack.c.h.b16 %v2789
    %v3072 = vunpack.c.l.b16 %v2790
    %v3073 = vunpack.c.l.b16 %v2791
    %v3074 = vunpack.c.h.b16 %v2791
    %v3075 = vunpack.c.l.b16 %v2792
    %v3076 = vunpack.c.l.b16 %v2793
    %v3077 = vunpack.c.h.b16 %v2793
    %v3078 = vunpack.c.l.b16 %v2794
    %v3079 = vunpack.c.l.b16 %v2795
    %v3080 = vunpack.c.h.b16 %v2795
    %v3081 = vunpack.c.l.b16 %v2796
    %v3082 = vunpack.c.l.b16 %v2797
    %v3083 = vunpack.c.h.b16 %v2797
    %v3084 = vunpack.c.l.b16 %v2798
    %v3085 = vunpack.c.l.b16 %v2799
    %v3086 = vunpack.c.h.b16 %v2799
    %v3087 = vunpack.c.l.b16 %v2800
    %v3088 = vunpack.c.l.b16 %v2801
    %v3089 = vunpack.c.h.b16 %v2801
    %v3090 = vunpack.c.l.b16 %v2802
    %v3091 = vunpack.c.l.b16 %v2803
    %v3092 = vunpack.c.h.b16 %v2803
    %v3093 = vunpack.c.l.b16 %v2804
    %v3094 = vunpack.c.l.b16 %v2805
    %v3095 = vunpack.c.h.b16 %v2805
    %v3096 = vunpack.c.l.b16 %v2806
    %v3097 = vunpack.c.l.b16 %v2807
    %v3098 = vunpack.c.h.b16 %v2807
    %v3099 = vunpack.c.l.b16 %v2808
    %v3100 = vunpack.c.l.b16 %v2809
    %v3101 = vunpack.c.h.b16 %v2809
    %v3102 = vunpack.c.l.b16 %v2810
    %v3103 = vunpack.c.l.b16 %v2811
    %v3104 = vunpack.c.h.b16 %v2811
    %v3105 = vunpack.c.l.b16 %v2812
    %v3106 = vunpack.c.l.b16 %v2813
    %v3107 = vunpack.c.h.b16 %v2813
    %v3108 = vunpack.c.l.b16 %v2814
    %v3109 = vunpack.c.l.b16 %v2815
    %v3110 = vunpack.c.h.b16 %v2815
    %v3111 = vunpack.c.l.b16 %v2816
    %v3112 = vunpack.c.l.b16 %v2817
    %v3113 = vunpack.c.h.b16 %v2817
    %v3114 = vunpack.c.l.b16 %v2818
    %v3115 = vunpack.c.l.b16 %v2819
    %v3116 = vunpack.c.h.b16 %v2819
    %v3117 = vunpack.c.l.b16 %v2820
    %v3118 = vunpack.c.l.b16 %v2821
    %v3119 = vunpack.c.h.b16 %v2821
    %v3120 = vunpack.c.l.b16 %v2822
    %v3121 = vunpack.c.l.b16 %v2823
    %v3122 = vunpack.c.h.b16 %v2823
    %v3123 = vunpack.c.l.b16 %v2824
    %v3124 = vunpack.c.l.b16 %v2825
    %v3125 = vunpack.c.h.b16 %v2825
    %v3126 = vunpack.c.l.b16 %v2826
    %v3127 = vunpack.c.l.b16 %v2827
    %v3128 = vunpack.c.h.b16 %v2827
    %v3129 = vunpack.c.l.b16 %v2828
    %v3130 = vunpack.c.l.b16 %v2829
    %v3131 = vunpack.c.h.b16 %v2829
    %v3132 = vunpack.c.l.b16 %v2830
    %v3133 = vunpack.c.l.b16 %v2831
    %v3134 = vunpack.c.h.b16 %v2831
    %v3135 = vunpack.c.l.b16 %v2832
    %v3136 = vunpack.c.l.b16 %v2833
    %v3137 = vunpack.c.h.b16 %v2833
    %v3138 = vunpack.c.l.b16 %v2834
    %v3139 = vunpack.c.l.b16 %v2835
    %v3140 = vunpack.c.h.b16 %v2835
    %v3141 = vunpack.c.l.b16 %v2836
    %v3142 = vunpack.c.l.b16 %v2837
    %v3143 = vunpack.c.h.b16 %v2837
    %v3144 = vunpack.c.l.b16 %v2838
    %v3145 = vunpack.c.l.b16 %v2839
    %v3146 = vunpack.c.h.b16 %v2839
    %v3147 = vunpack.c.l.b16 %v2840
    %v3148 = vunpack.c.l.b16 %v2841
    %v3149 = vunpack.c.h.b16 %v2841
    %v3150 = vunpack.c.l.b16 %v2842
    %v3151 = vunpack.c.l.b16 %v2843
    %v3152 = vunpack.c.h.b16 %v2843
    %v3153 = vunpack.c.l.b16 %v2844
    %v3154 = vunpack.c.l.b16 %v2845
    %v3155 = vunpack.c.h.b16 %v2845
    %v3156 = vunpack.c.l.b16 %v2846
    %v3157 = vunpack.c.l.b16 %v2847
    %v3158 = vunpack.c.h.b16 %v2847
    %v3159 = vunpack.c.l.b16 %v2848
    %v3160 = vunpack.c.l.b16 %v2849
    %v3161 = vunpack.c.h.b16 %v2849
    %v3162 = vunpack.c.l.b16 %v2850
    %v3163 = vunpack.c.l.b16 %v2851
    %v3164 = vunpack.c.h.b16 %v2851
    %v3165 = vunpack.c.l.b16 %v2852
    %v3166 = vunpack.c.l.b16 %v2853
    %v3167 = vunpack.c.h.b16 %v2853
    %v3168 = vunpack.c.l.b16 %v2854
    %v3169 = vunpack.c.l.b16 %v2855
    %v3170 = vunpack.c.h.b16 %v2855
    %v3171 = vunpack.c.l.b16 %v2856
    %v3172 = vunpack.c.l.b16 %v2857
    %v3173 = vunpack.c.h.b16 %v2857
    %v3174 = vunpack.c.l.b16 %v2858
    %v3175 = vunpack.c.l.b16 %v2859
    %v3176 = vunpack.c.h.b16 %v2859
    %v3177 = vunpack.c.l.b16 %v2860
    %v3178 = vunpack.c.l.b16 %v2861
    %v3179 = vunpack.c.h.b16 %v2861
    %v3180 = vunpack.c.l.b16 %v2862
    %v3181 = vunpack.c.l.b16 %v2863
    %v3182 = vunpack.c.h.b16 %v2863
    %v3183 = vunpack.c.l.b16 %v2864
    %v3184 = vunpack.c.l.b16 %v2865
    %v3185 = vunpack.c.h.b16 %v2865
    %v3186 = vunpack.c.l.b16 %v2866
    %v3187 = vunpack.c.l.b16 %v2867
    %v3188 = vunpack.c.h.b16 %v2867
    %v3189 = vunpack.c.l.b16 %v2868
    %v3190 = vunpack.c.l.b16 %v2869
    %v3191 = vunpack.c.h.b16 %v2869
    %v3192 = vunpack.c.l.b16 %v2870
    %v3193 = vunpack.c.l.b16 %v2871
    %v3194 = vunpack.c.h.b16 %v2871
    %v3195 = vunpack.c.l.b16 %v2872
    %v3196 = vunpack.c.l.b16 %v2873
    %v3197 = vunpack.c.h.b16 %v2873
    %v3198 = vunpack.c.l.b16 %v2874
    %v3199 = vunpack.c.l.b16 %v2875
    %v3200 = vunpack.c.h.b16 %v2875
    %v3201 = vunpack.c.l.b16 %v2876
    %v3202 = vunpack.c.l.b16 %v2877
    %v3203 = vunpack.c.h.b16 %v2877
    %v3204 = vunpack.c.l.b16 %v2878
    %v3205 = vunpack.c.l.b16 %v2879
    %v3206 = vunpack.c.h.b16 %v2879
    %v3207 = vunpack.c.l.b16 %v2880
    %v3208 = vunpack.c.l.b16 %v2881
    %v3209 = vunpack.c.h.b16 %v2881
    %v3210 = vunpack.c.l.b16 %v2882
    %v3211 = vunpack.c.l.b16 %v2883
    %v3212 = vunpack.c.h.b16 %v2883
    %v3213 = vunpack.c.l.b16 %v2884
    %v3214 = vunpack.c.l.b16 %v2885
    %v3215 = vunpack.c.h.b16 %v2885
    %v3216 = vunpack.c.l.b16 %v2886
    %v3217 = vunpack.c.l.b16 %v2887
    %v3218 = vunpack.c.h.b16 %v2887
    %v3219 = vunpack.c.l.b16 %v2888
    %v3220 = vunpack.c.l.b16 %v2889
    %v3221 = vunpack.c.h.b16 %v2889
    %v3222 = vunpack.c.l.b16 %v2890
    %v3223 = vunpack.c.l.b16 %v2891
    %v3224 = vunpack.c.h.b16 %v2891
    %v3225 = vunpack.c.l.b16 %v2892
    %v3226 = vunpack.c.l.b16 %v2893
    %v3227 = vunpack.c.h.b16 %v2893
    %v3228 = vunpack.c.l.b16 %v2894
    %v3229 = vunpack.c.l.b16 %v2895
    %v3230 = vunpack.c.h.b16 %v2895
    %v3231 = vunpack.c.l.b16 %v2896
    %v3232 = vunpack.c.l.b16 %v2897
    %v3233 = vunpack.c.h.b16 %v2897
    %v3234 = vunpack.c.l.b16 %v2898
    %v3235 = vunpack.c.l.b16 %v2899
    %v3236 = vunpack.c.h.b16 %v2899
    %v3237 = vunpack.c.l.b16 %v2900
    %v3238 = vpack.c.b16 %v3049, %v3046
    %v3239 = vpack.c.b16 %v3050, %v3047
    %v3240 = vpack.c.b16 %v3051, %v3048
    %v3241 = vpack.c.b16 %v3055, %v3052
    %v3242 = vpack.c.b16 %v3056, %v3053
    %v3243 = vpack.c.b16 %v3057, %v3054
    %v3244 = vpack.c.b16 %v3061, %v3058
    %v3245 = vpack.c.b16 %v3062, %v3059
    %v3246 = vpack.c.b16 %v3063, %v3060
    %v3247 = vpack.c.b16 %v3067, %v3064
    %v3248 = vpack.c.b16 %v3068, %v3065
    %v3249 = vpack.c.b16 %v3069, %v3066
    %v3250 = vpack.c.b16 %v3073, %v3070
    %v3251 = vpack.c.b16 %v3074, %v3071
    %v3252 = vpack.c.b16 %v3075, %v3072
    %v3253 = vpack.c.b16 %v3079, %v3076
    %v3254 = vpack.c.b16 %v3080, %v3077
    %v3255 = vpack.c.b16 %v3081, %v3078
    %v3256 = vpack.c.b16 %v3085, %v3082
    %v3257 = vpack.c.b16 %v3086, %v3083
    %v3258 = vpack.c.b16 %v3087, %v3084
    %v3259 = vpack.c.b16 %v3091, %v3088
    %v3260 = vpack.c.b16 %v3092, %v3089
    %v3261 = vpack.c.b16 %v3093, %v3090
    %v3262 = vpack.c.b16 %v3097, %v3094
    %v3263 = vpack.c.b16 %v3098, %v3095
    %v3264 = vpack.c.b16 %v3099, %v3096
    %v3265 = vpack.c.b16 %v3103, %v3100
    %v3266 = vpack.c.b16 %v3104, %v3101
    %v3267 = vpack.c.b16 %v3105, %v3102
    %v3268 = vpack.c.b16 %v3109, %v3106
    %v3269 = vpack.c.b16 %v3110, %v3107
    %v3270 = vpack.c.b16 %v3111, %v3108
    %v3271 = vpack.c.b16 %v3115, %v3112
    %v3272 = vpack.c.b16 %v3116, %v3113
    %v3273 = vpack.c.b16 %v3117, %v3114
    %v3274 = vpack.c.b16 %v3121, %v3118
    %v3275 = vpack.c.b16 %v3122, %v3119
    %v3276 = vpack.c.b16 %v3123, %v3120
    %v3277 = vpack.c.b16 %v3127, %v3124
    %v3278 = vpack.c.b16 %v3128, %v3125
    %v3279 = vpack.c.b16 %v3129, %v3126
    %v3280 = vpack.c.b16 %v3133, %v3130
    %v3281 = vpack.c.b16 %v3134, %v3131
    %v3282 = vpack.c.b16 %v3135, %v3132
    %v3283 = vpack.c.b16 %v3139, %v3136
    %v3284 = vpack.c.b16 %v3140, %v3137
    %v3285 = vpack.c.b16 %v3141, %v3138
    %v3286 = vpack.c.b16 %v3145, %v3142
    %v3287 = vpack.c.b16 %v3146, %v3143
    %v3288 = vpack.c.b16 %v3147, %v3144
    %v3289 = vpack.c.b16 %v3151, %v3148
    %v3290 = vpack.c.b16 %v3152, %v3149
    %v3291 = vpack.c.b16 %v3153, %v3150
    %v3292 = vpack.c.b16 %v3157, %v3154
    %v3293 = vpack.c.b16 %v3158, %v3155
    %v3294 = vpack.c.b16 %v3159, %v3156
    %v3295 = vpack.c.b16 %v3163, %v3160
    %v3296 = vpack.c.b16 %v3164, %v3161
    %v3297 = vpack.c.b16 %v3165, %v3162
    %v3298 = vpack.c.b16 %v3169, %v3166
    %v3299 = vpack.c.b16 %v3170, %v3167
    %v3300 = vpack.c.b16 %v3171, %v3168
    %v3301 = vpack.c.b16 %v3175, %v3172
    %v3302 = vpack.c.b16 %v3176, %v3173
    %v3303 = vpack.c.b16 %v3177, %v3174
    %v3304 = vpack.c.b16 %v3181, %v3178
    %v3305 = vpack.c.b16 %v3182, %v3179
    %v3306 = vpack.c.b16 %v3183, %v3180
    %v3307 = vpack.c.b16 %v3187, %v3184
    %v3308 = vpack.c.b16 %v3188, %v3185
    %v3309 = vpack.c.b16 %v3189, %v3186
    %v3310 = vpack.c.b16 %v3193, %v3190
    %v3311 = vpack.c.b16 %v3194, %v3191
    %v3312 = vpack.c.b16 %v3195, %v3192
    %v3313 = vpack.c.b16 %v3199, %v3196
    %v3314 = vpack.c.b16 %v3200, %v3197
    %v3315 = vpack.c.b16 %v3201, %v3198
    %v3316 = vpack.c.b16 %v3205, %v3202
    %v3317 = vpack.c.b16 %v3206, %v3203
    %v3318 = vpack.c.b16 %v3207, %v3204
    %v3319 = vpack.c.b16 %v3211, %v3208
    %v3320 = vpack.c.b16 %v3212, %v3209
    %v3321 = vpack.c.b16 %v3213, %v3210
    %v3322 = vpack.c.b16 %v3217, %v3214
    %v3323 = vpack.c.b16 %v3218, %v3215
    %v3324 = vpack.c.b16 %v3219, %v3216
    %v3325 = vpack.c.b16 %v3223, %v3220
    %v3326 = vpack.c.b16 %v3224, %v3221
    %v3327 = vpack.c.b16 %v3225, %v3222
    %v3328 = vpack.c.b16 %v3229, %v3226
    %v3329 = vpack.c.b16 %v3230, %v3227
    %v3330 = vpack.c.b16 %v3231, %v3228
    %v3331 = vpack.c.b16 %v3235, %v3232
    %v3332 = vpack.c.b16 %v3236, %v3233
    %v3333 = vpack.c.b16 %v3237, %v3234
    %3430 = vmatprep.subr.bf16.mxu0 %v3260
    %3431 = vmatpush1.bf16.msra.mxu0 %v3259
    %3432 = vmatprep.subr.bf16.mxu0 %v3257
    %3433 = vmatpush1.bf16.msra.mxu0 %v3256
    %3434 = vmatprep.subr.bf16.mxu0 %v3254
    %3435 = vmatpush1.bf16.msra.mxu0 %v3253
    %3436 = vmatprep.subr.bf16.mxu0 %v3251
    %3437 = vmatpush1.bf16.msra.mxu0 %v3250
    %3438 = vmatprep.subr.bf16.mxu0 %v3248
    %3439 = vmatpush1.bf16.msra.mxu0 %v3247
    %3440 = vmatprep.subr.bf16.mxu0 %v3245
    %3441 = vmatpush1.bf16.msra.mxu0 %v3244
    %3442 = vmatprep.subr.bf16.mxu0 %v3242
    %3443 = vmatpush1.bf16.msra.mxu0 %v3241
    %3444 = vmatprep.subr.bf16.mxu0 %v3239
    %3445 = vmatpush1.bf16.msra.mxu0 %v3238
    %3446 = vmatprep.subr.bf16.mxu0 %v3284
    %3447 = vmatpush2.bf16.msra.mxu0 %v3283
    %3448 = vmatprep.subr.bf16.mxu0 %v3281
    %3449 = vmatpush2.bf16.msra.mxu0 %v3280
    %3450 = vmatprep.subr.bf16.mxu0 %v3278
    %3451 = vmatpush2.bf16.msra.mxu0 %v3277
    %3452 = vmatprep.subr.bf16.mxu0 %v3275
    %3453 = vmatpush2.bf16.msra.mxu0 %v3274
    %3454 = vmatprep.subr.bf16.mxu0 %v3272
    %3455 = vmatpush2.bf16.msra.mxu0 %v3271
    %3456 = vmatprep.subr.bf16.mxu0 %v3269
    %3457 = vmatpush2.bf16.msra.mxu0 %v3268
    %3458 = vmatprep.subr.bf16.mxu0 %v3266
    %3459 = vmatpush2.bf16.msra.mxu0 %v3265
    %3460 = vmatprep.subr.bf16.mxu0 %v3263
    %3461 = vmatpush2.bf16.msra.mxu0 %v3262
    %3462 = vmatprep.mubr.bf16.mxu0 %v2770
    %3463 = vmatmul.mubr.bf16.gmra.mxu0 %v2769
    %v3464 = vpop.f32.mrf.mxu0
    %v3465 = vadd.f32 %v2906, %v3464
    %v3466 = vpop.f32.mrf.mxu0
    %v3467 = vadd.f32 %v2910, %v3466
    %v3468 = vpop.f32.mrf.mxu0
    %v3469 = vadd.f32 %v2906, %v3468
    %v3470 = vpop.f32.mrf.mxu0
    %v3471 = vadd.f32 %v2910, %v3470
    %3472 = vdwg.mxu0
    %3473 = vmatprep.subr.bf16.mxu0 %v3308
    %3474 = vmatpush1.bf16.msra.mxu0 %v3307
    %3475 = vmatprep.subr.bf16.mxu0 %v3305
    %3476 = vmatpush1.bf16.msra.mxu0 %v3304
    %3477 = vmatprep.subr.bf16.mxu0 %v3302
    %3478 = vmatpush1.bf16.msra.mxu0 %v3301
    %3479 = vmatprep.subr.bf16.mxu0 %v3299
    %3480 = vmatpush1.bf16.msra.mxu0 %v3298
    %3481 = vmatprep.subr.bf16.mxu0 %v3296
    %3482 = vmatpush1.bf16.msra.mxu0 %v3295
    %3483 = vmatprep.subr.bf16.mxu0 %v3293
    %3484 = vmatpush1.bf16.msra.mxu0 %v3292
    %3485 = vmatprep.subr.bf16.mxu0 %v3290
    %3486 = vmatpush1.bf16.msra.mxu0 %v3289
    %3487 = vmatprep.subr.bf16.mxu0 %v3287
    %3488 = vmatpush1.bf16.msra.mxu0 %v3286
    %3489 = vmatprep.subr.bf16.mxu0 %v3332
    %3490 = vmatpush2.bf16.msra.mxu0 %v3331
    %3491 = vmatprep.subr.bf16.mxu0 %v3329
    %3492 = vmatpush2.bf16.msra.mxu0 %v3328
    %3493 = vmatprep.subr.bf16.mxu0 %v3326
    %3494 = vmatpush2.bf16.msra.mxu0 %v3325
    %3495 = vmatprep.subr.bf16.mxu0 %v3323
    %3496 = vmatpush2.bf16.msra.mxu0 %v3322
    %3497 = vmatprep.subr.bf16.mxu0 %v3320
    %3498 = vmatpush2.bf16.msra.mxu0 %v3319
    %3499 = vmatprep.subr.bf16.mxu0 %v3317
    %3500 = vmatpush2.bf16.msra.mxu0 %v3316
    %3501 = vmatprep.subr.bf16.mxu0 %v3314
    %3502 = vmatpush2.bf16.msra.mxu0 %v3313
    %3503 = vmatprep.subr.bf16.mxu0 %v3311
    %3504 = vmatpush2.bf16.msra.mxu0 %v3310
    %3505 = vmatprep.mubr.bf16.mxu0 %v2772
    %3506 = vmatmul.mubr.bf16.gmra.mxu0 %v2771
    %v3507 = vpop.f32.mrf.mxu0
    %v3508 = vadd.f32 %v3465, %v3507
    %v3509 = vpop.f32.mrf.mxu0
    %v3510 = vadd.f32 %v3467, %v3509
    %v3511 = vpop.f32.mrf.mxu0
    %v3512 = vadd.f32 %v3469, %v3511
    %v3513 = vpop.f32.mrf.mxu0
    %v3514 = vadd.f32 %v3471, %v3513
    %3515 = vdwg.mxu0
    %3516 = vmatprep.subr.bf16.mxu0 0
    %3517 = vmatpush1.bf16.msra.mxu0 %v3261
    %3518 = vmatprep.subr.bf16.mxu0 0
    %3519 = vmatpush1.bf16.msra.mxu0 %v3258
    %3520 = vmatprep.subr.bf16.mxu0 0
    %3521 = vmatpush1.bf16.msra.mxu0 %v3255
    %3522 = vmatprep.subr.bf16.mxu0 0
    %3523 = vmatpush1.bf16.msra.mxu0 %v3252
    %3524 = vmatprep.subr.bf16.mxu0 0
    %3525 = vmatpush1.bf16.msra.mxu0 %v3249
    %3526 = vmatprep.subr.bf16.mxu0 0
    %3527 = vmatpush1.bf16.msra.mxu0 %v3246
    %3528 = vmatprep.subr.bf16.mxu0 0
    %3529 = vmatpush1.bf16.msra.mxu0 %v3243
    %3530 = vmatprep.subr.bf16.mxu0 0
    %3531 = vmatpush1.bf16.msra.mxu0 %v3240
    %3532 = vmatprep.subr.bf16.mxu0 0
    %3533 = vmatpush2.bf16.msra.mxu0 %v3285
    %3534 = vmatprep.subr.bf16.mxu0 0
    %3535 = vmatpush2.bf16.msra.mxu0 %v3282
    %3536 = vmatprep.subr.bf16.mxu0 0
    %3537 = vmatpush2.bf16.msra.mxu0 %v3279
    %3538 = vmatprep.subr.bf16.mxu0 0
    %3539 = vmatpush2.bf16.msra.mxu0 %v3276
    %3540 = vmatprep.subr.bf16.mxu0 0
    %3541 = vmatpush2.bf16.msra.mxu0 %v3273
    %3542 = vmatprep.subr.bf16.mxu0 0
    %3543 = vmatpush2.bf16.msra.mxu0 %v3270
    %3544 = vmatprep.subr.bf16.mxu0 0
    %3545 = vmatpush2.bf16.msra.mxu0 %v3267
    %3546 = vmatprep.subr.bf16.mxu0 0
    %3547 = vmatpush2.bf16.msra.mxu0 %v3264
    %3548 = vmatprep.mubr.bf16.mxu0 %v2770
    %3549 = vmatmul.mubr.bf16.gmra.mxu0 %v2769
    %v3550 = vpop.f32.mrf.mxu0
    %v3551 = vadd.f32 %v2914, %v3550
    %v3552 = vpop.f32.mrf.mxu0
    %v3553 = vpop.f32.mrf.mxu0
    %v3554 = vadd.f32 %v2914, %v3553
    %v3555 = vpop.f32.mrf.mxu0
    %3556 = vdwg.mxu0
    %3557 = vmatprep.subr.bf16.mxu0 0
    %3558 = vmatpush1.bf16.msra.mxu0 %v3309
    %3559 = vmatprep.subr.bf16.mxu0 0
    %3560 = vmatpush1.bf16.msra.mxu0 %v3306
    %3561 = vmatprep.subr.bf16.mxu0 0
    %3562 = vmatpush1.bf16.msra.mxu0 %v3303
    %3563 = vmatprep.subr.bf16.mxu0 0
    %3564 = vmatpush1.bf16.msra.mxu0 %v3300
    %3565 = vmatprep.subr.bf16.mxu0 0
    %3566 = vmatpush1.bf16.msra.mxu0 %v3297
    %3567 = vmatprep.subr.bf16.mxu0 0
    %3568 = vmatpush1.bf16.msra.mxu0 %v3294
    %3569 = vmatprep.subr.bf16.mxu0 0
    %3570 = vmatpush1.bf16.msra.mxu0 %v3291
    %3571 = vmatprep.subr.bf16.mxu0 0
    %3572 = vmatpush1.bf16.msra.mxu0 %v3288
    %3573 = vmatprep.subr.bf16.mxu0 0
    %3574 = vmatpush2.bf16.msra.mxu0 %v3333
    %3575 = vmatprep.subr.bf16.mxu0 0
    %3576 = vmatpush2.bf16.msra.mxu0 %v3330
    %3577 = vmatprep.subr.bf16.mxu0 0
    %3578 = vmatpush2.bf16.msra.mxu0 %v3327
    %3579 = vmatprep.subr.bf16.mxu0 0
    %3580 = vmatpush2.bf16.msra.mxu0 %v3324
    %3581 = vmatprep.subr.bf16.mxu0 0
    %3582 = vmatpush2.bf16.msra.mxu0 %v3321
    %3583 = vmatprep.subr.bf16.mxu0 0
    %3584 = vmatpush2.bf16.msra.mxu0 %v3318
    %3585 = vmatprep.subr.bf16.mxu0 0
    %3586 = vmatpush2.bf16.msra.mxu0 %v3315
    %3587 = vmatprep.subr.bf16.mxu0 0
    %3588 = vmatpush2.bf16.msra.mxu0 %v3312
    %3589 = vmatprep.mubr.bf16.mxu0 %v2772
    %3590 = vmatmul.mubr.bf16.gmra.mxu0 %v2771
    %v3591 = vpop.f32.mrf.mxu0
    %v3592 = vadd.f32 %v3551, %v3591
    %v3593 = vpop.f32.mrf.mxu0
    %v3594 = vpop.f32.mrf.mxu0
    %v3595 = vadd.f32 %v3554, %v3594
    %v3596 = vpop.f32.mrf.mxu0
    %3597 = vdwg.mxu0
    %3598 = vst [vmem:[#allocation16] sm:$0xff] %v3508
    %3599 = vst [vmem:[#allocation16 + $0x8] sm:$0xff] %v3510
    %3600 = vst [vmem:[#allocation16 + $0x10] sm:$0xff] %v3592
    %3601 = vst [vmem:[#allocation16 + $0x18] sm:$0xff] %v3512
    %3602 = vst [vmem:[#allocation16 + $0x20] sm:$0xff] %v3514
    %3603 = vst [vmem:[#allocation16 + $0x28] sm:$0xff] %v3595
    // Predicated region
    $region82: #{tpu_custom_call.1} parent=1 // pred_check
      _
    $region83: #{tpu_custom_call.1} parent=1 // pred_check_branch
      %3605 = sbr.rel (0) target = $region85
    $region84: #{tpu_custom_call.1} parent=1 // pred_region
      %s3607 = ssub.s32 768, 768
      %3608 = vsyncadd [#allocation4], %s3607
      %s3609 = sshll.u32 [#allocation16], 4
      %s3610 = int_to_ptr.vmem [resolvable:$true] %s3609
      %3615 = dma.vmem_to_hbm [thread:$0]  %s3610, 768, %s12, [#allocation4], 384, 384, 24
    $region85: #{tpu_custom_call.1} parent=1 // pred_fallthru
      _
    // Predicated region
    $region86: #{tpu_custom_call.1} parent=1 // pred_check
      _
    $region87: #{tpu_custom_call.1} parent=1 // pred_check_branch
      %3617 = sbr.rel (0) target = $region89
    $region88: #{tpu_custom_call.1} parent=1 // pred_region
      %3618 = dma.done [#allocation4], 768
    $region89: #{tpu_custom_call.1} parent=1 // pred_fallthru
      _
    %3619 = vsyncpa [#allocation3], 1
    %3620 = vsyncpa [#allocation6], 1
    %3621 = vsyncpa [#allocation9], 1
    %3622 = vsyncpa [#allocation12], 1
    %3623 = vsyncpa [#allocation15], 1
    %3624 = vsyncpa [#allocation4], 1

</llo_original>
